<compile_context>
chip_gen: v7x
topology: tpu7x:2x2x1
jax: 0.10.0
libtpu: 0.0.40
codegen_flags: <defaults>
</compile_context>

<pallas_src>
import jax
import jax.numpy as jnp
from jax.experimental import pallas as pl
from jax.experimental.pallas import tpu as pltpu


# ---------------------------------------------------------------------------
# VMEM limit helpers.
# ---------------------------------------------------------------------------

def _vmem_capacity_bytes():
    try:
        info = pltpu.get_tpu_info()
        cap = getattr(info, "vmem_capacity_bytes", None)
        if cap:
            return int(cap)
    except Exception:
        pass
    return 64 * 1024 * 1024        # conservative fallback (v7x physical VMEM)


def _vmem_limit(nbytes):
    """~1.5x residency margin, floor 16 MiB, capped at physical VMEM."""
    return int(min(_vmem_capacity_bytes(),
                   max(16 * 1024 * 1024, int(1.5 * nbytes))))


# ---------------------------------------------------------------------------
# Fused kernel: layer-0 input projection + 2-layer LSTM recurrence + FC head.
# ---------------------------------------------------------------------------

def _posenet_fused_kernel(x_ref, wih0_ref, b0_ref,
                          wih1_hbm, whh0_hbm, whh1_hbm,
                          b1_ref, wfc_ref, bfc_ref,
                          y_ref,
                          z0_scr, wl1_buf, whh0_buf, sems):
    T, Bp, G = z0_scr.shape
    H = whh0_buf.shape[0]

    # --- Recurrent-weight DMAs: issued immediately, ordered by first use. ---
    #   W_ih1 (needed at t=0, layer 1)  -> rows [0, H)   of wl1_buf
    #   W_hh0 (needed at t=1, layer 0)  -> whh0_buf
    #   W_hh1 (needed at t=1, layer 1)  -> rows [H, 2H)  of wl1_buf
    cp_wih1 = pltpu.make_async_copy(wih1_hbm, wl1_buf.at[pl.ds(0, H), :], sems.at[0])
    cp_whh0 = pltpu.make_async_copy(whh0_hbm, whh0_buf, sems.at[1])
    cp_whh1 = pltpu.make_async_copy(whh1_hbm, wl1_buf.at[pl.ds(H, H), :], sems.at[2])
    cp_wih1.start()
    cp_whh0.start()
    cp_whh1.start()

    # --- Stage-1 preamble (overlaps the DMAs above): time-parallel layer-0
    #     input projection Z0 = X @ W_ih0 + b0 for ALL timesteps at once. ---
    z0_all = jnp.dot(x_ref[...], wih0_ref[...], preferred_element_type=jnp.float32)
    z0_all = z0_all + b0_ref[...].astype(jnp.float32)
    z0_scr[...] = z0_all.reshape(T, Bp, G)

    b1 = b1_ref[...].astype(jnp.float32)        # (1, 4H)
    bfc = bfc_ref[...]                          # (1, 6) f32

    def gates(z, c_prev):
        # PyTorch gate order i, f, g, o; compute-and-consume to keep vreg live
        # ranges short (f32 gate math: v5e has no bf16 VPU/EUP path).
        c_new = (jax.nn.sigmoid(z[:, H:2 * H]) * c_prev
                 + jax.nn.sigmoid(z[:, 0:H]) * jnp.tanh(z[:, 2 * H:3 * H]))
        h_new = jax.nn.sigmoid(z[:, 3 * H:4 * H]) * jnp.tanh(c_new)
        return h_new, c_new

    def fc(h1):
        # Fused Linear(H, 6) * 0.01 head (tiny; off the recurrence crit path).
        return 0.01 * (jnp.dot(h1, wfc_ref[...],
                               preferred_element_type=jnp.float32) + bfc)

    # --- t = 0, peeled: h/c are zero -> both recurrent matmuls skipped;
    #     layer 1 only needs the W_ih1 half of the concat buffer. ---
    zero = jnp.zeros((Bp, H), jnp.float32)
    h0, c0 = gates(z0_scr[0], zero)
    cp_wih1.wait()
    z1 = jnp.dot(h0.astype(wl1_buf.dtype), wl1_buf[pl.ds(0, H), :],
                 preferred_element_type=jnp.float32) + b1
    h1, c1 = gates(z1, zero)
    y_ref[0] = fc(h1)

    # --- t >= 1: full recurrence.  Remaining weights only needed from here. ---
    cp_whh0.wait()
    cp_whh1.wait()

    def step(t, carry):
        h0, c0, h1, c1 = carry
        # Layer 0: input projection precomputed; only the recurrent matmul runs.
        z0 = z0_scr[t] + jnp.dot(h0.astype(whh0_buf.dtype), whh0_buf[...],
                                 preferred_element_type=jnp.float32)
        h0, c0 = gates(z0, c0)
        # Layer 1: single matmul against the concatenated [W_ih1; W_hh1].
        hcat = jnp.concatenate([h0, h1], axis=1).astype(wl1_buf.dtype)
        z1 = jnp.dot(hcat, wl1_buf[...], preferred_element_type=jnp.float32) + b1
        h1, c1 = gates(z1, c1)
        y_ref[t] = fc(h1)
        return h0, c0, h1, c1

    # TODO(synk): cap the unroll (unroll=4) if T ever grows beyond ~16.
    jax.lax.fori_loop(1, T, step, (h0, c0, h1, c1), unroll=True)


# ---------------------------------------------------------------------------
# Wrapper mirroring PoseNet_unvio.forward (batch-first in / batch-first out).
# ---------------------------------------------------------------------------

def posenet_unvio_forward(visual_fea, imu_fea, params):
    if imu_fea is not None:
        B, t = imu_fea.shape[0], imu_fea.shape[1]
        inpt = jnp.concatenate(
            [visual_fea.reshape(B, t, -1), imu_fea.reshape(B, t, -1)], axis=2)
    else:
        inpt = visual_fea
    B, T, D = inpt.shape
    H = params["whh0"].shape[0]
    G = 4 * H

    # Pad batch to a full sublane group (8); padded rows are independent and
    # sliced off at the end.
    Bp = max(8, ((B + 7) // 8) * 8)

    # Time-major layout so each recurrence step reads one contiguous (Bp, 4H)
    # slab.  TODO(synk): fold this transpose/pad/cast into kernel-side indexing.
    x_tm = jnp.transpose(inpt, (1, 0, 2))                        # (T, B, D)
    x_tm = jnp.pad(x_tm, ((0, 0), (0, Bp - B), (0, 0)))          # (T, Bp, D)
    x2d = x_tm.reshape(T * Bp, D).astype(jnp.bfloat16)

    resident = (x2d.size * 2
                + params["wih0"].size * 2
                + (params["wih1"].size + params["whh0"].size
                   + params["whh1"].size) * 2                    # VMEM weight bufs
                + (params["b0"].size + params["b1"].size) * 4
                + (params["wfc"].size + params["bfc"].size) * 4
                + T * Bp * G * 4                                 # z0 scratch
                + T * Bp * 6 * 4)                                # output

    vmem_spec = pl.BlockSpec(memory_space=pltpu.MemorySpace.VMEM)
    hbm_spec = pl.BlockSpec(memory_space=pl.ANY)

    # TODO(synk): on v7x, split the 4H gate dimension across both TensorCores
    # via pl.core_map(pltpu.create_tensorcore_mesh(...)).
    y_all = pl.pallas_call(
        _posenet_fused_kernel,
        out_shape=jax.ShapeDtypeStruct((T, Bp, 6), jnp.float32),
        in_specs=[vmem_spec, vmem_spec, vmem_spec,      # x2d, wih0, b0
                  hbm_spec, hbm_spec, hbm_spec,         # wih1, whh0, whh1 (HBM)
                  vmem_spec, vmem_spec, vmem_spec],     # b1, wfc, bfc
        out_specs=vmem_spec,
        scratch_shapes=[
            pltpu.VMEM((T, Bp, G), jnp.float32),        # Z0 for all timesteps
            pltpu.VMEM((2 * H, G), jnp.bfloat16),       # [W_ih1; W_hh1] concat
            pltpu.VMEM((H, G), jnp.bfloat16),           # W_hh0
            pltpu.SemaphoreType.DMA((3,)),
        ],
        compiler_params=pltpu.CompilerParams(
            vmem_limit_bytes=_vmem_limit(resident)),
    )(x2d, params["wih0"], params["b0"],
      params["wih1"], params["whh0"], params["whh1"],
      params["b1"], params["wfc"], params["bfc"])

    return jnp.transpose(y_all[:, :B, :], (1, 0, 2))             # (B, T, 6)


# ---------------------------------------------------------------------------
# Parameters + pure-JAX reference.
# ---------------------------------------------------------------------------

def make_params(key, input_size, hidden):
    """Deterministic synthetic parameters (Xavier-ish), pre-transposed.

    Large LSTM weight matrices are stored in bf16 (native MXU input dtype,
    halves HBM/VMEM traffic); biases and the tiny FC head stay in f32."""
    ks = jax.random.split(key, 8)
    D, H = input_size, hidden

    def xav(k, shape, dtype):
        fan_in, fan_out = shape
        std = (2.0 / (fan_in + fan_out)) ** 0.5
        return (std * jax.random.normal(k, shape)).astype(dtype)

    return dict(
        wih0=xav(ks[0], (D, 4 * H), jnp.bfloat16),
        whh0=xav(ks[1], (H, 4 * H), jnp.bfloat16),
        b0=(0.01 * jax.random.normal(ks[2], (1, 4 * H))).astype(jnp.float32),
        wih1=xav(ks[3], (H, 4 * H), jnp.bfloat16),
        whh1=xav(ks[4], (H, 4 * H), jnp.bfloat16),
        b1=(0.01 * jax.random.normal(ks[5], (1, 4 * H))).astype(jnp.float32),
        wfc=xav(ks[6], (H, 6), jnp.float32),
        bfc=jnp.zeros((1, 6), jnp.float32),
    )


def ref_forward(visual_fea, imu_fea, params):
    """Pure-JAX f32 reference (same weight values), for correctness check."""
    inpt = jnp.concatenate([visual_fea, imu_fea], axis=2)
    B, T, _ = inpt.shape
    H = params["whh0"].shape[0]
    f32 = lambda k: params[k].astype(jnp.float32)
    wih0, whh0, b0 = f32("wih0"), f32("whh0"), f32("b0")
    wih1, whh1, b1 = f32("wih1"), f32("whh1"), f32("b1")
    wfc, bfc = f32("wfc"), f32("bfc")

    def cell(x, h, c, wih, whh, b):
        z = x @ wih + h @ whh + b
        i = jax.nn.sigmoid(z[:, :H])
        f = jax.nn.sigmoid(z[:, H:2 * H])
        g = jnp.tanh(z[:, 2 * H:3 * H])
        o = jax.nn.sigmoid(z[:, 3 * H:])
        c = f * c + i * g
        h = o * jnp.tanh(c)
        return h, c

    h0 = jnp.zeros((B, H), jnp.float32)
    c0 = jnp.zeros((B, H), jnp.float32)
    h1 = jnp.zeros((B, H), jnp.float32)
    c1 = jnp.zeros((B, H), jnp.float32)
    outs = []
    for t in range(T):
        h0, c0 = cell(inpt[:, t], h0, c0, wih0, whh0, b0)
        h1, c1 = cell(h0, h1, c1, wih1, whh1, b1)
        outs.append(0.01 * (h1 @ wfc + bfc))
    return jnp.stack(outs, axis=1)                               # (B, T, 6)


if __name__ == "__main__":
    # Small shapes consistent with the module: visual + imu concat -> input_size.
    B, T = 2, 8
    D_visual, D_imu = 24, 8
    INPUT_SIZE = D_visual + D_imu      # 32 (stands in for the default 1024)
    HIDDEN = 32                        # stands in for the hardcoded 1024

    key = jax.random.PRNGKey(0)
    k_vis, k_imu, k_par = jax.random.split(key, 3)
    visual_fea = jax.random.normal(k_vis, (B, T, D_visual), jnp.float32)
    imu_fea = jax.random.normal(k_imu, (B, T, D_imu), jnp.float32)
    params = make_params(k_par, INPUT_SIZE, HIDDEN)

    fwd = jax.jit(posenet_unvio_forward)
    out = jax.block_until_ready(fwd(visual_fea, imu_fea, params))
    assert out.shape == (B, T, 6), out.shape

    ref = jax.block_until_ready(ref_forward(visual_fea, imu_fea, params))
    max_err = float(jnp.max(jnp.abs(out - ref)))
    assert jnp.allclose(out, ref, rtol=2e-2, atol=2e-3), max_err

    print("KERNEL_OK")
</pallas_src>

<mosaic_0001>
module attributes {stable_mosaic.version = 11 : i64} {
  func.func @_posenet_fused_kernel(%arg0: memref<64x32xbf16, #tpu.memory_space<vmem>>, %arg1: memref<32x128xbf16, #tpu.memory_space<vmem>>, %arg2: memref<1x128xf32, #tpu.memory_space<vmem>>, %arg3: memref<32x128xbf16, #tpu.memory_space<any>>, %arg4: memref<32x128xbf16, #tpu.memory_space<any>>, %arg5: memref<32x128xbf16, #tpu.memory_space<any>>, %arg6: memref<1x128xf32, #tpu.memory_space<vmem>>, %arg7: memref<32x6xf32, #tpu.memory_space<vmem>>, %arg8: memref<1x6xf32, #tpu.memory_space<vmem>>, %arg9: memref<8x8x6xf32, #tpu.memory_space<vmem>>, %arg10: memref<8x8x128xf32, #tpu.memory_space<vmem>>, %arg11: memref<64x128xbf16, #tpu.memory_space<vmem>>, %arg12: memref<32x128xbf16, #tpu.memory_space<vmem>>, %arg13: memref<3x!tpu.dma_semaphore, #tpu.memory_space<semaphore_mem>>) attributes {dimension_semantics = [], scalar_prefetch = 0 : i64, scratch_operands = 4 : i64, tpu.core_type = #tpu.core_type<tc>} {
    %c0_i32 = arith.constant 0 : i32
    %c0_i32_0 = arith.constant 0 : i32
    %c0_i32_1 = arith.constant 0 : i32
    %0 = tpu.memref_slice %arg11[%c0_i32_0, %c0_i32_1] : memref<64x128xbf16, #tpu.memory_space<vmem>> -> memref<32x128xbf16, #tpu.memory_space<vmem>>
    %1 = tpu.memref_slice %arg13[%c0_i32] : memref<3x!tpu.dma_semaphore, #tpu.memory_space<semaphore_mem>> -> memref<1x!tpu.dma_semaphore, #tpu.memory_space<semaphore_mem>>
    %2 = tpu.memref_squeeze %1 : memref<1x!tpu.dma_semaphore, #tpu.memory_space<semaphore_mem>> -> memref<!tpu.dma_semaphore, #tpu.memory_space<semaphore_mem>>
    tpu.enqueue_dma source(%arg3 : memref<32x128xbf16, #tpu.memory_space<any>>) target(%0 : memref<32x128xbf16, #tpu.memory_space<vmem>>) target_semaphore(%2 : memref<!tpu.dma_semaphore, #tpu.memory_space<semaphore_mem>>)
    %c1_i32 = arith.constant 1 : i32
    %3 = tpu.memref_slice %arg13[%c1_i32] : memref<3x!tpu.dma_semaphore, #tpu.memory_space<semaphore_mem>> -> memref<1x!tpu.dma_semaphore, #tpu.memory_space<semaphore_mem>>
    %4 = tpu.memref_squeeze %3 : memref<1x!tpu.dma_semaphore, #tpu.memory_space<semaphore_mem>> -> memref<!tpu.dma_semaphore, #tpu.memory_space<semaphore_mem>>
    tpu.enqueue_dma source(%arg4 : memref<32x128xbf16, #tpu.memory_space<any>>) target(%arg12 : memref<32x128xbf16, #tpu.memory_space<vmem>>) target_semaphore(%4 : memref<!tpu.dma_semaphore, #tpu.memory_space<semaphore_mem>>)
    %c2_i32 = arith.constant 2 : i32
    %c32_i32 = arith.constant 32 : i32
    %c0_i32_2 = arith.constant 0 : i32
    %5 = tpu.memref_slice %arg11[%c32_i32, %c0_i32_2] : memref<64x128xbf16, #tpu.memory_space<vmem>> -> memref<32x128xbf16, #tpu.memory_space<vmem>>
    %6 = tpu.memref_slice %arg13[%c2_i32] : memref<3x!tpu.dma_semaphore, #tpu.memory_space<semaphore_mem>> -> memref<1x!tpu.dma_semaphore, #tpu.memory_space<semaphore_mem>>
    %7 = tpu.memref_squeeze %6 : memref<1x!tpu.dma_semaphore, #tpu.memory_space<semaphore_mem>> -> memref<!tpu.dma_semaphore, #tpu.memory_space<semaphore_mem>>
    tpu.enqueue_dma source(%arg5 : memref<32x128xbf16, #tpu.memory_space<any>>) target(%5 : memref<32x128xbf16, #tpu.memory_space<vmem>>) target_semaphore(%7 : memref<!tpu.dma_semaphore, #tpu.memory_space<semaphore_mem>>)
    %c0 = arith.constant 0 : index
    %c0_3 = arith.constant 0 : index
    %8 = vector.load %arg0[%c0, %c0_3] : memref<64x32xbf16, #tpu.memory_space<vmem>>, vector<64x32xbf16>
    %c0_4 = arith.constant 0 : index
    %c0_5 = arith.constant 0 : index
    %9 = vector.load %arg1[%c0_4, %c0_5] : memref<32x128xbf16, #tpu.memory_space<vmem>>, vector<32x128xbf16>
    %cst = arith.constant dense<0.000000e+00> : vector<64x128xf32>
    %10 = tpu.matmul %8, %9, %cst {dimension_numbers = #tpu.dot_dimension_numbers<[1], [0], [0], [1], [0, 0, 1, 1], [], []>} : vector<64x32xbf16>, vector<32x128xbf16>, vector<64x128xf32> -> vector<64x128xf32>
    %c0_6 = arith.constant 0 : index
    %c0_7 = arith.constant 0 : index
    %11 = vector.load %arg2[%c0_6, %c0_7] : memref<1x128xf32, #tpu.memory_space<vmem>>, vector<1x128xf32>
    %12 = vector.broadcast %11 : vector<1x128xf32> to vector<64x128xf32>
    %13 = arith.addf %10, %12 : vector<64x128xf32>
    %14 = vector.shape_cast %13 : vector<64x128xf32> to vector<8x8x128xf32>
    %c0_8 = arith.constant 0 : index
    %c0_9 = arith.constant 0 : index
    %c0_10 = arith.constant 0 : index
    %15 = vector.load %arg10[%c0_8, %c0_9, %c0_10] : memref<8x8x128xf32, #tpu.memory_space<vmem>>, vector<8x8x128xf32>
    tpu.vector_store %arg10[%c0_8, %c0_9, %c0_10], %14 {strides = array<i32>} : memref<8x8x128xf32, #tpu.memory_space<vmem>>, vector<8x8x128xf32>,
    %c0_11 = arith.constant 0 : index
    %c0_12 = arith.constant 0 : index
    %16 = vector.load %arg6[%c0_11, %c0_12] : memref<1x128xf32, #tpu.memory_space<vmem>>, vector<1x128xf32>
    %c0_13 = arith.constant 0 : index
    %c0_14 = arith.constant 0 : index
    %17 = vector.load %arg8[%c0_13, %c0_14] : memref<1x6xf32, #tpu.memory_space<vmem>>, vector<1x6xf32>
    %cst_15 = arith.constant 0.000000e+00 : f32
    %18 = vector.broadcast %cst_15 : f32 to vector<8x32xf32>
    %c0_16 = arith.constant 0 : index
    %c0_17 = arith.constant 0 : index
    %c0_18 = arith.constant 0 : index
    %19 = vector.load %arg10[%c0_16, %c0_17, %c0_18] : memref<8x8x128xf32, #tpu.memory_space<vmem>>, vector<1x8x128xf32>
    %20 = vector.shape_cast %19 : vector<1x8x128xf32> to vector<8x128xf32>
    %21 = vector.extract_strided_slice %20 {offsets = [0, 32], sizes = [8, 32], strides = [1, 1]} : vector<8x128xf32> to vector<8x32xf32>
    %22 = arith.negf %21 : vector<8x32xf32>
    %23 = math.exp %22 : vector<8x32xf32>
    %cst_19 = arith.constant 1.000000e+00 : f32
    %24 = vector.broadcast %cst_19 : f32 to vector<8x32xf32>
    %25 = arith.addf %24, %23 : vector<8x32xf32>
    %26 = arith.divf %24, %25 : vector<8x32xf32>
    %27 = arith.mulf %26, %18 : vector<8x32xf32>
    %28 = vector.extract_strided_slice %20 {offsets = [0, 0], sizes = [8, 32], strides = [1, 1]} : vector<8x128xf32> to vector<8x32xf32>
    %29 = arith.negf %28 : vector<8x32xf32>
    %30 = math.exp %29 : vector<8x32xf32>
    %cst_20 = arith.constant 1.000000e+00 : f32
    %31 = vector.broadcast %cst_20 : f32 to vector<8x32xf32>
    %32 = arith.addf %31, %30 : vector<8x32xf32>
    %33 = arith.divf %31, %32 : vector<8x32xf32>
    %34 = vector.extract_strided_slice %20 {offsets = [0, 64], sizes = [8, 32], strides = [1, 1]} : vector<8x128xf32> to vector<8x32xf32>
    %35 = math.tanh %34 : vector<8x32xf32>
    %36 = arith.mulf %33, %35 : vector<8x32xf32>
    %37 = arith.addf %27, %36 : vector<8x32xf32>
    %38 = vector.extract_strided_slice %20 {offsets = [0, 96], sizes = [8, 32], strides = [1, 1]} : vector<8x128xf32> to vector<8x32xf32>
    %39 = arith.negf %38 : vector<8x32xf32>
    %40 = math.exp %39 : vector<8x32xf32>
    %cst_21 = arith.constant 1.000000e+00 : f32
    %41 = vector.broadcast %cst_21 : f32 to vector<8x32xf32>
    %42 = arith.addf %41, %40 : vector<8x32xf32>
    %43 = arith.divf %41, %42 : vector<8x32xf32>
    %44 = math.tanh %37 : vector<8x32xf32>
    %45 = arith.mulf %43, %44 : vector<8x32xf32>
    %c0_i32_22 = arith.constant 0 : i32
    %c0_i32_23 = arith.constant 0 : i32
    %c0_i32_24 = arith.constant 0 : i32
    %46 = tpu.memref_slice %arg11[%c0_i32_23, %c0_i32_24] : memref<64x128xbf16, #tpu.memory_space<vmem>> -> memref<32x128xbf16, #tpu.memory_space<vmem>>
    %47 = tpu.memref_slice %arg13[%c0_i32_22] : memref<3x!tpu.dma_semaphore, #tpu.memory_space<semaphore_mem>> -> memref<1x!tpu.dma_semaphore, #tpu.memory_space<semaphore_mem>>
    %48 = tpu.memref_squeeze %47 : memref<1x!tpu.dma_semaphore, #tpu.memory_space<semaphore_mem>> -> memref<!tpu.dma_semaphore, #tpu.memory_space<semaphore_mem>>
    tpu.wait_dma2 semaphore(%48 : memref<!tpu.dma_semaphore, #tpu.memory_space<semaphore_mem>>) src(%arg3 : memref<32x128xbf16, #tpu.memory_space<any>>) dst(%46 : memref<32x128xbf16, #tpu.memory_space<vmem>>)
    %49 = arith.truncf %45 : vector<8x32xf32> to vector<8x32xbf16>
    %c0_25 = arith.constant 0 : index
    %c0_26 = arith.constant 0 : index
    %50 = vector.load %arg11[%c0_25, %c0_26] : memref<64x128xbf16, #tpu.memory_space<vmem>>, vector<32x128xbf16>
    %cst_27 = arith.constant dense<0.000000e+00> : vector<8x128xf32>
    %51 = tpu.matmul %49, %50, %cst_27 {dimension_numbers = #tpu.dot_dimension_numbers<[1], [0], [0], [1], [0, 0, 1, 1], [], []>} : vector<8x32xbf16>, vector<32x128xbf16>, vector<8x128xf32> -> vector<8x128xf32>
    %52 = vector.broadcast %16 : vector<1x128xf32> to vector<8x128xf32>
    %53 = arith.addf %51, %52 : vector<8x128xf32>
    %54 = vector.extract_strided_slice %53 {offsets = [0, 32], sizes = [8, 32], strides = [1, 1]} : vector<8x128xf32> to vector<8x32xf32>
    %55 = arith.negf %54 : vector<8x32xf32>
    %56 = math.exp %55 : vector<8x32xf32>
    %cst_28 = arith.constant 1.000000e+00 : f32
    %57 = vector.broadcast %cst_28 : f32 to vector<8x32xf32>
    %58 = arith.addf %57, %56 : vector<8x32xf32>
    %59 = arith.divf %57, %58 : vector<8x32xf32>
    %60 = arith.mulf %59, %18 : vector<8x32xf32>
    %61 = vector.extract_strided_slice %53 {offsets = [0, 0], sizes = [8, 32], strides = [1, 1]} : vector<8x128xf32> to vector<8x32xf32>
    %62 = arith.negf %61 : vector<8x32xf32>
    %63 = math.exp %62 : vector<8x32xf32>
    %cst_29 = arith.constant 1.000000e+00 : f32
    %64 = vector.broadcast %cst_29 : f32 to vector<8x32xf32>
    %65 = arith.addf %64, %63 : vector<8x32xf32>
    %66 = arith.divf %64, %65 : vector<8x32xf32>
    %67 = vector.extract_strided_slice %53 {offsets = [0, 64], sizes = [8, 32], strides = [1, 1]} : vector<8x128xf32> to vector<8x32xf32>
    %68 = math.tanh %67 : vector<8x32xf32>
    %69 = arith.mulf %66, %68 : vector<8x32xf32>
    %70 = arith.addf %60, %69 : vector<8x32xf32>
    %71 = vector.extract_strided_slice %53 {offsets = [0, 96], sizes = [8, 32], strides = [1, 1]} : vector<8x128xf32> to vector<8x32xf32>
    %72 = arith.negf %71 : vector<8x32xf32>
    %73 = math.exp %72 : vector<8x32xf32>
    %cst_30 = arith.constant 1.000000e+00 : f32
    %74 = vector.broadcast %cst_30 : f32 to vector<8x32xf32>
    %75 = arith.addf %74, %73 : vector<8x32xf32>
    %76 = arith.divf %74, %75 : vector<8x32xf32>
    %77 = math.tanh %70 : vector<8x32xf32>
    %78 = arith.mulf %76, %77 : vector<8x32xf32>
    %c0_31 = arith.constant 0 : index
    %c0_32 = arith.constant 0 : index
    %79 = vector.load %arg7[%c0_31, %c0_32] : memref<32x6xf32, #tpu.memory_space<vmem>>, vector<32x6xf32>
    %cst_33 = arith.constant dense<0.000000e+00> : vector<8x6xf32>
    %80 = tpu.matmul %78, %79, %cst_33 {dimension_numbers = #tpu.dot_dimension_numbers<[1], [0], [0], [1], [0, 0, 1, 1], [], []>} : vector<8x32xf32>, vector<32x6xf32>, vector<8x6xf32> -> vector<8x6xf32>
    %81 = vector.broadcast %17 : vector<1x6xf32> to vector<8x6xf32>
    %82 = arith.addf %80, %81 : vector<8x6xf32>
    %cst_34 = arith.constant 0.00999999977 : f32
    %83 = vector.broadcast %cst_34 : f32 to vector<8x6xf32>
    %84 = arith.mulf %83, %82 : vector<8x6xf32>
    %c0_35 = arith.constant 0 : index
    %c0_36 = arith.constant 0 : index
    %c0_37 = arith.constant 0 : index
    %85 = vector.load %arg9[%c0_35, %c0_36, %c0_37] : memref<8x8x6xf32, #tpu.memory_space<vmem>>, vector<1x8x6xf32>
    %86 = vector.shape_cast %85 : vector<1x8x6xf32> to vector<8x6xf32>
    %87 = vector.shape_cast %84 : vector<8x6xf32> to vector<1x8x6xf32>
    tpu.vector_store %arg9[%c0_35, %c0_36, %c0_37], %87 {strides = array<i32>} : memref<8x8x6xf32, #tpu.memory_space<vmem>>, vector<1x8x6xf32>,
    %c1_i32_38 = arith.constant 1 : i32
    %88 = tpu.memref_slice %arg13[%c1_i32_38] : memref<3x!tpu.dma_semaphore, #tpu.memory_space<semaphore_mem>> -> memref<1x!tpu.dma_semaphore, #tpu.memory_space<semaphore_mem>>
    %89 = tpu.memref_squeeze %88 : memref<1x!tpu.dma_semaphore, #tpu.memory_space<semaphore_mem>> -> memref<!tpu.dma_semaphore, #tpu.memory_space<semaphore_mem>>
    tpu.wait_dma2 semaphore(%89 : memref<!tpu.dma_semaphore, #tpu.memory_space<semaphore_mem>>) src(%arg4 : memref<32x128xbf16, #tpu.memory_space<any>>) dst(%arg12 : memref<32x128xbf16, #tpu.memory_space<vmem>>)
    %c2_i32_39 = arith.constant 2 : i32
    %c32_i32_40 = arith.constant 32 : i32
    %c0_i32_41 = arith.constant 0 : i32
    %90 = tpu.memref_slice %arg11[%c32_i32_40, %c0_i32_41] : memref<64x128xbf16, #tpu.memory_space<vmem>> -> memref<32x128xbf16, #tpu.memory_space<vmem>>
    %91 = tpu.memref_slice %arg13[%c2_i32_39] : memref<3x!tpu.dma_semaphore, #tpu.memory_space<semaphore_mem>> -> memref<1x!tpu.dma_semaphore, #tpu.memory_space<semaphore_mem>>
    %92 = tpu.memref_squeeze %91 : memref<1x!tpu.dma_semaphore, #tpu.memory_space<semaphore_mem>> -> memref<!tpu.dma_semaphore, #tpu.memory_space<semaphore_mem>>
    tpu.wait_dma2 semaphore(%92 : memref<!tpu.dma_semaphore, #tpu.memory_space<semaphore_mem>>) src(%arg5 : memref<32x128xbf16, #tpu.memory_space<any>>) dst(%90 : memref<32x128xbf16, #tpu.memory_space<vmem>>)
    %c1_i32_42 = arith.constant 1 : i32
    %93 = arith.index_cast %c1_i32_42 : i32 to index
    %c0_43 = arith.constant 0 : index
    %c0_44 = arith.constant 0 : index
    %94 = vector.load %arg10[%93, %c0_43, %c0_44] : memref<8x8x128xf32, #tpu.memory_space<vmem>>, vector<1x8x128xf32>
    %95 = vector.shape_cast %94 : vector<1x8x128xf32> to vector<8x128xf32>
    %96 = arith.truncf %45 : vector<8x32xf32> to vector<8x32xbf16>
    %c0_45 = arith.constant 0 : index
    %c0_46 = arith.constant 0 : index
    %97 = vector.load %arg12[%c0_45, %c0_46] : memref<32x128xbf16, #tpu.memory_space<vmem>>, vector<32x128xbf16>
    %cst_47 = arith.constant dense<0.000000e+00> : vector<8x128xf32>
    %98 = tpu.matmul %96, %97, %cst_47 {dimension_numbers = #tpu.dot_dimension_numbers<[1], [0], [0], [1], [0, 0, 1, 1], [], []>} : vector<8x32xbf16>, vector<32x128xbf16>, vector<8x128xf32> -> vector<8x128xf32>
    %99 = arith.addf %95, %98 : vector<8x128xf32>
    %100 = vector.extract_strided_slice %99 {offsets = [0, 32], sizes = [8, 32], strides = [1, 1]} : vector<8x128xf32> to vector<8x32xf32>
    %101 = arith.negf %100 : vector<8x32xf32>
    %102 = math.exp %101 : vector<8x32xf32>
    %cst_48 = arith.constant 1.000000e+00 : f32
    %103 = vector.broadcast %cst_48 : f32 to vector<8x32xf32>
    %104 = arith.addf %103, %102 : vector<8x32xf32>
    %105 = arith.divf %103, %104 : vector<8x32xf32>
    %106 = arith.mulf %105, %37 : vector<8x32xf32>
    %107 = vector.extract_strided_slice %99 {offsets = [0, 0], sizes = [8, 32], strides = [1, 1]} : vector<8x128xf32> to vector<8x32xf32>
    %108 = arith.negf %107 : vector<8x32xf32>
    %109 = math.exp %108 : vector<8x32xf32>
    %cst_49 = arith.constant 1.000000e+00 : f32
    %110 = vector.broadcast %cst_49 : f32 to vector<8x32xf32>
    %111 = arith.addf %110, %109 : vector<8x32xf32>
    %112 = arith.divf %110, %111 : vector<8x32xf32>
    %113 = vector.extract_strided_slice %99 {offsets = [0, 64], sizes = [8, 32], strides = [1, 1]} : vector<8x128xf32> to vector<8x32xf32>
    %114 = math.tanh %113 : vector<8x32xf32>
    %115 = arith.mulf %112, %114 : vector<8x32xf32>
    %116 = arith.addf %106, %115 : vector<8x32xf32>
    %117 = vector.extract_strided_slice %99 {offsets = [0, 96], sizes = [8, 32], strides = [1, 1]} : vector<8x128xf32> to vector<8x32xf32>
    %118 = arith.negf %117 : vector<8x32xf32>
    %119 = math.exp %118 : vector<8x32xf32>
    %cst_50 = arith.constant 1.000000e+00 : f32
    %120 = vector.broadcast %cst_50 : f32 to vector<8x32xf32>
    %121 = arith.addf %120, %119 : vector<8x32xf32>
    %122 = arith.divf %120, %121 : vector<8x32xf32>
    %123 = math.tanh %116 : vector<8x32xf32>
    %124 = arith.mulf %122, %123 : vector<8x32xf32>
    %125 = tpu.concatenate %124, %78 in 1 : vector<8x32xf32>, vector<8x32xf32> -> vector<8x64xf32>
    %126 = arith.truncf %125 : vector<8x64xf32> to vector<8x64xbf16>
    %c0_51 = arith.constant 0 : index
    %c0_52 = arith.constant 0 : index
    %127 = vector.load %arg11[%c0_51, %c0_52] : memref<64x128xbf16, #tpu.memory_space<vmem>>, vector<64x128xbf16>
    %cst_53 = arith.constant dense<0.000000e+00> : vector<8x128xf32>
    %128 = tpu.matmul %126, %127, %cst_53 {dimension_numbers = #tpu.dot_dimension_numbers<[1], [0], [0], [1], [0, 0, 1, 1], [], []>} : vector<8x64xbf16>, vector<64x128xbf16>, vector<8x128xf32> -> vector<8x128xf32>
    %129 = vector.broadcast %16 : vector<1x128xf32> to vector<8x128xf32>
    %130 = arith.addf %128, %129 : vector<8x128xf32>
    %131 = vector.extract_strided_slice %130 {offsets = [0, 32], sizes = [8, 32], strides = [1, 1]} : vector<8x128xf32> to vector<8x32xf32>
    %132 = arith.negf %131 : vector<8x32xf32>
    %133 = math.exp %132 : vector<8x32xf32>
    %cst_54 = arith.constant 1.000000e+00 : f32
    %134 = vector.broadcast %cst_54 : f32 to vector<8x32xf32>
    %135 = arith.addf %134, %133 : vector<8x32xf32>
    %136 = arith.divf %134, %135 : vector<8x32xf32>
    %137 = arith.mulf %136, %70 : vector<8x32xf32>
    %138 = vector.extract_strided_slice %130 {offsets = [0, 0], sizes = [8, 32], strides = [1, 1]} : vector<8x128xf32> to vector<8x32xf32>
    %139 = arith.negf %138 : vector<8x32xf32>
    %140 = math.exp %139 : vector<8x32xf32>
    %cst_55 = arith.constant 1.000000e+00 : f32
    %141 = vector.broadcast %cst_55 : f32 to vector<8x32xf32>
    %142 = arith.addf %141, %140 : vector<8x32xf32>
    %143 = arith.divf %141, %142 : vector<8x32xf32>
    %144 = vector.extract_strided_slice %130 {offsets = [0, 64], sizes = [8, 32], strides = [1, 1]} : vector<8x128xf32> to vector<8x32xf32>
    %145 = math.tanh %144 : vector<8x32xf32>
    %146 = arith.mulf %143, %145 : vector<8x32xf32>
    %147 = arith.addf %137, %146 : vector<8x32xf32>
    %148 = vector.extract_strided_slice %130 {offsets = [0, 96], sizes = [8, 32], strides = [1, 1]} : vector<8x128xf32> to vector<8x32xf32>
    %149 = arith.negf %148 : vector<8x32xf32>
    %150 = math.exp %149 : vector<8x32xf32>
    %cst_56 = arith.constant 1.000000e+00 : f32
    %151 = vector.broadcast %cst_56 : f32 to vector<8x32xf32>
    %152 = arith.addf %151, %150 : vector<8x32xf32>
    %153 = arith.divf %151, %152 : vector<8x32xf32>
    %154 = math.tanh %147 : vector<8x32xf32>
    %155 = arith.mulf %153, %154 : vector<8x32xf32>
    %c0_57 = arith.constant 0 : index
    %c0_58 = arith.constant 0 : index
    %156 = vector.load %arg7[%c0_57, %c0_58] : memref<32x6xf32, #tpu.memory_space<vmem>>, vector<32x6xf32>
    %cst_59 = arith.constant dense<0.000000e+00> : vector<8x6xf32>
    %157 = tpu.matmul %155, %156, %cst_59 {dimension_numbers = #tpu.dot_dimension_numbers<[1], [0], [0], [1], [0, 0, 1, 1], [], []>} : vector<8x32xf32>, vector<32x6xf32>, vector<8x6xf32> -> vector<8x6xf32>
    %158 = vector.broadcast %17 : vector<1x6xf32> to vector<8x6xf32>
    %159 = arith.addf %157, %158 : vector<8x6xf32>
    %cst_60 = arith.constant 0.00999999977 : f32
    %160 = vector.broadcast %cst_60 : f32 to vector<8x6xf32>
    %161 = arith.mulf %160, %159 : vector<8x6xf32>
    %162 = arith.index_cast %c1_i32_42 : i32 to index
    %c0_61 = arith.constant 0 : index
    %c0_62 = arith.constant 0 : index
    %163 = vector.load %arg9[%162, %c0_61, %c0_62] : memref<8x8x6xf32, #tpu.memory_space<vmem>>, vector<1x8x6xf32>
    %164 = vector.shape_cast %163 : vector<1x8x6xf32> to vector<8x6xf32>
    %165 = vector.shape_cast %161 : vector<8x6xf32> to vector<1x8x6xf32>
    tpu.vector_store %arg9[%162, %c0_61, %c0_62], %165 {strides = array<i32>} : memref<8x8x6xf32, #tpu.memory_space<vmem>>, vector<1x8x6xf32>,
    %c2_i32_63 = arith.constant 2 : i32
    %166 = arith.index_cast %c2_i32_63 : i32 to index
    %c0_64 = arith.constant 0 : index
    %c0_65 = arith.constant 0 : index
    %167 = vector.load %arg10[%166, %c0_64, %c0_65] : memref<8x8x128xf32, #tpu.memory_space<vmem>>, vector<1x8x128xf32>
    %168 = vector.shape_cast %167 : vector<1x8x128xf32> to vector<8x128xf32>
    %169 = arith.truncf %124 : vector<8x32xf32> to vector<8x32xbf16>
    %c0_66 = arith.constant 0 : index
    %c0_67 = arith.constant 0 : index
    %170 = vector.load %arg12[%c0_66, %c0_67] : memref<32x128xbf16, #tpu.memory_space<vmem>>, vector<32x128xbf16>
    %cst_68 = arith.constant dense<0.000000e+00> : vector<8x128xf32>
    %171 = tpu.matmul %169, %170, %cst_68 {dimension_numbers = #tpu.dot_dimension_numbers<[1], [0], [0], [1], [0, 0, 1, 1], [], []>} : vector<8x32xbf16>, vector<32x128xbf16>, vector<8x128xf32> -> vector<8x128xf32>
    %172 = arith.addf %168, %171 : vector<8x128xf32>
    %173 = vector.extract_strided_slice %172 {offsets = [0, 32], sizes = [8, 32], strides = [1, 1]} : vector<8x128xf32> to vector<8x32xf32>
    %174 = arith.negf %173 : vector<8x32xf32>
    %175 = math.exp %174 : vector<8x32xf32>
    %cst_69 = arith.constant 1.000000e+00 : f32
    %176 = vector.broadcast %cst_69 : f32 to vector<8x32xf32>
    %177 = arith.addf %176, %175 : vector<8x32xf32>
    %178 = arith.divf %176, %177 : vector<8x32xf32>
    %179 = arith.mulf %178, %116 : vector<8x32xf32>
    %180 = vector.extract_strided_slice %172 {offsets = [0, 0], sizes = [8, 32], strides = [1, 1]} : vector<8x128xf32> to vector<8x32xf32>
    %181 = arith.negf %180 : vector<8x32xf32>
    %182 = math.exp %181 : vector<8x32xf32>
    %cst_70 = arith.constant 1.000000e+00 : f32
    %183 = vector.broadcast %cst_70 : f32 to vector<8x32xf32>
    %184 = arith.addf %183, %182 : vector<8x32xf32>
    %185 = arith.divf %183, %184 : vector<8x32xf32>
    %186 = vector.extract_strided_slice %172 {offsets = [0, 64], sizes = [8, 32], strides = [1, 1]} : vector<8x128xf32> to vector<8x32xf32>
    %187 = math.tanh %186 : vector<8x32xf32>
    %188 = arith.mulf %185, %187 : vector<8x32xf32>
    %189 = arith.addf %179, %188 : vector<8x32xf32>
    %190 = vector.extract_strided_slice %172 {offsets = [0, 96], sizes = [8, 32], strides = [1, 1]} : vector<8x128xf32> to vector<8x32xf32>
    %191 = arith.negf %190 : vector<8x32xf32>
    %192 = math.exp %191 : vector<8x32xf32>
    %cst_71 = arith.constant 1.000000e+00 : f32
    %193 = vector.broadcast %cst_71 : f32 to vector<8x32xf32>
    %194 = arith.addf %193, %192 : vector<8x32xf32>
    %195 = arith.divf %193, %194 : vector<8x32xf32>
    %196 = math.tanh %189 : vector<8x32xf32>
    %197 = arith.mulf %195, %196 : vector<8x32xf32>
    %198 = tpu.concatenate %197, %155 in 1 : vector<8x32xf32>, vector<8x32xf32> -> vector<8x64xf32>
    %199 = arith.truncf %198 : vector<8x64xf32> to vector<8x64xbf16>
    %c0_72 = arith.constant 0 : index
    %c0_73 = arith.constant 0 : index
    %200 = vector.load %arg11[%c0_72, %c0_73] : memref<64x128xbf16, #tpu.memory_space<vmem>>, vector<64x128xbf16>
    %cst_74 = arith.constant dense<0.000000e+00> : vector<8x128xf32>
    %201 = tpu.matmul %199, %200, %cst_74 {dimension_numbers = #tpu.dot_dimension_numbers<[1], [0], [0], [1], [0, 0, 1, 1], [], []>} : vector<8x64xbf16>, vector<64x128xbf16>, vector<8x128xf32> -> vector<8x128xf32>
    %202 = vector.broadcast %16 : vector<1x128xf32> to vector<8x128xf32>
    %203 = arith.addf %201, %202 : vector<8x128xf32>
    %204 = vector.extract_strided_slice %203 {offsets = [0, 32], sizes = [8, 32], strides = [1, 1]} : vector<8x128xf32> to vector<8x32xf32>
    %205 = arith.negf %204 : vector<8x32xf32>
    %206 = math.exp %205 : vector<8x32xf32>
    %cst_75 = arith.constant 1.000000e+00 : f32
    %207 = vector.broadcast %cst_75 : f32 to vector<8x32xf32>
    %208 = arith.addf %207, %206 : vector<8x32xf32>
    %209 = arith.divf %207, %208 : vector<8x32xf32>
    %210 = arith.mulf %209, %147 : vector<8x32xf32>
    %211 = vector.extract_strided_slice %203 {offsets = [0, 0], sizes = [8, 32], strides = [1, 1]} : vector<8x128xf32> to vector<8x32xf32>
    %212 = arith.negf %211 : vector<8x32xf32>
    %213 = math.exp %212 : vector<8x32xf32>
    %cst_76 = arith.constant 1.000000e+00 : f32
    %214 = vector.broadcast %cst_76 : f32 to vector<8x32xf32>
    %215 = arith.addf %214, %213 : vector<8x32xf32>
    %216 = arith.divf %214, %215 : vector<8x32xf32>
    %217 = vector.extract_strided_slice %203 {offsets = [0, 64], sizes = [8, 32], strides = [1, 1]} : vector<8x128xf32> to vector<8x32xf32>
    %218 = math.tanh %217 : vector<8x32xf32>
    %219 = arith.mulf %216, %218 : vector<8x32xf32>
    %220 = arith.addf %210, %219 : vector<8x32xf32>
    %221 = vector.extract_strided_slice %203 {offsets = [0, 96], sizes = [8, 32], strides = [1, 1]} : vector<8x128xf32> to vector<8x32xf32>
    %222 = arith.negf %221 : vector<8x32xf32>
    %223 = math.exp %222 : vector<8x32xf32>
    %cst_77 = arith.constant 1.000000e+00 : f32
    %224 = vector.broadcast %cst_77 : f32 to vector<8x32xf32>
    %225 = arith.addf %224, %223 : vector<8x32xf32>
    %226 = arith.divf %224, %225 : vector<8x32xf32>
    %227 = math.tanh %220 : vector<8x32xf32>
    %228 = arith.mulf %226, %227 : vector<8x32xf32>
    %c0_78 = arith.constant 0 : index
    %c0_79 = arith.constant 0 : index
    %229 = vector.load %arg7[%c0_78, %c0_79] : memref<32x6xf32, #tpu.memory_space<vmem>>, vector<32x6xf32>
    %cst_80 = arith.constant dense<0.000000e+00> : vector<8x6xf32>
    %230 = tpu.matmul %228, %229, %cst_80 {dimension_numbers = #tpu.dot_dimension_numbers<[1], [0], [0], [1], [0, 0, 1, 1], [], []>} : vector<8x32xf32>, vector<32x6xf32>, vector<8x6xf32> -> vector<8x6xf32>
    %231 = vector.broadcast %17 : vector<1x6xf32> to vector<8x6xf32>
    %232 = arith.addf %230, %231 : vector<8x6xf32>
    %cst_81 = arith.constant 0.00999999977 : f32
    %233 = vector.broadcast %cst_81 : f32 to vector<8x6xf32>
    %234 = arith.mulf %233, %232 : vector<8x6xf32>
    %235 = arith.index_cast %c2_i32_63 : i32 to index
    %c0_82 = arith.constant 0 : index
    %c0_83 = arith.constant 0 : index
    %236 = vector.load %arg9[%235, %c0_82, %c0_83] : memref<8x8x6xf32, #tpu.memory_space<vmem>>, vector<1x8x6xf32>
    %237 = vector.shape_cast %236 : vector<1x8x6xf32> to vector<8x6xf32>
    %238 = vector.shape_cast %234 : vector<8x6xf32> to vector<1x8x6xf32>
    tpu.vector_store %arg9[%235, %c0_82, %c0_83], %238 {strides = array<i32>} : memref<8x8x6xf32, #tpu.memory_space<vmem>>, vector<1x8x6xf32>,
    %c3_i32 = arith.constant 3 : i32
    %239 = arith.index_cast %c3_i32 : i32 to index
    %c0_84 = arith.constant 0 : index
    %c0_85 = arith.constant 0 : index
    %240 = vector.load %arg10[%239, %c0_84, %c0_85] : memref<8x8x128xf32, #tpu.memory_space<vmem>>, vector<1x8x128xf32>
    %241 = vector.shape_cast %240 : vector<1x8x128xf32> to vector<8x128xf32>
    %242 = arith.truncf %197 : vector<8x32xf32> to vector<8x32xbf16>
    %c0_86 = arith.constant 0 : index
    %c0_87 = arith.constant 0 : index
    %243 = vector.load %arg12[%c0_86, %c0_87] : memref<32x128xbf16, #tpu.memory_space<vmem>>, vector<32x128xbf16>
    %cst_88 = arith.constant dense<0.000000e+00> : vector<8x128xf32>
    %244 = tpu.matmul %242, %243, %cst_88 {dimension_numbers = #tpu.dot_dimension_numbers<[1], [0], [0], [1], [0, 0, 1, 1], [], []>} : vector<8x32xbf16>, vector<32x128xbf16>, vector<8x128xf32> -> vector<8x128xf32>
    %245 = arith.addf %241, %244 : vector<8x128xf32>
    %246 = vector.extract_strided_slice %245 {offsets = [0, 32], sizes = [8, 32], strides = [1, 1]} : vector<8x128xf32> to vector<8x32xf32>
    %247 = arith.negf %246 : vector<8x32xf32>
    %248 = math.exp %247 : vector<8x32xf32>
    %cst_89 = arith.constant 1.000000e+00 : f32
    %249 = vector.broadcast %cst_89 : f32 to vector<8x32xf32>
    %250 = arith.addf %249, %248 : vector<8x32xf32>
    %251 = arith.divf %249, %250 : vector<8x32xf32>
    %252 = arith.mulf %251, %189 : vector<8x32xf32>
    %253 = vector.extract_strided_slice %245 {offsets = [0, 0], sizes = [8, 32], strides = [1, 1]} : vector<8x128xf32> to vector<8x32xf32>
    %254 = arith.negf %253 : vector<8x32xf32>
    %255 = math.exp %254 : vector<8x32xf32>
    %cst_90 = arith.constant 1.000000e+00 : f32
    %256 = vector.broadcast %cst_90 : f32 to vector<8x32xf32>
    %257 = arith.addf %256, %255 : vector<8x32xf32>
    %258 = arith.divf %256, %257 : vector<8x32xf32>
    %259 = vector.extract_strided_slice %245 {offsets = [0, 64], sizes = [8, 32], strides = [1, 1]} : vector<8x128xf32> to vector<8x32xf32>
    %260 = math.tanh %259 : vector<8x32xf32>
    %261 = arith.mulf %258, %260 : vector<8x32xf32>
    %262 = arith.addf %252, %261 : vector<8x32xf32>
    %263 = vector.extract_strided_slice %245 {offsets = [0, 96], sizes = [8, 32], strides = [1, 1]} : vector<8x128xf32> to vector<8x32xf32>
    %264 = arith.negf %263 : vector<8x32xf32>
    %265 = math.exp %264 : vector<8x32xf32>
    %cst_91 = arith.constant 1.000000e+00 : f32
    %266 = vector.broadcast %cst_91 : f32 to vector<8x32xf32>
    %267 = arith.addf %266, %265 : vector<8x32xf32>
    %268 = arith.divf %266, %267 : vector<8x32xf32>
    %269 = math.tanh %262 : vector<8x32xf32>
    %270 = arith.mulf %268, %269 : vector<8x32xf32>
    %271 = tpu.concatenate %270, %228 in 1 : vector<8x32xf32>, vector<8x32xf32> -> vector<8x64xf32>
    %272 = arith.truncf %271 : vector<8x64xf32> to vector<8x64xbf16>
    %c0_92 = arith.constant 0 : index
    %c0_93 = arith.constant 0 : index
    %273 = vector.load %arg11[%c0_92, %c0_93] : memref<64x128xbf16, #tpu.memory_space<vmem>>, vector<64x128xbf16>
    %cst_94 = arith.constant dense<0.000000e+00> : vector<8x128xf32>
    %274 = tpu.matmul %272, %273, %cst_94 {dimension_numbers = #tpu.dot_dimension_numbers<[1], [0], [0], [1], [0, 0, 1, 1], [], []>} : vector<8x64xbf16>, vector<64x128xbf16>, vector<8x128xf32> -> vector<8x128xf32>
    %275 = vector.broadcast %16 : vector<1x128xf32> to vector<8x128xf32>
    %276 = arith.addf %274, %275 : vector<8x128xf32>
    %277 = vector.extract_strided_slice %276 {offsets = [0, 32], sizes = [8, 32], strides = [1, 1]} : vector<8x128xf32> to vector<8x32xf32>
    %278 = arith.negf %277 : vector<8x32xf32>
    %279 = math.exp %278 : vector<8x32xf32>
    %cst_95 = arith.constant 1.000000e+00 : f32
    %280 = vector.broadcast %cst_95 : f32 to vector<8x32xf32>
    %281 = arith.addf %280, %279 : vector<8x32xf32>
    %282 = arith.divf %280, %281 : vector<8x32xf32>
    %283 = arith.mulf %282, %220 : vector<8x32xf32>
    %284 = vector.extract_strided_slice %276 {offsets = [0, 0], sizes = [8, 32], strides = [1, 1]} : vector<8x128xf32> to vector<8x32xf32>
    %285 = arith.negf %284 : vector<8x32xf32>
    %286 = math.exp %285 : vector<8x32xf32>
    %cst_96 = arith.constant 1.000000e+00 : f32
    %287 = vector.broadcast %cst_96 : f32 to vector<8x32xf32>
    %288 = arith.addf %287, %286 : vector<8x32xf32>
    %289 = arith.divf %287, %288 : vector<8x32xf32>
    %290 = vector.extract_strided_slice %276 {offsets = [0, 64], sizes = [8, 32], strides = [1, 1]} : vector<8x128xf32> to vector<8x32xf32>
    %291 = math.tanh %290 : vector<8x32xf32>
    %292 = arith.mulf %289, %291 : vector<8x32xf32>
    %293 = arith.addf %283, %292 : vector<8x32xf32>
    %294 = vector.extract_strided_slice %276 {offsets = [0, 96], sizes = [8, 32], strides = [1, 1]} : vector<8x128xf32> to vector<8x32xf32>
    %295 = arith.negf %294 : vector<8x32xf32>
    %296 = math.exp %295 : vector<8x32xf32>
    %cst_97 = arith.constant 1.000000e+00 : f32
    %297 = vector.broadcast %cst_97 : f32 to vector<8x32xf32>
    %298 = arith.addf %297, %296 : vector<8x32xf32>
    %299 = arith.divf %297, %298 : vector<8x32xf32>
    %300 = math.tanh %293 : vector<8x32xf32>
    %301 = arith.mulf %299, %300 : vector<8x32xf32>
    %c0_98 = arith.constant 0 : index
    %c0_99 = arith.constant 0 : index
    %302 = vector.load %arg7[%c0_98, %c0_99] : memref<32x6xf32, #tpu.memory_space<vmem>>, vector<32x6xf32>
    %cst_100 = arith.constant dense<0.000000e+00> : vector<8x6xf32>
    %303 = tpu.matmul %301, %302, %cst_100 {dimension_numbers = #tpu.dot_dimension_numbers<[1], [0], [0], [1], [0, 0, 1, 1], [], []>} : vector<8x32xf32>, vector<32x6xf32>, vector<8x6xf32> -> vector<8x6xf32>
    %304 = vector.broadcast %17 : vector<1x6xf32> to vector<8x6xf32>
    %305 = arith.addf %303, %304 : vector<8x6xf32>
    %cst_101 = arith.constant 0.00999999977 : f32
    %306 = vector.broadcast %cst_101 : f32 to vector<8x6xf32>
    %307 = arith.mulf %306, %305 : vector<8x6xf32>
    %308 = arith.index_cast %c3_i32 : i32 to index
    %c0_102 = arith.constant 0 : index
    %c0_103 = arith.constant 0 : index
    %309 = vector.load %arg9[%308, %c0_102, %c0_103] : memref<8x8x6xf32, #tpu.memory_space<vmem>>, vector<1x8x6xf32>
    %310 = vector.shape_cast %309 : vector<1x8x6xf32> to vector<8x6xf32>
    %311 = vector.shape_cast %307 : vector<8x6xf32> to vector<1x8x6xf32>
    tpu.vector_store %arg9[%308, %c0_102, %c0_103], %311 {strides = array<i32>} : memref<8x8x6xf32, #tpu.memory_space<vmem>>, vector<1x8x6xf32>,
    %c4_i32 = arith.constant 4 : i32
    %312 = arith.index_cast %c4_i32 : i32 to index
    %c0_104 = arith.constant 0 : index
    %c0_105 = arith.constant 0 : index
    %313 = vector.load %arg10[%312, %c0_104, %c0_105] : memref<8x8x128xf32, #tpu.memory_space<vmem>>, vector<1x8x128xf32>
    %314 = vector.shape_cast %313 : vector<1x8x128xf32> to vector<8x128xf32>
    %315 = arith.truncf %270 : vector<8x32xf32> to vector<8x32xbf16>
    %c0_106 = arith.constant 0 : index
    %c0_107 = arith.constant 0 : index
    %316 = vector.load %arg12[%c0_106, %c0_107] : memref<32x128xbf16, #tpu.memory_space<vmem>>, vector<32x128xbf16>
    %cst_108 = arith.constant dense<0.000000e+00> : vector<8x128xf32>
    %317 = tpu.matmul %315, %316, %cst_108 {dimension_numbers = #tpu.dot_dimension_numbers<[1], [0], [0], [1], [0, 0, 1, 1], [], []>} : vector<8x32xbf16>, vector<32x128xbf16>, vector<8x128xf32> -> vector<8x128xf32>
    %318 = arith.addf %314, %317 : vector<8x128xf32>
    %319 = vector.extract_strided_slice %318 {offsets = [0, 32], sizes = [8, 32], strides = [1, 1]} : vector<8x128xf32> to vector<8x32xf32>
    %320 = arith.negf %319 : vector<8x32xf32>
    %321 = math.exp %320 : vector<8x32xf32>
    %cst_109 = arith.constant 1.000000e+00 : f32
    %322 = vector.broadcast %cst_109 : f32 to vector<8x32xf32>
    %323 = arith.addf %322, %321 : vector<8x32xf32>
    %324 = arith.divf %322, %323 : vector<8x32xf32>
    %325 = arith.mulf %324, %262 : vector<8x32xf32>
    %326 = vector.extract_strided_slice %318 {offsets = [0, 0], sizes = [8, 32], strides = [1, 1]} : vector<8x128xf32> to vector<8x32xf32>
    %327 = arith.negf %326 : vector<8x32xf32>
    %328 = math.exp %327 : vector<8x32xf32>
    %cst_110 = arith.constant 1.000000e+00 : f32
    %329 = vector.broadcast %cst_110 : f32 to vector<8x32xf32>
    %330 = arith.addf %329, %328 : vector<8x32xf32>
    %331 = arith.divf %329, %330 : vector<8x32xf32>
    %332 = vector.extract_strided_slice %318 {offsets = [0, 64], sizes = [8, 32], strides = [1, 1]} : vector<8x128xf32> to vector<8x32xf32>
    %333 = math.tanh %332 : vector<8x32xf32>
    %334 = arith.mulf %331, %333 : vector<8x32xf32>
    %335 = arith.addf %325, %334 : vector<8x32xf32>
    %336 = vector.extract_strided_slice %318 {offsets = [0, 96], sizes = [8, 32], strides = [1, 1]} : vector<8x128xf32> to vector<8x32xf32>
    %337 = arith.negf %336 : vector<8x32xf32>
    %338 = math.exp %337 : vector<8x32xf32>
    %cst_111 = arith.constant 1.000000e+00 : f32
    %339 = vector.broadcast %cst_111 : f32 to vector<8x32xf32>
    %340 = arith.addf %339, %338 : vector<8x32xf32>
    %341 = arith.divf %339, %340 : vector<8x32xf32>
    %342 = math.tanh %335 : vector<8x32xf32>
    %343 = arith.mulf %341, %342 : vector<8x32xf32>
    %344 = tpu.concatenate %343, %301 in 1 : vector<8x32xf32>, vector<8x32xf32> -> vector<8x64xf32>
    %345 = arith.truncf %344 : vector<8x64xf32> to vector<8x64xbf16>
    %c0_112 = arith.constant 0 : index
    %c0_113 = arith.constant 0 : index
    %346 = vector.load %arg11[%c0_112, %c0_113] : memref<64x128xbf16, #tpu.memory_space<vmem>>, vector<64x128xbf16>
    %cst_114 = arith.constant dense<0.000000e+00> : vector<8x128xf32>
    %347 = tpu.matmul %345, %346, %cst_114 {dimension_numbers = #tpu.dot_dimension_numbers<[1], [0], [0], [1], [0, 0, 1, 1], [], []>} : vector<8x64xbf16>, vector<64x128xbf16>, vector<8x128xf32> -> vector<8x128xf32>
    %348 = vector.broadcast %16 : vector<1x128xf32> to vector<8x128xf32>
    %349 = arith.addf %347, %348 : vector<8x128xf32>
    %350 = vector.extract_strided_slice %349 {offsets = [0, 32], sizes = [8, 32], strides = [1, 1]} : vector<8x128xf32> to vector<8x32xf32>
    %351 = arith.negf %350 : vector<8x32xf32>
    %352 = math.exp %351 : vector<8x32xf32>
    %cst_115 = arith.constant 1.000000e+00 : f32
    %353 = vector.broadcast %cst_115 : f32 to vector<8x32xf32>
    %354 = arith.addf %353, %352 : vector<8x32xf32>
    %355 = arith.divf %353, %354 : vector<8x32xf32>
    %356 = arith.mulf %355, %293 : vector<8x32xf32>
    %357 = vector.extract_strided_slice %349 {offsets = [0, 0], sizes = [8, 32], strides = [1, 1]} : vector<8x128xf32> to vector<8x32xf32>
    %358 = arith.negf %357 : vector<8x32xf32>
    %359 = math.exp %358 : vector<8x32xf32>
    %cst_116 = arith.constant 1.000000e+00 : f32
    %360 = vector.broadcast %cst_116 : f32 to vector<8x32xf32>
    %361 = arith.addf %360, %359 : vector<8x32xf32>
    %362 = arith.divf %360, %361 : vector<8x32xf32>
    %363 = vector.extract_strided_slice %349 {offsets = [0, 64], sizes = [8, 32], strides = [1, 1]} : vector<8x128xf32> to vector<8x32xf32>
    %364 = math.tanh %363 : vector<8x32xf32>
    %365 = arith.mulf %362, %364 : vector<8x32xf32>
    %366 = arith.addf %356, %365 : vector<8x32xf32>
    %367 = vector.extract_strided_slice %349 {offsets = [0, 96], sizes = [8, 32], strides = [1, 1]} : vector<8x128xf32> to vector<8x32xf32>
    %368 = arith.negf %367 : vector<8x32xf32>
    %369 = math.exp %368 : vector<8x32xf32>
    %cst_117 = arith.constant 1.000000e+00 : f32
    %370 = vector.broadcast %cst_117 : f32 to vector<8x32xf32>
    %371 = arith.addf %370, %369 : vector<8x32xf32>
    %372 = arith.divf %370, %371 : vector<8x32xf32>
    %373 = math.tanh %366 : vector<8x32xf32>
    %374 = arith.mulf %372, %373 : vector<8x32xf32>
    %c0_118 = arith.constant 0 : index
    %c0_119 = arith.constant 0 : index
    %375 = vector.load %arg7[%c0_118, %c0_119] : memref<32x6xf32, #tpu.memory_space<vmem>>, vector<32x6xf32>
    %cst_120 = arith.constant dense<0.000000e+00> : vector<8x6xf32>
    %376 = tpu.matmul %374, %375, %cst_120 {dimension_numbers = #tpu.dot_dimension_numbers<[1], [0], [0], [1], [0, 0, 1, 1], [], []>} : vector<8x32xf32>, vector<32x6xf32>, vector<8x6xf32> -> vector<8x6xf32>
    %377 = vector.broadcast %17 : vector<1x6xf32> to vector<8x6xf32>
    %378 = arith.addf %376, %377 : vector<8x6xf32>
    %cst_121 = arith.constant 0.00999999977 : f32
    %379 = vector.broadcast %cst_121 : f32 to vector<8x6xf32>
    %380 = arith.mulf %379, %378 : vector<8x6xf32>
    %381 = arith.index_cast %c4_i32 : i32 to index
    %c0_122 = arith.constant 0 : index
    %c0_123 = arith.constant 0 : index
    %382 = vector.load %arg9[%381, %c0_122, %c0_123] : memref<8x8x6xf32, #tpu.memory_space<vmem>>, vector<1x8x6xf32>
    %383 = vector.shape_cast %382 : vector<1x8x6xf32> to vector<8x6xf32>
    %384 = vector.shape_cast %380 : vector<8x6xf32> to vector<1x8x6xf32>
    tpu.vector_store %arg9[%381, %c0_122, %c0_123], %384 {strides = array<i32>} : memref<8x8x6xf32, #tpu.memory_space<vmem>>, vector<1x8x6xf32>,
    %c5_i32 = arith.constant 5 : i32
    %385 = arith.index_cast %c5_i32 : i32 to index
    %c0_124 = arith.constant 0 : index
    %c0_125 = arith.constant 0 : index
    %386 = vector.load %arg10[%385, %c0_124, %c0_125] : memref<8x8x128xf32, #tpu.memory_space<vmem>>, vector<1x8x128xf32>
    %387 = vector.shape_cast %386 : vector<1x8x128xf32> to vector<8x128xf32>
    %388 = arith.truncf %343 : vector<8x32xf32> to vector<8x32xbf16>
    %c0_126 = arith.constant 0 : index
    %c0_127 = arith.constant 0 : index
    %389 = vector.load %arg12[%c0_126, %c0_127] : memref<32x128xbf16, #tpu.memory_space<vmem>>, vector<32x128xbf16>
    %cst_128 = arith.constant dense<0.000000e+00> : vector<8x128xf32>
    %390 = tpu.matmul %388, %389, %cst_128 {dimension_numbers = #tpu.dot_dimension_numbers<[1], [0], [0], [1], [0, 0, 1, 1], [], []>} : vector<8x32xbf16>, vector<32x128xbf16>, vector<8x128xf32> -> vector<8x128xf32>
    %391 = arith.addf %387, %390 : vector<8x128xf32>
    %392 = vector.extract_strided_slice %391 {offsets = [0, 32], sizes = [8, 32], strides = [1, 1]} : vector<8x128xf32> to vector<8x32xf32>
    %393 = arith.negf %392 : vector<8x32xf32>
    %394 = math.exp %393 : vector<8x32xf32>
    %cst_129 = arith.constant 1.000000e+00 : f32
    %395 = vector.broadcast %cst_129 : f32 to vector<8x32xf32>
    %396 = arith.addf %395, %394 : vector<8x32xf32>
    %397 = arith.divf %395, %396 : vector<8x32xf32>
    %398 = arith.mulf %397, %335 : vector<8x32xf32>
    %399 = vector.extract_strided_slice %391 {offsets = [0, 0], sizes = [8, 32], strides = [1, 1]} : vector<8x128xf32> to vector<8x32xf32>
    %400 = arith.negf %399 : vector<8x32xf32>
    %401 = math.exp %400 : vector<8x32xf32>
    %cst_130 = arith.constant 1.000000e+00 : f32
    %402 = vector.broadcast %cst_130 : f32 to vector<8x32xf32>
    %403 = arith.addf %402, %401 : vector<8x32xf32>
    %404 = arith.divf %402, %403 : vector<8x32xf32>
    %405 = vector.extract_strided_slice %391 {offsets = [0, 64], sizes = [8, 32], strides = [1, 1]} : vector<8x128xf32> to vector<8x32xf32>
    %406 = math.tanh %405 : vector<8x32xf32>
    %407 = arith.mulf %404, %406 : vector<8x32xf32>
    %408 = arith.addf %398, %407 : vector<8x32xf32>
    %409 = vector.extract_strided_slice %391 {offsets = [0, 96], sizes = [8, 32], strides = [1, 1]} : vector<8x128xf32> to vector<8x32xf32>
    %410 = arith.negf %409 : vector<8x32xf32>
    %411 = math.exp %410 : vector<8x32xf32>
    %cst_131 = arith.constant 1.000000e+00 : f32
    %412 = vector.broadcast %cst_131 : f32 to vector<8x32xf32>
    %413 = arith.addf %412, %411 : vector<8x32xf32>
    %414 = arith.divf %412, %413 : vector<8x32xf32>
    %415 = math.tanh %408 : vector<8x32xf32>
    %416 = arith.mulf %414, %415 : vector<8x32xf32>
    %417 = tpu.concatenate %416, %374 in 1 : vector<8x32xf32>, vector<8x32xf32> -> vector<8x64xf32>
    %418 = arith.truncf %417 : vector<8x64xf32> to vector<8x64xbf16>
    %c0_132 = arith.constant 0 : index
    %c0_133 = arith.constant 0 : index
    %419 = vector.load %arg11[%c0_132, %c0_133] : memref<64x128xbf16, #tpu.memory_space<vmem>>, vector<64x128xbf16>
    %cst_134 = arith.constant dense<0.000000e+00> : vector<8x128xf32>
    %420 = tpu.matmul %418, %419, %cst_134 {dimension_numbers = #tpu.dot_dimension_numbers<[1], [0], [0], [1], [0, 0, 1, 1], [], []>} : vector<8x64xbf16>, vector<64x128xbf16>, vector<8x128xf32> -> vector<8x128xf32>
    %421 = vector.broadcast %16 : vector<1x128xf32> to vector<8x128xf32>
    %422 = arith.addf %420, %421 : vector<8x128xf32>
    %423 = vector.extract_strided_slice %422 {offsets = [0, 32], sizes = [8, 32], strides = [1, 1]} : vector<8x128xf32> to vector<8x32xf32>
    %424 = arith.negf %423 : vector<8x32xf32>
    %425 = math.exp %424 : vector<8x32xf32>
    %cst_135 = arith.constant 1.000000e+00 : f32
    %426 = vector.broadcast %cst_135 : f32 to vector<8x32xf32>
    %427 = arith.addf %426, %425 : vector<8x32xf32>
    %428 = arith.divf %426, %427 : vector<8x32xf32>
    %429 = arith.mulf %428, %366 : vector<8x32xf32>
    %430 = vector.extract_strided_slice %422 {offsets = [0, 0], sizes = [8, 32], strides = [1, 1]} : vector<8x128xf32> to vector<8x32xf32>
    %431 = arith.negf %430 : vector<8x32xf32>
    %432 = math.exp %431 : vector<8x32xf32>
    %cst_136 = arith.constant 1.000000e+00 : f32
    %433 = vector.broadcast %cst_136 : f32 to vector<8x32xf32>
    %434 = arith.addf %433, %432 : vector<8x32xf32>
    %435 = arith.divf %433, %434 : vector<8x32xf32>
    %436 = vector.extract_strided_slice %422 {offsets = [0, 64], sizes = [8, 32], strides = [1, 1]} : vector<8x128xf32> to vector<8x32xf32>
    %437 = math.tanh %436 : vector<8x32xf32>
    %438 = arith.mulf %435, %437 : vector<8x32xf32>
    %439 = arith.addf %429, %438 : vector<8x32xf32>
    %440 = vector.extract_strided_slice %422 {offsets = [0, 96], sizes = [8, 32], strides = [1, 1]} : vector<8x128xf32> to vector<8x32xf32>
    %441 = arith.negf %440 : vector<8x32xf32>
    %442 = math.exp %441 : vector<8x32xf32>
    %cst_137 = arith.constant 1.000000e+00 : f32
    %443 = vector.broadcast %cst_137 : f32 to vector<8x32xf32>
    %444 = arith.addf %443, %442 : vector<8x32xf32>
    %445 = arith.divf %443, %444 : vector<8x32xf32>
    %446 = math.tanh %439 : vector<8x32xf32>
    %447 = arith.mulf %445, %446 : vector<8x32xf32>
    %c0_138 = arith.constant 0 : index
    %c0_139 = arith.constant 0 : index
    %448 = vector.load %arg7[%c0_138, %c0_139] : memref<32x6xf32, #tpu.memory_space<vmem>>, vector<32x6xf32>
    %cst_140 = arith.constant dense<0.000000e+00> : vector<8x6xf32>
    %449 = tpu.matmul %447, %448, %cst_140 {dimension_numbers = #tpu.dot_dimension_numbers<[1], [0], [0], [1], [0, 0, 1, 1], [], []>} : vector<8x32xf32>, vector<32x6xf32>, vector<8x6xf32> -> vector<8x6xf32>
    %450 = vector.broadcast %17 : vector<1x6xf32> to vector<8x6xf32>
    %451 = arith.addf %449, %450 : vector<8x6xf32>
    %cst_141 = arith.constant 0.00999999977 : f32
    %452 = vector.broadcast %cst_141 : f32 to vector<8x6xf32>
    %453 = arith.mulf %452, %451 : vector<8x6xf32>
    %454 = arith.index_cast %c5_i32 : i32 to index
    %c0_142 = arith.constant 0 : index
    %c0_143 = arith.constant 0 : index
    %455 = vector.load %arg9[%454, %c0_142, %c0_143] : memref<8x8x6xf32, #tpu.memory_space<vmem>>, vector<1x8x6xf32>
    %456 = vector.shape_cast %455 : vector<1x8x6xf32> to vector<8x6xf32>
    %457 = vector.shape_cast %453 : vector<8x6xf32> to vector<1x8x6xf32>
    tpu.vector_store %arg9[%454, %c0_142, %c0_143], %457 {strides = array<i32>} : memref<8x8x6xf32, #tpu.memory_space<vmem>>, vector<1x8x6xf32>,
    %c6_i32 = arith.constant 6 : i32
    %458 = arith.index_cast %c6_i32 : i32 to index
    %c0_144 = arith.constant 0 : index
    %c0_145 = arith.constant 0 : index
    %459 = vector.load %arg10[%458, %c0_144, %c0_145] : memref<8x8x128xf32, #tpu.memory_space<vmem>>, vector<1x8x128xf32>
    %460 = vector.shape_cast %459 : vector<1x8x128xf32> to vector<8x128xf32>
    %461 = arith.truncf %416 : vector<8x32xf32> to vector<8x32xbf16>
    %c0_146 = arith.constant 0 : index
    %c0_147 = arith.constant 0 : index
    %462 = vector.load %arg12[%c0_146, %c0_147] : memref<32x128xbf16, #tpu.memory_space<vmem>>, vector<32x128xbf16>
    %cst_148 = arith.constant dense<0.000000e+00> : vector<8x128xf32>
    %463 = tpu.matmul %461, %462, %cst_148 {dimension_numbers = #tpu.dot_dimension_numbers<[1], [0], [0], [1], [0, 0, 1, 1], [], []>} : vector<8x32xbf16>, vector<32x128xbf16>, vector<8x128xf32> -> vector<8x128xf32>
    %464 = arith.addf %460, %463 : vector<8x128xf32>
    %465 = vector.extract_strided_slice %464 {offsets = [0, 32], sizes = [8, 32], strides = [1, 1]} : vector<8x128xf32> to vector<8x32xf32>
    %466 = arith.negf %465 : vector<8x32xf32>
    %467 = math.exp %466 : vector<8x32xf32>
    %cst_149 = arith.constant 1.000000e+00 : f32
    %468 = vector.broadcast %cst_149 : f32 to vector<8x32xf32>
    %469 = arith.addf %468, %467 : vector<8x32xf32>
    %470 = arith.divf %468, %469 : vector<8x32xf32>
    %471 = arith.mulf %470, %408 : vector<8x32xf32>
    %472 = vector.extract_strided_slice %464 {offsets = [0, 0], sizes = [8, 32], strides = [1, 1]} : vector<8x128xf32> to vector<8x32xf32>
    %473 = arith.negf %472 : vector<8x32xf32>
    %474 = math.exp %473 : vector<8x32xf32>
    %cst_150 = arith.constant 1.000000e+00 : f32
    %475 = vector.broadcast %cst_150 : f32 to vector<8x32xf32>
    %476 = arith.addf %475, %474 : vector<8x32xf32>
    %477 = arith.divf %475, %476 : vector<8x32xf32>
    %478 = vector.extract_strided_slice %464 {offsets = [0, 64], sizes = [8, 32], strides = [1, 1]} : vector<8x128xf32> to vector<8x32xf32>
    %479 = math.tanh %478 : vector<8x32xf32>
    %480 = arith.mulf %477, %479 : vector<8x32xf32>
    %481 = arith.addf %471, %480 : vector<8x32xf32>
    %482 = vector.extract_strided_slice %464 {offsets = [0, 96], sizes = [8, 32], strides = [1, 1]} : vector<8x128xf32> to vector<8x32xf32>
    %483 = arith.negf %482 : vector<8x32xf32>
    %484 = math.exp %483 : vector<8x32xf32>
    %cst_151 = arith.constant 1.000000e+00 : f32
    %485 = vector.broadcast %cst_151 : f32 to vector<8x32xf32>
    %486 = arith.addf %485, %484 : vector<8x32xf32>
    %487 = arith.divf %485, %486 : vector<8x32xf32>
    %488 = math.tanh %481 : vector<8x32xf32>
    %489 = arith.mulf %487, %488 : vector<8x32xf32>
    %490 = tpu.concatenate %489, %447 in 1 : vector<8x32xf32>, vector<8x32xf32> -> vector<8x64xf32>
    %491 = arith.truncf %490 : vector<8x64xf32> to vector<8x64xbf16>
    %c0_152 = arith.constant 0 : index
    %c0_153 = arith.constant 0 : index
    %492 = vector.load %arg11[%c0_152, %c0_153] : memref<64x128xbf16, #tpu.memory_space<vmem>>, vector<64x128xbf16>
    %cst_154 = arith.constant dense<0.000000e+00> : vector<8x128xf32>
    %493 = tpu.matmul %491, %492, %cst_154 {dimension_numbers = #tpu.dot_dimension_numbers<[1], [0], [0], [1], [0, 0, 1, 1], [], []>} : vector<8x64xbf16>, vector<64x128xbf16>, vector<8x128xf32> -> vector<8x128xf32>
    %494 = vector.broadcast %16 : vector<1x128xf32> to vector<8x128xf32>
    %495 = arith.addf %493, %494 : vector<8x128xf32>
    %496 = vector.extract_strided_slice %495 {offsets = [0, 32], sizes = [8, 32], strides = [1, 1]} : vector<8x128xf32> to vector<8x32xf32>
    %497 = arith.negf %496 : vector<8x32xf32>
    %498 = math.exp %497 : vector<8x32xf32>
    %cst_155 = arith.constant 1.000000e+00 : f32
    %499 = vector.broadcast %cst_155 : f32 to vector<8x32xf32>
    %500 = arith.addf %499, %498 : vector<8x32xf32>
    %501 = arith.divf %499, %500 : vector<8x32xf32>
    %502 = arith.mulf %501, %439 : vector<8x32xf32>
    %503 = vector.extract_strided_slice %495 {offsets = [0, 0], sizes = [8, 32], strides = [1, 1]} : vector<8x128xf32> to vector<8x32xf32>
    %504 = arith.negf %503 : vector<8x32xf32>
    %505 = math.exp %504 : vector<8x32xf32>
    %cst_156 = arith.constant 1.000000e+00 : f32
    %506 = vector.broadcast %cst_156 : f32 to vector<8x32xf32>
    %507 = arith.addf %506, %505 : vector<8x32xf32>
    %508 = arith.divf %506, %507 : vector<8x32xf32>
    %509 = vector.extract_strided_slice %495 {offsets = [0, 64], sizes = [8, 32], strides = [1, 1]} : vector<8x128xf32> to vector<8x32xf32>
    %510 = math.tanh %509 : vector<8x32xf32>
    %511 = arith.mulf %508, %510 : vector<8x32xf32>
    %512 = arith.addf %502, %511 : vector<8x32xf32>
    %513 = vector.extract_strided_slice %495 {offsets = [0, 96], sizes = [8, 32], strides = [1, 1]} : vector<8x128xf32> to vector<8x32xf32>
    %514 = arith.negf %513 : vector<8x32xf32>
    %515 = math.exp %514 : vector<8x32xf32>
    %cst_157 = arith.constant 1.000000e+00 : f32
    %516 = vector.broadcast %cst_157 : f32 to vector<8x32xf32>
    %517 = arith.addf %516, %515 : vector<8x32xf32>
    %518 = arith.divf %516, %517 : vector<8x32xf32>
    %519 = math.tanh %512 : vector<8x32xf32>
    %520 = arith.mulf %518, %519 : vector<8x32xf32>
    %c0_158 = arith.constant 0 : index
    %c0_159 = arith.constant 0 : index
    %521 = vector.load %arg7[%c0_158, %c0_159] : memref<32x6xf32, #tpu.memory_space<vmem>>, vector<32x6xf32>
    %cst_160 = arith.constant dense<0.000000e+00> : vector<8x6xf32>
    %522 = tpu.matmul %520, %521, %cst_160 {dimension_numbers = #tpu.dot_dimension_numbers<[1], [0], [0], [1], [0, 0, 1, 1], [], []>} : vector<8x32xf32>, vector<32x6xf32>, vector<8x6xf32> -> vector<8x6xf32>
    %523 = vector.broadcast %17 : vector<1x6xf32> to vector<8x6xf32>
    %524 = arith.addf %522, %523 : vector<8x6xf32>
    %cst_161 = arith.constant 0.00999999977 : f32
    %525 = vector.broadcast %cst_161 : f32 to vector<8x6xf32>
    %526 = arith.mulf %525, %524 : vector<8x6xf32>
    %527 = arith.index_cast %c6_i32 : i32 to index
    %c0_162 = arith.constant 0 : index
    %c0_163 = arith.constant 0 : index
    %528 = vector.load %arg9[%527, %c0_162, %c0_163] : memref<8x8x6xf32, #tpu.memory_space<vmem>>, vector<1x8x6xf32>
    %529 = vector.shape_cast %528 : vector<1x8x6xf32> to vector<8x6xf32>
    %530 = vector.shape_cast %526 : vector<8x6xf32> to vector<1x8x6xf32>
    tpu.vector_store %arg9[%527, %c0_162, %c0_163], %530 {strides = array<i32>} : memref<8x8x6xf32, #tpu.memory_space<vmem>>, vector<1x8x6xf32>,
    %c7_i32 = arith.constant 7 : i32
    %531 = arith.index_cast %c7_i32 : i32 to index
    %c0_164 = arith.constant 0 : index
    %c0_165 = arith.constant 0 : index
    %532 = vector.load %arg10[%531, %c0_164, %c0_165] : memref<8x8x128xf32, #tpu.memory_space<vmem>>, vector<1x8x128xf32>
    %533 = vector.shape_cast %532 : vector<1x8x128xf32> to vector<8x128xf32>
    %534 = arith.truncf %489 : vector<8x32xf32> to vector<8x32xbf16>
    %c0_166 = arith.constant 0 : index
    %c0_167 = arith.constant 0 : index
    %535 = vector.load %arg12[%c0_166, %c0_167] : memref<32x128xbf16, #tpu.memory_space<vmem>>, vector<32x128xbf16>
    %cst_168 = arith.constant dense<0.000000e+00> : vector<8x128xf32>
    %536 = tpu.matmul %534, %535, %cst_168 {dimension_numbers = #tpu.dot_dimension_numbers<[1], [0], [0], [1], [0, 0, 1, 1], [], []>} : vector<8x32xbf16>, vector<32x128xbf16>, vector<8x128xf32> -> vector<8x128xf32>
    %537 = arith.addf %533, %536 : vector<8x128xf32>
    %538 = vector.extract_strided_slice %537 {offsets = [0, 32], sizes = [8, 32], strides = [1, 1]} : vector<8x128xf32> to vector<8x32xf32>
    %539 = arith.negf %538 : vector<8x32xf32>
    %540 = math.exp %539 : vector<8x32xf32>
    %cst_169 = arith.constant 1.000000e+00 : f32
    %541 = vector.broadcast %cst_169 : f32 to vector<8x32xf32>
    %542 = arith.addf %541, %540 : vector<8x32xf32>
    %543 = arith.divf %541, %542 : vector<8x32xf32>
    %544 = arith.mulf %543, %481 : vector<8x32xf32>
    %545 = vector.extract_strided_slice %537 {offsets = [0, 0], sizes = [8, 32], strides = [1, 1]} : vector<8x128xf32> to vector<8x32xf32>
    %546 = arith.negf %545 : vector<8x32xf32>
    %547 = math.exp %546 : vector<8x32xf32>
    %cst_170 = arith.constant 1.000000e+00 : f32
    %548 = vector.broadcast %cst_170 : f32 to vector<8x32xf32>
    %549 = arith.addf %548, %547 : vector<8x32xf32>
    %550 = arith.divf %548, %549 : vector<8x32xf32>
    %551 = vector.extract_strided_slice %537 {offsets = [0, 64], sizes = [8, 32], strides = [1, 1]} : vector<8x128xf32> to vector<8x32xf32>
    %552 = math.tanh %551 : vector<8x32xf32>
    %553 = arith.mulf %550, %552 : vector<8x32xf32>
    %554 = arith.addf %544, %553 : vector<8x32xf32>
    %555 = vector.extract_strided_slice %537 {offsets = [0, 96], sizes = [8, 32], strides = [1, 1]} : vector<8x128xf32> to vector<8x32xf32>
    %556 = arith.negf %555 : vector<8x32xf32>
    %557 = math.exp %556 : vector<8x32xf32>
    %cst_171 = arith.constant 1.000000e+00 : f32
    %558 = vector.broadcast %cst_171 : f32 to vector<8x32xf32>
    %559 = arith.addf %558, %557 : vector<8x32xf32>
    %560 = arith.divf %558, %559 : vector<8x32xf32>
    %561 = math.tanh %554 : vector<8x32xf32>
    %562 = arith.mulf %560, %561 : vector<8x32xf32>
    %563 = tpu.concatenate %562, %520 in 1 : vector<8x32xf32>, vector<8x32xf32> -> vector<8x64xf32>
    %564 = arith.truncf %563 : vector<8x64xf32> to vector<8x64xbf16>
    %c0_172 = arith.constant 0 : index
    %c0_173 = arith.constant 0 : index
    %565 = vector.load %arg11[%c0_172, %c0_173] : memref<64x128xbf16, #tpu.memory_space<vmem>>, vector<64x128xbf16>
    %cst_174 = arith.constant dense<0.000000e+00> : vector<8x128xf32>
    %566 = tpu.matmul %564, %565, %cst_174 {dimension_numbers = #tpu.dot_dimension_numbers<[1], [0], [0], [1], [0, 0, 1, 1], [], []>} : vector<8x64xbf16>, vector<64x128xbf16>, vector<8x128xf32> -> vector<8x128xf32>
    %567 = vector.broadcast %16 : vector<1x128xf32> to vector<8x128xf32>
    %568 = arith.addf %566, %567 : vector<8x128xf32>
    %569 = vector.extract_strided_slice %568 {offsets = [0, 32], sizes = [8, 32], strides = [1, 1]} : vector<8x128xf32> to vector<8x32xf32>
    %570 = arith.negf %569 : vector<8x32xf32>
    %571 = math.exp %570 : vector<8x32xf32>
    %cst_175 = arith.constant 1.000000e+00 : f32
    %572 = vector.broadcast %cst_175 : f32 to vector<8x32xf32>
    %573 = arith.addf %572, %571 : vector<8x32xf32>
    %574 = arith.divf %572, %573 : vector<8x32xf32>
    %575 = arith.mulf %574, %512 : vector<8x32xf32>
    %576 = vector.extract_strided_slice %568 {offsets = [0, 0], sizes = [8, 32], strides = [1, 1]} : vector<8x128xf32> to vector<8x32xf32>
    %577 = arith.negf %576 : vector<8x32xf32>
    %578 = math.exp %577 : vector<8x32xf32>
    %cst_176 = arith.constant 1.000000e+00 : f32
    %579 = vector.broadcast %cst_176 : f32 to vector<8x32xf32>
    %580 = arith.addf %579, %578 : vector<8x32xf32>
    %581 = arith.divf %579, %580 : vector<8x32xf32>
    %582 = vector.extract_strided_slice %568 {offsets = [0, 64], sizes = [8, 32], strides = [1, 1]} : vector<8x128xf32> to vector<8x32xf32>
    %583 = math.tanh %582 : vector<8x32xf32>
    %584 = arith.mulf %581, %583 : vector<8x32xf32>
    %585 = arith.addf %575, %584 : vector<8x32xf32>
    %586 = vector.extract_strided_slice %568 {offsets = [0, 96], sizes = [8, 32], strides = [1, 1]} : vector<8x128xf32> to vector<8x32xf32>
    %587 = arith.negf %586 : vector<8x32xf32>
    %588 = math.exp %587 : vector<8x32xf32>
    %cst_177 = arith.constant 1.000000e+00 : f32
    %589 = vector.broadcast %cst_177 : f32 to vector<8x32xf32>
    %590 = arith.addf %589, %588 : vector<8x32xf32>
    %591 = arith.divf %589, %590 : vector<8x32xf32>
    %592 = math.tanh %585 : vector<8x32xf32>
    %593 = arith.mulf %591, %592 : vector<8x32xf32>
    %c0_178 = arith.constant 0 : index
    %c0_179 = arith.constant 0 : index
    %594 = vector.load %arg7[%c0_178, %c0_179] : memref<32x6xf32, #tpu.memory_space<vmem>>, vector<32x6xf32>
    %cst_180 = arith.constant dense<0.000000e+00> : vector<8x6xf32>
    %595 = tpu.matmul %593, %594, %cst_180 {dimension_numbers = #tpu.dot_dimension_numbers<[1], [0], [0], [1], [0, 0, 1, 1], [], []>} : vector<8x32xf32>, vector<32x6xf32>, vector<8x6xf32> -> vector<8x6xf32>
    %596 = vector.broadcast %17 : vector<1x6xf32> to vector<8x6xf32>
    %597 = arith.addf %595, %596 : vector<8x6xf32>
    %cst_181 = arith.constant 0.00999999977 : f32
    %598 = vector.broadcast %cst_181 : f32 to vector<8x6xf32>
    %599 = arith.mulf %598, %597 : vector<8x6xf32>
    %600 = arith.index_cast %c7_i32 : i32 to index
    %c0_182 = arith.constant 0 : index
    %c0_183 = arith.constant 0 : index
    %601 = vector.load %arg9[%600, %c0_182, %c0_183] : memref<8x8x6xf32, #tpu.memory_space<vmem>>, vector<1x8x6xf32>
    %602 = vector.shape_cast %601 : vector<1x8x6xf32> to vector<8x6xf32>
    %603 = vector.shape_cast %599 : vector<8x6xf32> to vector<1x8x6xf32>
    tpu.vector_store %arg9[%600, %c0_182, %c0_183], %603 {strides = array<i32>} : memref<8x8x6xf32, #tpu.memory_space<vmem>>, vector<1x8x6xf32>,
    %c7_i32_184 = arith.constant 7 : i32
    return
  }
}

</mosaic_0001>

<llo_original>
// kernel: posenet_unvio_forward.1
$region0: #{posenet_unvio_forward.1}
  #allocation0 [shape = 'u32[]', space=smem, size = 0x4, offset = 0x4, fixed_abs, tag = 'smem constant byte address 0x4 - core index']
  #allocation1 [shape = 'u32[144,128]{1,0:T(1,128)}', space=vmem, size = 0x12000, scoped, tag = 'internal scratch']
  #allocation2 [shape = 'f32[8,8,128]{2,1,0:T(8,128)}', space=vmem, size = 0x8000, scoped, tag = 'scratch operand']
  #allocation3 [shape = 'bf16[64,128]{1,0:T(16,128)(2,1)}', space=vmem, size = 0x4000, scoped, tag = 'scratch operand']
  #allocation4 [shape = 'bf16[32,128]{1,0:T(16,128)(2,1)}', space=vmem, size = 0x2000, scoped, tag = 'scratch operand']
  #allocation5 [shape = 's32[3]{0}', space=sflag, size = 0xc, scoped, tag = 'scratch operand']
  #allocation6 [shape = 's32[]', space=sflag, size = 0x4, offset = 0, fixed_abs, tag = 'sflag constant byte address 0x0 - dummy sync flag']
  #allocation7 [shape = 's32[]', space=sflag, size = 0x4, offset = 0, fixed_abs, tag = 'sflag constant byte address 0x0 - dummy sync flag']
  #allocation8 [shape = 's32[]', space=sflag, size = 0x4, offset = 0, fixed_abs, tag = 'sflag constant byte address 0x0 - dummy sync flag']
  %s0 = inlined_call_operand.vmem [shape: bf16[64,32], index: 0, kind: input, shape index: {}]
  %s1 = inlined_call_operand.vmem [shape: bf16[32,128], index: 1, kind: input, shape index: {}]
  %s2 = inlined_call_operand.vmem [shape: f32[1,128], index: 2, kind: input, shape index: {}]
  %s3 = inlined_call_operand.vmem [shape: bf16[32,128], index: 3, kind: input, shape index: {}]
  %s4 = inlined_call_operand.vmem [shape: bf16[32,128], index: 4, kind: input, shape index: {}]
  %s5 = inlined_call_operand.vmem [shape: bf16[32,128], index: 5, kind: input, shape index: {}]
  %s6 = inlined_call_operand.vmem [shape: f32[1,128], index: 6, kind: input, shape index: {}]
  %s7 = inlined_call_operand.vmem [shape: f32[32,6], index: 7, kind: input, shape index: {}]
  %s8 = inlined_call_operand.vmem [shape: f32[1,6], index: 8, kind: input, shape index: {}]
  %s9 = inlined_call_operand.vmem [shape: f32[8,8,6], index: 9, kind: output, shape index: {}]
  %s10 = sld [smem:[#allocation0]]
  $region136: #{posenet_unvio_forward.1} parent=0
    _
  %s12 = ssub.s32 1, %s10
  %s13 = scalar_select 0, %s12, %s10
  // Predicated region
  $region2: #{posenet_unvio_forward.1} parent=0 // pred_check
    _
  $region3: #{posenet_unvio_forward.1} parent=0 // pred_check_branch
    %15 = sbr.rel (0) target = $region5
  $region4: #{posenet_unvio_forward.1} parent=0 // pred_region
    _
  $region5: #{posenet_unvio_forward.1} parent=0 // pred_fallthru
    _
  // Predicated region
  $region6: #{posenet_unvio_forward.1} parent=0 // pred_check
    _
  $region7: #{posenet_unvio_forward.1} parent=0 // pred_check_branch
    %17 = sbr.rel (0) target = $region9
  $region8: #{posenet_unvio_forward.1} parent=0 // pred_region
    _
  $region9: #{posenet_unvio_forward.1} parent=0 // pred_fallthru
    _
  // Predicated region
  $region10: #{posenet_unvio_forward.1} parent=0 // pred_check
    _
  $region11: #{posenet_unvio_forward.1} parent=0 // pred_check_branch
    %19 = sbr.rel (0) target = $region13
  $region12: #{posenet_unvio_forward.1} parent=0 // pred_region
    _
  $region13: #{posenet_unvio_forward.1} parent=0 // pred_fallthru
    _
  // Predicated region
  $region14: #{posenet_unvio_forward.1} parent=0 // pred_check
    _
  $region15: #{posenet_unvio_forward.1} parent=0 // pred_check_branch
    %21 = sbr.rel (0) target = $region17
  $region16: #{posenet_unvio_forward.1} parent=0 // pred_region
    _
  $region17: #{posenet_unvio_forward.1} parent=0 // pred_fallthru
    _
  // Predicated region
  $region18: #{posenet_unvio_forward.1} parent=0 // pred_check
    _
  $region19: #{posenet_unvio_forward.1} parent=0 // pred_check_branch
    %23 = sbr.rel (0) target = $region21
  $region20: #{posenet_unvio_forward.1} parent=0 // pred_region
    _
  $region21: #{posenet_unvio_forward.1} parent=0 // pred_fallthru
    _
  // Predicated region
  $region22: #{posenet_unvio_forward.1} parent=0 // pred_check
    _
  $region23: #{posenet_unvio_forward.1} parent=0 // pred_check_branch
    %25 = sbr.rel (0) target = $region25
  $region24: #{posenet_unvio_forward.1} parent=0 // pred_region
    _
  $region25: #{posenet_unvio_forward.1} parent=0 // pred_fallthru
    _
  %p28 = scmp.lt.u32.totalorder 16, 8
  %p29 = pneg %p28
  // Predicated region
  $region26: #{posenet_unvio_forward.1} parent=0 // pred_check
    _
  $region27: #{posenet_unvio_forward.1} parent=0 // pred_check_branch
    %31 = sbr.rel (%p28) target = $region29
  $region28: #{posenet_unvio_forward.1} parent=0 // pred_region
    %s46 = sand.u32 16, 7
    %p47 = scmp.eq.s32.totalorder %s46, 0
    // Predicated region
    $region41: #{posenet_unvio_forward.1} parent=28 // pred_check
      %p48 = pneg %p47
    $region42: #{posenet_unvio_forward.1} parent=28 // pred_check_branch
      %50 = sbr.rel (%p48) target = $region44
    $region43: #{posenet_unvio_forward.1} parent=28 // pred_region
      loop: start=0, step=1, limit=1
      $region45: #{posenet_unvio_forward.1} parent=43 // loop_pre_header
        _
      $region46: #{posenet_unvio_forward.1} parent=43 // loop_header
        %s52 = sphi 0, %s56
        %p53 = scmp.ge.s32.totalorder %s52, 1
        %s57 = sphi %s3, %s3
        %s58 = sphi [#allocation3], [#allocation3]
      $region47: #{posenet_unvio_forward.1} parent=43 // loop_header_branch
        %55 = sbr.rel (%p53) target = $region51
      $region48: #{posenet_unvio_forward.1} parent=43 // loop_body
        %v59 = vld [vmem:[%s57] sm:$0xff]
        %60 = vst [vmem:[%s58] sm:$0xff] %v59
        %v61 = vld [vmem:[%s57 + $0x8] sm:$0xff]
        %62 = vst [vmem:[%s58 + $0x8] sm:$0xff] %v61
      $region49: #{posenet_unvio_forward.1} parent=43 // loop_footer
        %s56 = sadd.s32 1, %s52
      $region50: #{posenet_unvio_forward.1} parent=43 // loop_footer_branch
        %51 = sbr.rel target = $region46
      $region51: #{posenet_unvio_forward.1} parent=43 // loop_exit
        _
    $region44: #{posenet_unvio_forward.1} parent=28 // pred_fallthru
      _
    %p63 = pneg %p47
    // Predicated region
    $region52: #{posenet_unvio_forward.1} parent=28 // pred_check
      _
    $region53: #{posenet_unvio_forward.1} parent=28 // pred_check_branch
      %65 = sbr.rel (%p47) target = $region55
    $region54: #{posenet_unvio_forward.1} parent=28 // pred_region
      %s66 = sand.u32 16, 7
    $region55: #{posenet_unvio_forward.1} parent=28 // pred_fallthru
      _
  $region29: #{posenet_unvio_forward.1} parent=0 // pred_fallthru
    _
  // Predicated region
  $region30: #{posenet_unvio_forward.1} parent=0 // pred_check
    %p32 = pneg %p28
  $region31: #{posenet_unvio_forward.1} parent=0 // pred_check_branch
    %34 = sbr.rel (%p32) target = $region33
  $region32: #{posenet_unvio_forward.1} parent=0 // pred_region
    %s35 = sshllo.u32 0, 16
    loop: start=0, step=1, limit=1
    $region34: #{posenet_unvio_forward.1} parent=32 // loop_pre_header
      _
    $region35: #{posenet_unvio_forward.1} parent=32 // loop_header
      %s37 = sphi 0, %s41
      %p38 = scmp.ge.s32.totalorder %s37, 1
      %s42 = sphi %s3, %s3
      %s43 = sphi [#allocation3], [#allocation3]
    $region36: #{posenet_unvio_forward.1} parent=32 // loop_header_branch
      %40 = sbr.rel (%p38) target = $region40
    $region37: #{posenet_unvio_forward.1} parent=32 // loop_body
      %v44 = vld [vmem:[%s42] sm:%s35]
      %45 = vst [vmem:[%s43] sm:%s35] %v44
    $region38: #{posenet_unvio_forward.1} parent=32 // loop_footer
      %s41 = sadd.s32 1, %s37
    $region39: #{posenet_unvio_forward.1} parent=32 // loop_footer_branch
      %36 = sbr.rel target = $region35
    $region40: #{posenet_unvio_forward.1} parent=32 // loop_exit
      _
  $region33: #{posenet_unvio_forward.1} parent=0 // pred_fallthru
    _
  // Predicated region
  $region56: #{posenet_unvio_forward.1} parent=0 // pred_check
    _
  $region57: #{posenet_unvio_forward.1} parent=0 // pred_check_branch
    %69 = sbr.rel (0) target = $region59
  $region58: #{posenet_unvio_forward.1} parent=0 // pred_region
    %70 = vsyncadd [#allocation5], 256
  $region59: #{posenet_unvio_forward.1} parent=0 // pred_fallthru
    _
  %s71 = scalar_lea.sflag [#allocation5], 1
  %p73 = scmp.lt.u32.totalorder 16, 8
  %p74 = pneg %p73
  // Predicated region
  $region60: #{posenet_unvio_forward.1} parent=0 // pred_check
    _
  $region61: #{posenet_unvio_forward.1} parent=0 // pred_check_branch
    %76 = sbr.rel (%p73) target = $region63
  $region62: #{posenet_unvio_forward.1} parent=0 // pred_region
    %s91 = sand.u32 16, 7
    %p92 = scmp.eq.s32.totalorder %s91, 0
    // Predicated region
    $region75: #{posenet_unvio_forward.1} parent=62 // pred_check
      %p93 = pneg %p92
    $region76: #{posenet_unvio_forward.1} parent=62 // pred_check_branch
      %95 = sbr.rel (%p93) target = $region78
    $region77: #{posenet_unvio_forward.1} parent=62 // pred_region
      loop: start=0, step=1, limit=1
      $region79: #{posenet_unvio_forward.1} parent=77 // loop_pre_header
        _
      $region80: #{posenet_unvio_forward.1} parent=77 // loop_header
        %s97 = sphi 0, %s101
        %p98 = scmp.ge.s32.totalorder %s97, 1
        %s102 = sphi %s4, %s4
        %s103 = sphi [#allocation4], [#allocation4]
      $region81: #{posenet_unvio_forward.1} parent=77 // loop_header_branch
        %100 = sbr.rel (%p98) target = $region85
      $region82: #{posenet_unvio_forward.1} parent=77 // loop_body
        %v104 = vld [vmem:[%s102] sm:$0xff]
        %105 = vst [vmem:[%s103] sm:$0xff] %v104
        %v106 = vld [vmem:[%s102 + $0x8] sm:$0xff]
        %107 = vst [vmem:[%s103 + $0x8] sm:$0xff] %v106
      $region83: #{posenet_unvio_forward.1} parent=77 // loop_footer
        %s101 = sadd.s32 1, %s97
      $region84: #{posenet_unvio_forward.1} parent=77 // loop_footer_branch
        %96 = sbr.rel target = $region80
      $region85: #{posenet_unvio_forward.1} parent=77 // loop_exit
        _
    $region78: #{posenet_unvio_forward.1} parent=62 // pred_fallthru
      _
    %p108 = pneg %p92
    // Predicated region
    $region86: #{posenet_unvio_forward.1} parent=62 // pred_check
      _
    $region87: #{posenet_unvio_forward.1} parent=62 // pred_check_branch
      %110 = sbr.rel (%p92) target = $region89
    $region88: #{posenet_unvio_forward.1} parent=62 // pred_region
      %s111 = sand.u32 16, 7
    $region89: #{posenet_unvio_forward.1} parent=62 // pred_fallthru
      _
  $region63: #{posenet_unvio_forward.1} parent=0 // pred_fallthru
    _
  // Predicated region
  $region64: #{posenet_unvio_forward.1} parent=0 // pred_check
    %p77 = pneg %p73
  $region65: #{posenet_unvio_forward.1} parent=0 // pred_check_branch
    %79 = sbr.rel (%p77) target = $region67
  $region66: #{posenet_unvio_forward.1} parent=0 // pred_region
    %s80 = sshllo.u32 0, 16
    loop: start=0, step=1, limit=1
    $region68: #{posenet_unvio_forward.1} parent=66 // loop_pre_header
      _
    $region69: #{posenet_unvio_forward.1} parent=66 // loop_header
      %s82 = sphi 0, %s86
      %p83 = scmp.ge.s32.totalorder %s82, 1
      %s87 = sphi %s4, %s4
      %s88 = sphi [#allocation4], [#allocation4]
    $region70: #{posenet_unvio_forward.1} parent=66 // loop_header_branch
      %85 = sbr.rel (%p83) target = $region74
    $region71: #{posenet_unvio_forward.1} parent=66 // loop_body
      %v89 = vld [vmem:[%s87] sm:%s80]
      %90 = vst [vmem:[%s88] sm:%s80] %v89
    $region72: #{posenet_unvio_forward.1} parent=66 // loop_footer
      %s86 = sadd.s32 1, %s82
    $region73: #{posenet_unvio_forward.1} parent=66 // loop_footer_branch
      %81 = sbr.rel target = $region69
    $region74: #{posenet_unvio_forward.1} parent=66 // loop_exit
      _
  $region67: #{posenet_unvio_forward.1} parent=0 // pred_fallthru
    _
  // Predicated region
  $region90: #{posenet_unvio_forward.1} parent=0 // pred_check
    _
  $region91: #{posenet_unvio_forward.1} parent=0 // pred_check_branch
    %114 = sbr.rel (0) target = $region93
  $region92: #{posenet_unvio_forward.1} parent=0 // pred_region
    %115 = vsyncadd %s71, 256
  $region93: #{posenet_unvio_forward.1} parent=0 // pred_fallthru
    _
  %s116 = scalar_lea.vmem [#allocation3], 16
  %s117 = scalar_lea.sflag [#allocation5], 2
  %p119 = scmp.lt.u32.totalorder 16, 8
  %p120 = pneg %p119
  // Predicated region
  $region94: #{posenet_unvio_forward.1} parent=0 // pred_check
    _
  $region95: #{posenet_unvio_forward.1} parent=0 // pred_check_branch
    %122 = sbr.rel (%p119) target = $region97
  $region96: #{posenet_unvio_forward.1} parent=0 // pred_region
    %s137 = sand.u32 16, 7
    %p138 = scmp.eq.s32.totalorder %s137, 0
    // Predicated region
    $region109: #{posenet_unvio_forward.1} parent=96 // pred_check
      %p139 = pneg %p138
    $region110: #{posenet_unvio_forward.1} parent=96 // pred_check_branch
      %141 = sbr.rel (%p139) target = $region112
    $region111: #{posenet_unvio_forward.1} parent=96 // pred_region
      loop: start=0, step=1, limit=1
      $region113: #{posenet_unvio_forward.1} parent=111 // loop_pre_header
        _
      $region114: #{posenet_unvio_forward.1} parent=111 // loop_header
        %s143 = sphi 0, %s147
        %p144 = scmp.ge.s32.totalorder %s143, 1
        %s148 = sphi %s5, %s5
        %s149 = sphi %s116, %s116
      $region115: #{posenet_unvio_forward.1} parent=111 // loop_header_branch
        %146 = sbr.rel (%p144) target = $region119
      $region116: #{posenet_unvio_forward.1} parent=111 // loop_body
        %v150 = vld [vmem:[%s148] sm:$0xff]
        %151 = vst [vmem:[%s149] sm:$0xff] %v150
        %v152 = vld [vmem:[%s148 + $0x8] sm:$0xff]
        %153 = vst [vmem:[%s149 + $0x8] sm:$0xff] %v152
      $region117: #{posenet_unvio_forward.1} parent=111 // loop_footer
        %s147 = sadd.s32 1, %s143
      $region118: #{posenet_unvio_forward.1} parent=111 // loop_footer_branch
        %142 = sbr.rel target = $region114
      $region119: #{posenet_unvio_forward.1} parent=111 // loop_exit
        _
    $region112: #{posenet_unvio_forward.1} parent=96 // pred_fallthru
      _
    %p154 = pneg %p138
    // Predicated region
    $region120: #{posenet_unvio_forward.1} parent=96 // pred_check
      _
    $region121: #{posenet_unvio_forward.1} parent=96 // pred_check_branch
      %156 = sbr.rel (%p138) target = $region123
    $region122: #{posenet_unvio_forward.1} parent=96 // pred_region
      %s157 = sand.u32 16, 7
    $region123: #{posenet_unvio_forward.1} parent=96 // pred_fallthru
      _
  $region97: #{posenet_unvio_forward.1} parent=0 // pred_fallthru
    _
  // Predicated region
  $region98: #{posenet_unvio_forward.1} parent=0 // pred_check
    %p123 = pneg %p119
  $region99: #{posenet_unvio_forward.1} parent=0 // pred_check_branch
    %125 = sbr.rel (%p123) target = $region101
  $region100: #{posenet_unvio_forward.1} parent=0 // pred_region
    %s126 = sshllo.u32 0, 16
    loop: start=0, step=1, limit=1
    $region102: #{posenet_unvio_forward.1} parent=100 // loop_pre_header
      _
    $region103: #{posenet_unvio_forward.1} parent=100 // loop_header
      %s128 = sphi 0, %s132
      %p129 = scmp.ge.s32.totalorder %s128, 1
      %s133 = sphi %s5, %s5
      %s134 = sphi %s116, %s116
    $region104: #{posenet_unvio_forward.1} parent=100 // loop_header_branch
      %131 = sbr.rel (%p129) target = $region108
    $region105: #{posenet_unvio_forward.1} parent=100 // loop_body
      %v135 = vld [vmem:[%s133] sm:%s126]
      %136 = vst [vmem:[%s134] sm:%s126] %v135
    $region106: #{posenet_unvio_forward.1} parent=100 // loop_footer
      %s132 = sadd.s32 1, %s128
    $region107: #{posenet_unvio_forward.1} parent=100 // loop_footer_branch
      %127 = sbr.rel target = $region103
    $region108: #{posenet_unvio_forward.1} parent=100 // loop_exit
      _
  $region101: #{posenet_unvio_forward.1} parent=0 // pred_fallthru
    _
  // Predicated region
  $region124: #{posenet_unvio_forward.1} parent=0 // pred_check
    _
  $region125: #{posenet_unvio_forward.1} parent=0 // pred_check_branch
    %160 = sbr.rel (0) target = $region127
  $region126: #{posenet_unvio_forward.1} parent=0 // pred_region
    %161 = vsyncadd %s117, 256
  $region127: #{posenet_unvio_forward.1} parent=0 // pred_fallthru
    _
  %v162 = vld [vmem:[%s0] sm:$0xf]
  %v163 = vld [vmem:[%s0 + $0x4] sm:$0xf]
  %v164 = vld [vmem:[%s0 + $0x8] sm:$0xf]
  %v165 = vld [vmem:[%s0 + $0xc] sm:$0xf]
  %v166 = vld [vmem:[%s0 + $0x10] sm:$0xf]
  %v167 = vld [vmem:[%s0 + $0x14] sm:$0xf]
  %v168 = vld [vmem:[%s0 + $0x18] sm:$0xf]
  %v169 = vld [vmem:[%s0 + $0x1c] sm:$0xf]
  %v170 = vld [vmem:[%s1] sm:$0xf]
  %v171 = vld [vmem:[%s1 + $0x4] sm:$0xf]
  %v172 = vld [vmem:[%s1 + $0x8] sm:$0xf]
  %v173 = vld [vmem:[%s1 + $0xc] sm:$0xf]
  %v174 = vld [vmem:[%s2] sm:$0x1]
  %v176 = vlaneseq
  %v177 = vshrl.u32 %v176, 7
  %v178 = vsub.s32 0, %v177
  %v179 = vrot.slane %v174, %v178
  %v189 = vunpack.c.l.b16 %v162
  %v190 = vunpack.c.l.b16 %v163
  %v191 = vunpack.c.l.b16 %v164
  %v192 = vunpack.c.l.b16 %v165
  %v193 = vunpack.c.l.b16 %v166
  %v194 = vunpack.c.l.b16 %v167
  %v195 = vunpack.c.l.b16 %v168
  %v196 = vunpack.c.l.b16 %v169
  %v197 = vpack.c.b16 %v190, %v189
  %v198 = vpack.c.b16 %v192, %v191
  %v199 = vpack.c.b16 %v194, %v193
  %v200 = vpack.c.b16 %v196, %v195
  %v205 = vunpack.c.l.b16 %v170
  %v206 = vunpack.c.l.b16 %v171
  %v207 = vunpack.c.l.b16 %v172
  %v208 = vunpack.c.l.b16 %v173
  %v209 = vpack.c.b16 %v206, %v205
  %v210 = vpack.c.b16 %v208, %v207
  %vm213 = vcmask 261120
  %v215 = vsel %vm213, %v197, 0
  %v218 = vsel %vm213, %v198, 0
  %v221 = vsel %vm213, %v199, 0
  %v224 = vsel %vm213, %v200, 0
  %226 = vmatprep.subr.bf16.mxu0 0
  %227 = vmatpush1.bf16.msra.mxu0 %v209
  %228 = vmatprep.subr.bf16.mxu0 0
  %229 = vmatpush1.bf16.msra.mxu0 %v210
  %230 = vmatprep.subr.bf16.mxu0 0
  %231 = vmatpush1.bf16.msra.mxu0 0
  %232 = vmatprep.subr.bf16.mxu0 0
  %233 = vmatpush1.bf16.msra.mxu0 0
  %234 = vmatprep.subr.bf16.mxu0 0
  %235 = vmatpush1.bf16.msra.mxu0 0
  %236 = vmatprep.subr.bf16.mxu0 0
  %237 = vmatpush1.bf16.msra.mxu0 0
  %238 = vmatprep.subr.bf16.mxu0 0
  %239 = vmatpush1.bf16.msra.mxu0 0
  %240 = vmatprep.subr.bf16.mxu0 0
  %241 = vmatpush1.bf16.msra.mxu0 0
  %242 = vmatprep.subr.bf16.mxu0 0
  %243 = vmatpush1.bf16.msra.mxu0 0
  %244 = vmatprep.subr.bf16.mxu0 0
  %245 = vmatpush1.bf16.msra.mxu0 0
  %246 = vmatprep.subr.bf16.mxu0 0
  %247 = vmatpush1.bf16.msra.mxu0 0
  %248 = vmatprep.subr.bf16.mxu0 0
  %249 = vmatpush1.bf16.msra.mxu0 0
  %250 = vmatprep.subr.bf16.mxu0 0
  %251 = vmatpush1.bf16.msra.mxu0 0
  %252 = vmatprep.subr.bf16.mxu0 0
  %253 = vmatpush1.bf16.msra.mxu0 0
  %254 = vmatprep.subr.bf16.mxu0 0
  %255 = vmatpush1.bf16.msra.mxu0 0
  %256 = vmatprep.subr.bf16.mxu0 0
  %257 = vmatpush1.bf16.msra.mxu0 0
  %258 = vmatprep.mubr.bf16.mxu0 0
  %259 = vmatmul.mubr.bf16.gmra.mrb[0].mxu0 %v215
  %v260 = vpop.f32.mrb[0].mxu0
  %v261 = vadd.f32 %v179, %v260
  %v262 = vpop.f32.mrb[0].mxu0
  %v263 = vpop.f32.mrb[0].mxu0
  %v264 = vadd.f32 %v179, %v263
  %v265 = vpop.f32.mrb[0].mxu0
  %266 = vmatprep.mubr.bf16.mxu0 0
  %267 = vmatmul.mubr.bf16.gmra.mrb[0].mxu0 %v218
  %v268 = vpop.f32.mrb[0].mxu0
  %v269 = vadd.f32 %v179, %v268
  %v270 = vpop.f32.mrb[0].mxu0
  %v271 = vpop.f32.mrb[0].mxu0
  %v272 = vadd.f32 %v179, %v271
  %v273 = vpop.f32.mrb[0].mxu0
  %274 = vmatprep.mubr.bf16.mxu0 0
  %275 = vmatmul.mubr.bf16.gmra.mrb[0].mxu0 %v221
  %v276 = vpop.f32.mrb[0].mxu0
  %v277 = vadd.f32 %v179, %v276
  %v278 = vpop.f32.mrb[0].mxu0
  %v279 = vpop.f32.mrb[0].mxu0
  %v280 = vadd.f32 %v179, %v279
  %v281 = vpop.f32.mrb[0].mxu0
  %282 = vmatprep.mubr.bf16.mxu0 0
  %283 = vmatmul.mubr.bf16.gmra.mrb[0].mxu0 %v224
  %v284 = vpop.f32.mrb[0].mxu0
  %v285 = vadd.f32 %v179, %v284
  %v286 = vpop.f32.mrb[0].mxu0
  %v287 = vpop.f32.mrb[0].mxu0
  %v288 = vadd.f32 %v179, %v287
  %v289 = vpop.f32.mrb[0].mxu0
  %290 = vdwg.mxu0
  %291 = vst [vmem:[#allocation2] sm:$0xff] %v261
  %292 = vst [vmem:[#allocation2 + $0x8] sm:$0xff] %v264
  %293 = vst [vmem:[#allocation2 + $0x10] sm:$0xff] %v269
  %294 = vst [vmem:[#allocation2 + $0x18] sm:$0xff] %v272
  %295 = vst [vmem:[#allocation2 + $0x20] sm:$0xff] %v277
  %296 = vst [vmem:[#allocation2 + $0x28] sm:$0xff] %v280
  %297 = vst [vmem:[#allocation2 + $0x30] sm:$0xff] %v285
  %298 = vst [vmem:[#allocation2 + $0x38] sm:$0xff] %v288
  %v299 = vld [vmem:[%s6] sm:$0x1]
  %v300 = vld [vmem:[%s8] sm:$0x1]
  %v301 = vld [vmem:[#allocation2] sm:$0xff]
  %v302 = vxor.u32 %v301, 2147483648
  %v303 = vmul.f32 %v302, 1.442695
  %v304 = vpow.pop %v303
  %v305 = vadd.f32 %v304, 1.0
  %v306 = vrcp.pop %v305
  %v307 = vmul.f32 1.0, %v306
  %v308 = vmul.f32 %v307, 0.0
  %v309 = vtanh.pop %v301
  %311 = vrot.lane.b32.xlu0 %v309, 64
  %v312 = vpop.permute.xlu0 %311
  %v314 = vmul.f32 %v307, %v312
  %316 = vrot.lane.b32.xlu0 %v314, 32
  %v317 = vpop.permute.xlu0 %316
  %v319 = vadd.f32 %v308, %v317
  %v320 = vtanh.pop %v319
  %322 = vrot.lane.b32.xlu0 %v320, 64
  %v323 = vpop.permute.xlu0 %322
  %v325 = vmul.f32 %v307, %v323
  %s326 = smul.u32 4, 4
  %s327 = smul.u32 %s326, 1
  %s328 = sshll.u32 %s327, 4
  %329 = dma.done [#allocation5], %s328
  %v330 = vpack.c.bf16 %v325, %v325
  %v331 = vld [vmem:[#allocation3] sm:$0xff]
  %v332 = vld [vmem:[#allocation3 + $0x8] sm:$0xff]
  %v334 = vlaneseq
  %v335 = vshrl.u32 %v334, 7
  %v336 = vsub.s32 0, %v335
  %v337 = vrot.slane %v299, %v336
  %340 = vrot.lane.b32.xlu0 %v330, 32
  %v341 = vpop.permute.xlu0 %340
  %v343 = vsel %vm213, %v341, 0
  %345 = vmatprep.subr.bf16.mxu0 0
  %346 = vmatpush1.bf16.msra.mxu0 %v331
  %347 = vmatprep.subr.bf16.mxu0 0
  %348 = vmatpush1.bf16.msra.mxu0 %v332
  %349 = vmatprep.subr.bf16.mxu0 0
  %350 = vmatpush1.bf16.msra.mxu0 0
  %351 = vmatprep.subr.bf16.mxu0 0
  %352 = vmatpush1.bf16.msra.mxu0 0
  %353 = vmatprep.subr.bf16.mxu0 0
  %354 = vmatpush1.bf16.msra.mxu0 0
  %355 = vmatprep.subr.bf16.mxu0 0
  %356 = vmatpush1.bf16.msra.mxu0 0
  %357 = vmatprep.subr.bf16.mxu0 0
  %358 = vmatpush1.bf16.msra.mxu0 0
  %359 = vmatprep.subr.bf16.mxu0 0
  %360 = vmatpush1.bf16.msra.mxu0 0
  %361 = vmatprep.subr.bf16.mxu0 0
  %362 = vmatpush1.bf16.msra.mxu0 0
  %363 = vmatprep.subr.bf16.mxu0 0
  %364 = vmatpush1.bf16.msra.mxu0 0
  %365 = vmatprep.subr.bf16.mxu0 0
  %366 = vmatpush1.bf16.msra.mxu0 0
  %367 = vmatprep.subr.bf16.mxu0 0
  %368 = vmatpush1.bf16.msra.mxu0 0
  %369 = vmatprep.subr.bf16.mxu0 0
  %370 = vmatpush1.bf16.msra.mxu0 0
  %371 = vmatprep.subr.bf16.mxu0 0
  %372 = vmatpush1.bf16.msra.mxu0 0
  %373 = vmatprep.subr.bf16.mxu0 0
  %374 = vmatpush1.bf16.msra.mxu0 0
  %375 = vmatprep.subr.bf16.mxu0 0
  %376 = vmatpush1.bf16.msra.mxu0 0
  %377 = vmatprep.mubr.bf16.mxu0 0
  %378 = vmatmul.mubr.bf16.gmra.mrb[0].mxu0 %v343
  %v379 = vpop.f32.mrb[0].mxu0
  %v380 = vadd.f32 %v337, %v379
  %v381 = vpop.f32.mrb[0].mxu0
  %v382 = vpop.f32.mrb[0].mxu0
  %v383 = vpop.f32.mrb[0].mxu0
  %384 = vdwg.mxu0
  %v385 = vxor.u32 %v380, 2147483648
  %v386 = vmul.f32 %v385, 1.442695
  %v387 = vpow.pop %v386
  %v388 = vadd.f32 %v387, 1.0
  %v389 = vrcp.pop %v388
  %v390 = vmul.f32 1.0, %v389
  %v391 = vmul.f32 %v390, 0.0
  %v392 = vtanh.pop %v380
  %394 = vrot.lane.b32.xlu0 %v392, 64
  %v395 = vpop.permute.xlu0 %394
  %v397 = vmul.f32 %v390, %v395
  %399 = vrot.lane.b32.xlu0 %v397, 32
  %v400 = vpop.permute.xlu0 %399
  %v402 = vadd.f32 %v391, %v400
  %v403 = vtanh.pop %v402
  %405 = vrot.lane.b32.xlu0 %v403, 64
  %v406 = vpop.permute.xlu0 %405
  %v408 = vmul.f32 %v390, %v406
  %v409 = vld [vmem:[%s7] sm:$0xff]
  %v410 = vld [vmem:[%s7 + $0x8] sm:$0xff]
  %v411 = vld [vmem:[%s7 + $0x10] sm:$0xff]
  %v412 = vld [vmem:[%s7 + $0x18] sm:$0xff]
  %v414 = vlaneseq
  %v415 = vshrl.u32 %v414, 7
  %v416 = vsub.s32 0, %v415
  %v417 = vrot.slane %v300, %v416
  %420 = vrot.lane.b32.xlu0 %v408, 32
  %v421 = vpop.permute.xlu0 %420
  %v422 = vsel %vm213, %v421, 0
  %424 = vmatprep.subr.mxu0 0.0
  %425 = vmatpush1.msra.mxu0 %v409
  %426 = vmatprep.subr.mxu0 0.0
  %427 = vmatpush1.msra.mxu0 %v410
  %428 = vmatprep.subr.mxu0 0.0
  %429 = vmatpush1.msra.mxu0 %v411
  %430 = vmatprep.subr.mxu0 0.0
  %431 = vmatpush1.msra.mxu0 %v412
  %432 = vmatprep.subr.mxu0 0.0
  %433 = vmatpush1.msra.mxu0 0.0
  %434 = vmatprep.subr.mxu0 0.0
  %435 = vmatpush1.msra.mxu0 0.0
  %436 = vmatprep.subr.mxu0 0.0
  %437 = vmatpush1.msra.mxu0 0.0
  %438 = vmatprep.subr.mxu0 0.0
  %439 = vmatpush1.msra.mxu0 0.0
  %440 = vmatprep.subr.mxu0 0.0
  %441 = vmatpush1.msra.mxu0 0.0
  %442 = vmatprep.subr.mxu0 0.0
  %443 = vmatpush1.msra.mxu0 0.0
  %444 = vmatprep.subr.mxu0 0.0
  %445 = vmatpush1.msra.mxu0 0.0
  %446 = vmatprep.subr.mxu0 0.0
  %447 = vmatpush1.msra.mxu0 0.0
  %448 = vmatprep.subr.mxu0 0.0
  %449 = vmatpush1.msra.mxu0 0.0
  %450 = vmatprep.subr.mxu0 0.0
  %451 = vmatpush1.msra.mxu0 0.0
  %452 = vmatprep.subr.mxu0 0.0
  %453 = vmatpush1.msra.mxu0 0.0
  %454 = vmatprep.subr.mxu0 0.0
  %455 = vmatpush1.msra.mxu0 0.0
  %456 = vmatprep.subr.mxu0 0.0
  %457 = vmatpush1.msra.mxu0 0.0
  %458 = vmatprep.subr.mxu0 0.0
  %459 = vmatpush1.msra.mxu0 0.0
  %460 = vmatprep.subr.mxu0 0.0
  %461 = vmatpush1.msra.mxu0 0.0
  %462 = vmatprep.subr.mxu0 0.0
  %463 = vmatpush1.msra.mxu0 0.0
  %464 = vmatprep.subr.mxu0 0.0
  %465 = vmatpush1.msra.mxu0 0.0
  %466 = vmatprep.subr.mxu0 0.0
  %467 = vmatpush1.msra.mxu0 0.0
  %468 = vmatprep.subr.mxu0 0.0
  %469 = vmatpush1.msra.mxu0 0.0
  %470 = vmatprep.subr.mxu0 0.0
  %471 = vmatpush1.msra.mxu0 0.0
  %472 = vmatprep.subr.mxu0 0.0
  %473 = vmatpush1.msra.mxu0 0.0
  %474 = vmatprep.subr.mxu0 0.0
  %475 = vmatpush1.msra.mxu0 0.0
  %476 = vmatprep.subr.mxu0 0.0
  %477 = vmatpush1.msra.mxu0 0.0
  %478 = vmatprep.subr.mxu0 0.0
  %479 = vmatpush1.msra.mxu0 0.0
  %480 = vmatprep.subr.mxu0 0.0
  %481 = vmatpush1.msra.mxu0 0.0
  %482 = vmatprep.subr.mxu0 0.0
  %483 = vmatpush1.msra.mxu0 0.0
  %484 = vmatprep.subr.mxu0 0.0
  %485 = vmatpush1.msra.mxu0 0.0
  %486 = vmatprep.subr.mxu0 0.0
  %487 = vmatpush1.msra.mxu0 0.0
  %488 = vmatprep.mubr.f32.mxu0 0.0
  %489 = vmatmul.mubr.f32.gmra.mrb[0].mxu0 %v422
  %v490 = vpop.f32.mrb[0].mxu0
  %v491 = vadd.f32 %v417, %v490
  %v492 = vpop.f32.mrb[0].mxu0
  %493 = vdwg.mxu0
  %v494 = vmul.f32 %v491, 0.01
  %vm495 = vcmask 48128
  %496 = vst.msk [vmem:[%s9] sm:$0xff] %vm495, %v494
  %s497 = sshll.u32 %s327, 4
  %498 = dma.done %s71, %s497
  %s499 = sshll.u32 %s327, 4
  %500 = dma.done %s117, %s499
  %s501 = scalar_lea.vmem [#allocation2], 8
  %v502 = vld [vmem:[%s501] sm:$0xff]
  %v503 = vld [vmem:[#allocation4] sm:$0xff]
  %v504 = vld [vmem:[#allocation4 + $0x8] sm:$0xff]
  %505 = vmatprep.subr.bf16.mxu0 0
  %506 = vmatpush1.bf16.msra.mxu0 %v503
  %507 = vmatprep.subr.bf16.mxu0 0
  %508 = vmatpush1.bf16.msra.mxu0 %v504
  %509 = vmatprep.subr.bf16.mxu0 0
  %510 = vmatpush1.bf16.msra.mxu0 0
  %511 = vmatprep.subr.bf16.mxu0 0
  %512 = vmatpush1.bf16.msra.mxu0 0
  %513 = vmatprep.subr.bf16.mxu0 0
  %514 = vmatpush1.bf16.msra.mxu0 0
  %515 = vmatprep.subr.bf16.mxu0 0
  %516 = vmatpush1.bf16.msra.mxu0 0
  %517 = vmatprep.subr.bf16.mxu0 0
  %518 = vmatpush1.bf16.msra.mxu0 0
  %519 = vmatprep.subr.bf16.mxu0 0
  %520 = vmatpush1.bf16.msra.mxu0 0
  %521 = vmatprep.subr.bf16.mxu0 0
  %522 = vmatpush1.bf16.msra.mxu0 0
  %523 = vmatprep.subr.bf16.mxu0 0
  %524 = vmatpush1.bf16.msra.mxu0 0
  %525 = vmatprep.subr.bf16.mxu0 0
  %526 = vmatpush1.bf16.msra.mxu0 0
  %527 = vmatprep.subr.bf16.mxu0 0
  %528 = vmatpush1.bf16.msra.mxu0 0
  %529 = vmatprep.subr.bf16.mxu0 0
  %530 = vmatpush1.bf16.msra.mxu0 0
  %531 = vmatprep.subr.bf16.mxu0 0
  %532 = vmatpush1.bf16.msra.mxu0 0
  %533 = vmatprep.subr.bf16.mxu0 0
  %534 = vmatpush1.bf16.msra.mxu0 0
  %535 = vmatprep.subr.bf16.mxu0 0
  %536 = vmatpush1.bf16.msra.mxu0 0
  %537 = vmatprep.mubr.bf16.mxu0 0
  %538 = vmatmul.mubr.bf16.gmra.mrb[0].mxu0 %v343
  %v539 = vpop.f32.mrb[0].mxu0
  %v540 = vadd.f32 0.0, %v539
  %v541 = vpop.f32.mrb[0].mxu0
  %v542 = vpop.f32.mrb[0].mxu0
  %v543 = vpop.f32.mrb[0].mxu0
  %544 = vdwg.mxu0
  %v545 = vadd.f32 %v502, %v540
  %v546 = vxor.u32 %v545, 2147483648
  %v547 = vmul.f32 %v546, 1.442695
  %v548 = vpow.pop %v547
  %v549 = vadd.f32 %v548, 1.0
  %v550 = vrcp.pop %v549
  %v551 = vmul.f32 1.0, %v550
  %v552 = vmul.f32 %v551, %v319
  %v553 = vtanh.pop %v545
  %555 = vrot.lane.b32.xlu0 %v553, 64
  %v556 = vpop.permute.xlu0 %555
  %v558 = vmul.f32 %v551, %v556
  %560 = vrot.lane.b32.xlu0 %v558, 32
  %v561 = vpop.permute.xlu0 %560
  %v563 = vadd.f32 %v552, %v561
  %v564 = vtanh.pop %v563
  %566 = vrot.lane.b32.xlu0 %v564, 64
  %v567 = vpop.permute.xlu0 %566
  %v569 = vmul.f32 %v551, %v567
  %571 = vrot.lane.b32.xlu0 %v569, 32
  %v572 = vpop.permute.xlu0 %571
  %574 = vrot.lane.b32.xlu0 %v408, 64
  %v575 = vpop.permute.xlu0 %574
  %v577 = vsel %vm213, %v572, %v575
  %v578 = vpack.c.bf16 %v577, %v577
  %v579 = vld [vmem:[#allocation3] sm:$0xff]
  %v580 = vld [vmem:[#allocation3 + $0x8] sm:$0xff]
  %v581 = vld [vmem:[#allocation3 + $0x10] sm:$0xff]
  %v582 = vld [vmem:[#allocation3 + $0x18] sm:$0xff]
  %vm583 = vcmask 523264
  %v585 = vsel %vm583, %v578, 0
  %587 = vmatprep.subr.bf16.mxu0 0
  %588 = vmatpush1.bf16.msra.mxu0 %v579
  %589 = vmatprep.subr.bf16.mxu0 0
  %590 = vmatpush1.bf16.msra.mxu0 %v580
  %591 = vmatprep.subr.bf16.mxu0 0
  %592 = vmatpush1.bf16.msra.mxu0 %v581
  %593 = vmatprep.subr.bf16.mxu0 0
  %594 = vmatpush1.bf16.msra.mxu0 %v582
  %595 = vmatprep.subr.bf16.mxu0 0
  %596 = vmatpush1.bf16.msra.mxu0 0
  %597 = vmatprep.subr.bf16.mxu0 0
  %598 = vmatpush1.bf16.msra.mxu0 0
  %599 = vmatprep.subr.bf16.mxu0 0
  %600 = vmatpush1.bf16.msra.mxu0 0
  %601 = vmatprep.subr.bf16.mxu0 0
  %602 = vmatpush1.bf16.msra.mxu0 0
  %603 = vmatprep.subr.bf16.mxu0 0
  %604 = vmatpush1.bf16.msra.mxu0 0
  %605 = vmatprep.subr.bf16.mxu0 0
  %606 = vmatpush1.bf16.msra.mxu0 0
  %607 = vmatprep.subr.bf16.mxu0 0
  %608 = vmatpush1.bf16.msra.mxu0 0
  %609 = vmatprep.subr.bf16.mxu0 0
  %610 = vmatpush1.bf16.msra.mxu0 0
  %611 = vmatprep.subr.bf16.mxu0 0
  %612 = vmatpush1.bf16.msra.mxu0 0
  %613 = vmatprep.subr.bf16.mxu0 0
  %614 = vmatpush1.bf16.msra.mxu0 0
  %615 = vmatprep.subr.bf16.mxu0 0
  %616 = vmatpush1.bf16.msra.mxu0 0
  %617 = vmatprep.subr.bf16.mxu0 0
  %618 = vmatpush1.bf16.msra.mxu0 0
  %619 = vmatprep.mubr.bf16.mxu0 0
  %620 = vmatmul.mubr.bf16.gmra.mrb[0].mxu0 %v585
  %v621 = vpop.f32.mrb[0].mxu0
  %v622 = vadd.f32 %v337, %v621
  %v623 = vpop.f32.mrb[0].mxu0
  %v624 = vpop.f32.mrb[0].mxu0
  %v625 = vpop.f32.mrb[0].mxu0
  %626 = vdwg.mxu0
  %v627 = vxor.u32 %v622, 2147483648
  %v628 = vmul.f32 %v627, 1.442695
  %v629 = vpow.pop %v628
  %v630 = vadd.f32 %v629, 1.0
  %v631 = vrcp.pop %v630
  %v632 = vmul.f32 1.0, %v631
  %v633 = vmul.f32 %v632, %v402
  %v634 = vtanh.pop %v622
  %636 = vrot.lane.b32.xlu0 %v634, 64
  %v637 = vpop.permute.xlu0 %636
  %v639 = vmul.f32 %v632, %v637
  %641 = vrot.lane.b32.xlu0 %v639, 32
  %v642 = vpop.permute.xlu0 %641
  %v644 = vadd.f32 %v633, %v642
  %v645 = vtanh.pop %v644
  %647 = vrot.lane.b32.xlu0 %v645, 64
  %v648 = vpop.permute.xlu0 %647
  %v650 = vmul.f32 %v632, %v648
  %v651 = vld [vmem:[%s7] sm:$0xff]
  %v652 = vld [vmem:[%s7 + $0x8] sm:$0xff]
  %v653 = vld [vmem:[%s7 + $0x10] sm:$0xff]
  %v654 = vld [vmem:[%s7 + $0x18] sm:$0xff]
  %656 = vrot.lane.b32.xlu0 %v650, 32
  %v657 = vpop.permute.xlu0 %656
  %v658 = vsel %vm213, %v657, 0
  %660 = vmatprep.subr.mxu0 0.0
  %661 = vmatpush1.msra.mxu0 %v651
  %662 = vmatprep.subr.mxu0 0.0
  %663 = vmatpush1.msra.mxu0 %v652
  %664 = vmatprep.subr.mxu0 0.0
  %665 = vmatpush1.msra.mxu0 %v653
  %666 = vmatprep.subr.mxu0 0.0
  %667 = vmatpush1.msra.mxu0 %v654
  %668 = vmatprep.subr.mxu0 0.0
  %669 = vmatpush1.msra.mxu0 0.0
  %670 = vmatprep.subr.mxu0 0.0
  %671 = vmatpush1.msra.mxu0 0.0
  %672 = vmatprep.subr.mxu0 0.0
  %673 = vmatpush1.msra.mxu0 0.0
  %674 = vmatprep.subr.mxu0 0.0
  %675 = vmatpush1.msra.mxu0 0.0
  %676 = vmatprep.subr.mxu0 0.0
  %677 = vmatpush1.msra.mxu0 0.0
  %678 = vmatprep.subr.mxu0 0.0
  %679 = vmatpush1.msra.mxu0 0.0
  %680 = vmatprep.subr.mxu0 0.0
  %681 = vmatpush1.msra.mxu0 0.0
  %682 = vmatprep.subr.mxu0 0.0
  %683 = vmatpush1.msra.mxu0 0.0
  %684 = vmatprep.subr.mxu0 0.0
  %685 = vmatpush1.msra.mxu0 0.0
  %686 = vmatprep.subr.mxu0 0.0
  %687 = vmatpush1.msra.mxu0 0.0
  %688 = vmatprep.subr.mxu0 0.0
  %689 = vmatpush1.msra.mxu0 0.0
  %690 = vmatprep.subr.mxu0 0.0
  %691 = vmatpush1.msra.mxu0 0.0
  %692 = vmatprep.subr.mxu0 0.0
  %693 = vmatpush1.msra.mxu0 0.0
  %694 = vmatprep.subr.mxu0 0.0
  %695 = vmatpush1.msra.mxu0 0.0
  %696 = vmatprep.subr.mxu0 0.0
  %697 = vmatpush1.msra.mxu0 0.0
  %698 = vmatprep.subr.mxu0 0.0
  %699 = vmatpush1.msra.mxu0 0.0
  %700 = vmatprep.subr.mxu0 0.0
  %701 = vmatpush1.msra.mxu0 0.0
  %702 = vmatprep.subr.mxu0 0.0
  %703 = vmatpush1.msra.mxu0 0.0
  %704 = vmatprep.subr.mxu0 0.0
  %705 = vmatpush1.msra.mxu0 0.0
  %706 = vmatprep.subr.mxu0 0.0
  %707 = vmatpush1.msra.mxu0 0.0
  %708 = vmatprep.subr.mxu0 0.0
  %709 = vmatpush1.msra.mxu0 0.0
  %710 = vmatprep.subr.mxu0 0.0
  %711 = vmatpush1.msra.mxu0 0.0
  %712 = vmatprep.subr.mxu0 0.0
  %713 = vmatpush1.msra.mxu0 0.0
  %714 = vmatprep.subr.mxu0 0.0
  %715 = vmatpush1.msra.mxu0 0.0
  %716 = vmatprep.subr.mxu0 0.0
  %717 = vmatpush1.msra.mxu0 0.0
  %718 = vmatprep.subr.mxu0 0.0
  %719 = vmatpush1.msra.mxu0 0.0
  %720 = vmatprep.subr.mxu0 0.0
  %721 = vmatpush1.msra.mxu0 0.0
  %722 = vmatprep.subr.mxu0 0.0
  %723 = vmatpush1.msra.mxu0 0.0
  %724 = vmatprep.mubr.f32.mxu0 0.0
  %725 = vmatmul.mubr.f32.gmra.mrb[0].mxu0 %v658
  %v726 = vpop.f32.mrb[0].mxu0
  %v727 = vadd.f32 %v417, %v726
  %v728 = vpop.f32.mrb[0].mxu0
  %729 = vdwg.mxu0
  %v730 = vmul.f32 %v727, 0.01
  %s731 = scalar_lea.vmem %s9, 8
  %732 = vst.msk [vmem:[%s731] sm:$0xff] %vm495, %v730
  %s733 = scalar_lea.vmem [#allocation2], 16
  %v734 = vld [vmem:[%s733] sm:$0xff]
  %v735 = vpack.c.bf16 %v569, %v569
  %v736 = vld [vmem:[#allocation4] sm:$0xff]
  %v737 = vld [vmem:[#allocation4 + $0x8] sm:$0xff]
  %739 = vrot.lane.b32.xlu0 %v735, 32
  %v740 = vpop.permute.xlu0 %739
  %v742 = vsel %vm213, %v740, 0
  %744 = vmatprep.subr.bf16.mxu0 0
  %745 = vmatpush1.bf16.msra.mxu0 %v736
  %746 = vmatprep.subr.bf16.mxu0 0
  %747 = vmatpush1.bf16.msra.mxu0 %v737
  %748 = vmatprep.subr.bf16.mxu0 0
  %749 = vmatpush1.bf16.msra.mxu0 0
  %750 = vmatprep.subr.bf16.mxu0 0
  %751 = vmatpush1.bf16.msra.mxu0 0
  %752 = vmatprep.subr.bf16.mxu0 0
  %753 = vmatpush1.bf16.msra.mxu0 0
  %754 = vmatprep.subr.bf16.mxu0 0
  %755 = vmatpush1.bf16.msra.mxu0 0
  %756 = vmatprep.subr.bf16.mxu0 0
  %757 = vmatpush1.bf16.msra.mxu0 0
  %758 = vmatprep.subr.bf16.mxu0 0
  %759 = vmatpush1.bf16.msra.mxu0 0
  %760 = vmatprep.subr.bf16.mxu0 0
  %761 = vmatpush1.bf16.msra.mxu0 0
  %762 = vmatprep.subr.bf16.mxu0 0
  %763 = vmatpush1.bf16.msra.mxu0 0
  %764 = vmatprep.subr.bf16.mxu0 0
  %765 = vmatpush1.bf16.msra.mxu0 0
  %766 = vmatprep.subr.bf16.mxu0 0
  %767 = vmatpush1.bf16.msra.mxu0 0
  %768 = vmatprep.subr.bf16.mxu0 0
  %769 = vmatpush1.bf16.msra.mxu0 0
  %770 = vmatprep.subr.bf16.mxu0 0
  %771 = vmatpush1.bf16.msra.mxu0 0
  %772 = vmatprep.subr.bf16.mxu0 0
  %773 = vmatpush1.bf16.msra.mxu0 0
  %774 = vmatprep.subr.bf16.mxu0 0
  %775 = vmatpush1.bf16.msra.mxu0 0
  %776 = vmatprep.mubr.bf16.mxu0 0
  %777 = vmatmul.mubr.bf16.gmra.mrb[0].mxu0 %v742
  %v778 = vpop.f32.mrb[0].mxu0
  %v779 = vadd.f32 0.0, %v778
  %v780 = vpop.f32.mrb[0].mxu0
  %v781 = vpop.f32.mrb[0].mxu0
  %v782 = vpop.f32.mrb[0].mxu0
  %783 = vdwg.mxu0
  %v784 = vadd.f32 %v734, %v779
  %v785 = vxor.u32 %v784, 2147483648
  %v786 = vmul.f32 %v785, 1.442695
  %v787 = vpow.pop %v786
  %v788 = vadd.f32 %v787, 1.0
  %v789 = vrcp.pop %v788
  %v790 = vmul.f32 1.0, %v789
  %v791 = vmul.f32 %v790, %v563
  %v792 = vtanh.pop %v784
  %794 = vrot.lane.b32.xlu0 %v792, 64
  %v795 = vpop.permute.xlu0 %794
  %v797 = vmul.f32 %v790, %v795
  %799 = vrot.lane.b32.xlu0 %v797, 32
  %v800 = vpop.permute.xlu0 %799
  %v802 = vadd.f32 %v791, %v800
  %v803 = vtanh.pop %v802
  %805 = vrot.lane.b32.xlu0 %v803, 64
  %v806 = vpop.permute.xlu0 %805
  %v808 = vmul.f32 %v790, %v806
  %810 = vrot.lane.b32.xlu0 %v808, 32
  %v811 = vpop.permute.xlu0 %810
  %813 = vrot.lane.b32.xlu0 %v650, 64
  %v814 = vpop.permute.xlu0 %813
  %v816 = vsel %vm213, %v811, %v814
  %v817 = vpack.c.bf16 %v816, %v816
  %v818 = vld [vmem:[#allocation3] sm:$0xff]
  %v819 = vld [vmem:[#allocation3 + $0x8] sm:$0xff]
  %v820 = vld [vmem:[#allocation3 + $0x10] sm:$0xff]
  %v821 = vld [vmem:[#allocation3 + $0x18] sm:$0xff]
  %v823 = vsel %vm583, %v817, 0
  %825 = vmatprep.subr.bf16.mxu0 0
  %826 = vmatpush1.bf16.msra.mxu0 %v818
  %827 = vmatprep.subr.bf16.mxu0 0
  %828 = vmatpush1.bf16.msra.mxu0 %v819
  %829 = vmatprep.subr.bf16.mxu0 0
  %830 = vmatpush1.bf16.msra.mxu0 %v820
  %831 = vmatprep.subr.bf16.mxu0 0
  %832 = vmatpush1.bf16.msra.mxu0 %v821
  %833 = vmatprep.subr.bf16.mxu0 0
  %834 = vmatpush1.bf16.msra.mxu0 0
  %835 = vmatprep.subr.bf16.mxu0 0
  %836 = vmatpush1.bf16.msra.mxu0 0
  %837 = vmatprep.subr.bf16.mxu0 0
  %838 = vmatpush1.bf16.msra.mxu0 0
  %839 = vmatprep.subr.bf16.mxu0 0
  %840 = vmatpush1.bf16.msra.mxu0 0
  %841 = vmatprep.subr.bf16.mxu0 0
  %842 = vmatpush1.bf16.msra.mxu0 0
  %843 = vmatprep.subr.bf16.mxu0 0
  %844 = vmatpush1.bf16.msra.mxu0 0
  %845 = vmatprep.subr.bf16.mxu0 0
  %846 = vmatpush1.bf16.msra.mxu0 0
  %847 = vmatprep.subr.bf16.mxu0 0
  %848 = vmatpush1.bf16.msra.mxu0 0
  %849 = vmatprep.subr.bf16.mxu0 0
  %850 = vmatpush1.bf16.msra.mxu0 0
  %851 = vmatprep.subr.bf16.mxu0 0
  %852 = vmatpush1.bf16.msra.mxu0 0
  %853 = vmatprep.subr.bf16.mxu0 0
  %854 = vmatpush1.bf16.msra.mxu0 0
  %855 = vmatprep.subr.bf16.mxu0 0
  %856 = vmatpush1.bf16.msra.mxu0 0
  %857 = vmatprep.mubr.bf16.mxu0 0
  %858 = vmatmul.mubr.bf16.gmra.mrb[0].mxu0 %v823
  %v859 = vpop.f32.mrb[0].mxu0
  %v860 = vadd.f32 %v337, %v859
  %v861 = vpop.f32.mrb[0].mxu0
  %v862 = vpop.f32.mrb[0].mxu0
  %v863 = vpop.f32.mrb[0].mxu0
  %864 = vdwg.mxu0
  %v865 = vxor.u32 %v860, 2147483648
  %v866 = vmul.f32 %v865, 1.442695
  %v867 = vpow.pop %v866
  %v868 = vadd.f32 %v867, 1.0
  %v869 = vrcp.pop %v868
  %v870 = vmul.f32 1.0, %v869
  %v871 = vmul.f32 %v870, %v644
  %v872 = vtanh.pop %v860
  %874 = vrot.lane.b32.xlu0 %v872, 64
  %v875 = vpop.permute.xlu0 %874
  %v877 = vmul.f32 %v870, %v875
  %879 = vrot.lane.b32.xlu0 %v877, 32
  %v880 = vpop.permute.xlu0 %879
  %v882 = vadd.f32 %v871, %v880
  %v883 = vtanh.pop %v882
  %885 = vrot.lane.b32.xlu0 %v883, 64
  %v886 = vpop.permute.xlu0 %885
  %v888 = vmul.f32 %v870, %v886
  %v889 = vld [vmem:[%s7] sm:$0xff]
  %v890 = vld [vmem:[%s7 + $0x8] sm:$0xff]
  %v891 = vld [vmem:[%s7 + $0x10] sm:$0xff]
  %v892 = vld [vmem:[%s7 + $0x18] sm:$0xff]
  %894 = vrot.lane.b32.xlu0 %v888, 32
  %v895 = vpop.permute.xlu0 %894
  %v896 = vsel %vm213, %v895, 0
  %898 = vmatprep.subr.mxu0 0.0
  %899 = vmatpush1.msra.mxu0 %v889
  %900 = vmatprep.subr.mxu0 0.0
  %901 = vmatpush1.msra.mxu0 %v890
  %902 = vmatprep.subr.mxu0 0.0
  %903 = vmatpush1.msra.mxu0 %v891
  %904 = vmatprep.subr.mxu0 0.0
  %905 = vmatpush1.msra.mxu0 %v892
  %906 = vmatprep.subr.mxu0 0.0
  %907 = vmatpush1.msra.mxu0 0.0
  %908 = vmatprep.subr.mxu0 0.0
  %909 = vmatpush1.msra.mxu0 0.0
  %910 = vmatprep.subr.mxu0 0.0
  %911 = vmatpush1.msra.mxu0 0.0
  %912 = vmatprep.subr.mxu0 0.0
  %913 = vmatpush1.msra.mxu0 0.0
  %914 = vmatprep.subr.mxu0 0.0
  %915 = vmatpush1.msra.mxu0 0.0
  %916 = vmatprep.subr.mxu0 0.0
  %917 = vmatpush1.msra.mxu0 0.0
  %918 = vmatprep.subr.mxu0 0.0
  %919 = vmatpush1.msra.mxu0 0.0
  %920 = vmatprep.subr.mxu0 0.0
  %921 = vmatpush1.msra.mxu0 0.0
  %922 = vmatprep.subr.mxu0 0.0
  %923 = vmatpush1.msra.mxu0 0.0
  %924 = vmatprep.subr.mxu0 0.0
  %925 = vmatpush1.msra.mxu0 0.0
  %926 = vmatprep.subr.mxu0 0.0
  %927 = vmatpush1.msra.mxu0 0.0
  %928 = vmatprep.subr.mxu0 0.0
  %929 = vmatpush1.msra.mxu0 0.0
  %930 = vmatprep.subr.mxu0 0.0
  %931 = vmatpush1.msra.mxu0 0.0
  %932 = vmatprep.subr.mxu0 0.0
  %933 = vmatpush1.msra.mxu0 0.0
  %934 = vmatprep.subr.mxu0 0.0
  %935 = vmatpush1.msra.mxu0 0.0
  %936 = vmatprep.subr.mxu0 0.0
  %937 = vmatpush1.msra.mxu0 0.0
  %938 = vmatprep.subr.mxu0 0.0
  %939 = vmatpush1.msra.mxu0 0.0
  %940 = vmatprep.subr.mxu0 0.0
  %941 = vmatpush1.msra.mxu0 0.0
  %942 = vmatprep.subr.mxu0 0.0
  %943 = vmatpush1.msra.mxu0 0.0
  %944 = vmatprep.subr.mxu0 0.0
  %945 = vmatpush1.msra.mxu0 0.0
  %946 = vmatprep.subr.mxu0 0.0
  %947 = vmatpush1.msra.mxu0 0.0
  %948 = vmatprep.subr.mxu0 0.0
  %949 = vmatpush1.msra.mxu0 0.0
  %950 = vmatprep.subr.mxu0 0.0
  %951 = vmatpush1.msra.mxu0 0.0
  %952 = vmatprep.subr.mxu0 0.0
  %953 = vmatpush1.msra.mxu0 0.0
  %954 = vmatprep.subr.mxu0 0.0
  %955 = vmatpush1.msra.mxu0 0.0
  %956 = vmatprep.subr.mxu0 0.0
  %957 = vmatpush1.msra.mxu0 0.0
  %958 = vmatprep.subr.mxu0 0.0
  %959 = vmatpush1.msra.mxu0 0.0
  %960 = vmatprep.subr.mxu0 0.0
  %961 = vmatpush1.msra.mxu0 0.0
  %962 = vmatprep.mubr.f32.mxu0 0.0
  %963 = vmatmul.mubr.f32.gmra.mrb[0].mxu0 %v896
  %v964 = vpop.f32.mrb[0].mxu0
  %v965 = vadd.f32 %v417, %v964
  %v966 = vpop.f32.mrb[0].mxu0
  %967 = vdwg.mxu0
  %v968 = vmul.f32 %v965, 0.01
  %s969 = scalar_lea.vmem %s9, 16
  %970 = vst.msk [vmem:[%s969] sm:$0xff] %vm495, %v968
  %s971 = scalar_lea.vmem [#allocation2], 24
  %v972 = vld [vmem:[%s971] sm:$0xff]
  %v973 = vpack.c.bf16 %v808, %v808
  %v974 = vld [vmem:[#allocation4] sm:$0xff]
  %v975 = vld [vmem:[#allocation4 + $0x8] sm:$0xff]
  %977 = vrot.lane.b32.xlu0 %v973, 32
  %v978 = vpop.permute.xlu0 %977
  %v980 = vsel %vm213, %v978, 0
  %982 = vmatprep.subr.bf16.mxu0 0
  %983 = vmatpush1.bf16.msra.mxu0 %v974
  %984 = vmatprep.subr.bf16.mxu0 0
  %985 = vmatpush1.bf16.msra.mxu0 %v975
  %986 = vmatprep.subr.bf16.mxu0 0
  %987 = vmatpush1.bf16.msra.mxu0 0
  %988 = vmatprep.subr.bf16.mxu0 0
  %989 = vmatpush1.bf16.msra.mxu0 0
  %990 = vmatprep.subr.bf16.mxu0 0
  %991 = vmatpush1.bf16.msra.mxu0 0
  %992 = vmatprep.subr.bf16.mxu0 0
  %993 = vmatpush1.bf16.msra.mxu0 0
  %994 = vmatprep.subr.bf16.mxu0 0
  %995 = vmatpush1.bf16.msra.mxu0 0
  %996 = vmatprep.subr.bf16.mxu0 0
  %997 = vmatpush1.bf16.msra.mxu0 0
  %998 = vmatprep.subr.bf16.mxu0 0
  %999 = vmatpush1.bf16.msra.mxu0 0
  %1000 = vmatprep.subr.bf16.mxu0 0
  %1001 = vmatpush1.bf16.msra.mxu0 0
  %1002 = vmatprep.subr.bf16.mxu0 0
  %1003 = vmatpush1.bf16.msra.mxu0 0
  %1004 = vmatprep.subr.bf16.mxu0 0
  %1005 = vmatpush1.bf16.msra.mxu0 0
  %1006 = vmatprep.subr.bf16.mxu0 0
  %1007 = vmatpush1.bf16.msra.mxu0 0
  %1008 = vmatprep.subr.bf16.mxu0 0
  %1009 = vmatpush1.bf16.msra.mxu0 0
  %1010 = vmatprep.subr.bf16.mxu0 0
  %1011 = vmatpush1.bf16.msra.mxu0 0
  %1012 = vmatprep.subr.bf16.mxu0 0
  %1013 = vmatpush1.bf16.msra.mxu0 0
  %1014 = vmatprep.mubr.bf16.mxu0 0
  %1015 = vmatmul.mubr.bf16.gmra.mrb[0].mxu0 %v980
  %v1016 = vpop.f32.mrb[0].mxu0
  %v1017 = vadd.f32 0.0, %v1016
  %v1018 = vpop.f32.mrb[0].mxu0
  %v1019 = vpop.f32.mrb[0].mxu0
  %v1020 = vpop.f32.mrb[0].mxu0
  %1021 = vdwg.mxu0
  %v1022 = vadd.f32 %v972, %v1017
  %v1023 = vxor.u32 %v1022, 2147483648
  %v1024 = vmul.f32 %v1023, 1.442695
  %v1025 = vpow.pop %v1024
  %v1026 = vadd.f32 %v1025, 1.0
  %v1027 = vrcp.pop %v1026
  %v1028 = vmul.f32 1.0, %v1027
  %v1029 = vmul.f32 %v1028, %v802
  %v1030 = vtanh.pop %v1022
  %1032 = vrot.lane.b32.xlu0 %v1030, 64
  %v1033 = vpop.permute.xlu0 %1032
  %v1035 = vmul.f32 %v1028, %v1033
  %1037 = vrot.lane.b32.xlu0 %v1035, 32
  %v1038 = vpop.permute.xlu0 %1037
  %v1040 = vadd.f32 %v1029, %v1038
  %v1041 = vtanh.pop %v1040
  %1043 = vrot.lane.b32.xlu0 %v1041, 64
  %v1044 = vpop.permute.xlu0 %1043
  %v1046 = vmul.f32 %v1028, %v1044
  %1048 = vrot.lane.b32.xlu0 %v1046, 32
  %v1049 = vpop.permute.xlu0 %1048
  %1051 = vrot.lane.b32.xlu0 %v888, 64
  %v1052 = vpop.permute.xlu0 %1051
  %v1054 = vsel %vm213, %v1049, %v1052
  %v1055 = vpack.c.bf16 %v1054, %v1054
  %v1056 = vld [vmem:[#allocation3] sm:$0xff]
  %v1057 = vld [vmem:[#allocation3 + $0x8] sm:$0xff]
  %v1058 = vld [vmem:[#allocation3 + $0x10] sm:$0xff]
  %v1059 = vld [vmem:[#allocation3 + $0x18] sm:$0xff]
  %v1061 = vsel %vm583, %v1055, 0
  %1063 = vmatprep.subr.bf16.mxu0 0
  %1064 = vmatpush1.bf16.msra.mxu0 %v1056
  %1065 = vmatprep.subr.bf16.mxu0 0
  %1066 = vmatpush1.bf16.msra.mxu0 %v1057
  %1067 = vmatprep.subr.bf16.mxu0 0
  %1068 = vmatpush1.bf16.msra.mxu0 %v1058
  %1069 = vmatprep.subr.bf16.mxu0 0
  %1070 = vmatpush1.bf16.msra.mxu0 %v1059
  %1071 = vmatprep.subr.bf16.mxu0 0
  %1072 = vmatpush1.bf16.msra.mxu0 0
  %1073 = vmatprep.subr.bf16.mxu0 0
  %1074 = vmatpush1.bf16.msra.mxu0 0
  %1075 = vmatprep.subr.bf16.mxu0 0
  %1076 = vmatpush1.bf16.msra.mxu0 0
  %1077 = vmatprep.subr.bf16.mxu0 0
  %1078 = vmatpush1.bf16.msra.mxu0 0
  %1079 = vmatprep.subr.bf16.mxu0 0
  %1080 = vmatpush1.bf16.msra.mxu0 0
  %1081 = vmatprep.subr.bf16.mxu0 0
  %1082 = vmatpush1.bf16.msra.mxu0 0
  %1083 = vmatprep.subr.bf16.mxu0 0
  %1084 = vmatpush1.bf16.msra.mxu0 0
  %1085 = vmatprep.subr.bf16.mxu0 0
  %1086 = vmatpush1.bf16.msra.mxu0 0
  %1087 = vmatprep.subr.bf16.mxu0 0
  %1088 = vmatpush1.bf16.msra.mxu0 0
  %1089 = vmatprep.subr.bf16.mxu0 0
  %1090 = vmatpush1.bf16.msra.mxu0 0
  %1091 = vmatprep.subr.bf16.mxu0 0
  %1092 = vmatpush1.bf16.msra.mxu0 0
  %1093 = vmatprep.subr.bf16.mxu0 0
  %1094 = vmatpush1.bf16.msra.mxu0 0
  %1095 = vmatprep.mubr.bf16.mxu0 0
  %1096 = vmatmul.mubr.bf16.gmra.mrb[0].mxu0 %v1061
  %v1097 = vpop.f32.mrb[0].mxu0
  %v1098 = vadd.f32 %v337, %v1097
  %v1099 = vpop.f32.mrb[0].mxu0
  %v1100 = vpop.f32.mrb[0].mxu0
  %v1101 = vpop.f32.mrb[0].mxu0
  %1102 = vdwg.mxu0
  %v1103 = vxor.u32 %v1098, 2147483648
  %v1104 = vmul.f32 %v1103, 1.442695
  %v1105 = vpow.pop %v1104
  %v1106 = vadd.f32 %v1105, 1.0
  %v1107 = vrcp.pop %v1106
  %v1108 = vmul.f32 1.0, %v1107
  %v1109 = vmul.f32 %v1108, %v882
  %v1110 = vtanh.pop %v1098
  %1112 = vrot.lane.b32.xlu0 %v1110, 64
  %v1113 = vpop.permute.xlu0 %1112
  %v1115 = vmul.f32 %v1108, %v1113
  %1117 = vrot.lane.b32.xlu0 %v1115, 32
  %v1118 = vpop.permute.xlu0 %1117
  %v1120 = vadd.f32 %v1109, %v1118
  %v1121 = vtanh.pop %v1120
  %1123 = vrot.lane.b32.xlu0 %v1121, 64
  %v1124 = vpop.permute.xlu0 %1123
  %v1126 = vmul.f32 %v1108, %v1124
  %v1127 = vld [vmem:[%s7] sm:$0xff]
  %v1128 = vld [vmem:[%s7 + $0x8] sm:$0xff]
  %v1129 = vld [vmem:[%s7 + $0x10] sm:$0xff]
  %v1130 = vld [vmem:[%s7 + $0x18] sm:$0xff]
  %1132 = vrot.lane.b32.xlu0 %v1126, 32
  %v1133 = vpop.permute.xlu0 %1132
  %v1134 = vsel %vm213, %v1133, 0
  %1136 = vmatprep.subr.mxu0 0.0
  %1137 = vmatpush1.msra.mxu0 %v1127
  %1138 = vmatprep.subr.mxu0 0.0
  %1139 = vmatpush1.msra.mxu0 %v1128
  %1140 = vmatprep.subr.mxu0 0.0
  %1141 = vmatpush1.msra.mxu0 %v1129
  %1142 = vmatprep.subr.mxu0 0.0
  %1143 = vmatpush1.msra.mxu0 %v1130
  %1144 = vmatprep.subr.mxu0 0.0
  %1145 = vmatpush1.msra.mxu0 0.0
  %1146 = vmatprep.subr.mxu0 0.0
  %1147 = vmatpush1.msra.mxu0 0.0
  %1148 = vmatprep.subr.mxu0 0.0
  %1149 = vmatpush1.msra.mxu0 0.0
  %1150 = vmatprep.subr.mxu0 0.0
  %1151 = vmatpush1.msra.mxu0 0.0
  %1152 = vmatprep.subr.mxu0 0.0
  %1153 = vmatpush1.msra.mxu0 0.0
  %1154 = vmatprep.subr.mxu0 0.0
  %1155 = vmatpush1.msra.mxu0 0.0
  %1156 = vmatprep.subr.mxu0 0.0
  %1157 = vmatpush1.msra.mxu0 0.0
  %1158 = vmatprep.subr.mxu0 0.0
  %1159 = vmatpush1.msra.mxu0 0.0
  %1160 = vmatprep.subr.mxu0 0.0
  %1161 = vmatpush1.msra.mxu0 0.0
  %1162 = vmatprep.subr.mxu0 0.0
  %1163 = vmatpush1.msra.mxu0 0.0
  %1164 = vmatprep.subr.mxu0 0.0
  %1165 = vmatpush1.msra.mxu0 0.0
  %1166 = vmatprep.subr.mxu0 0.0
  %1167 = vmatpush1.msra.mxu0 0.0
  %1168 = vmatprep.subr.mxu0 0.0
  %1169 = vmatpush1.msra.mxu0 0.0
  %1170 = vmatprep.subr.mxu0 0.0
  %1171 = vmatpush1.msra.mxu0 0.0
  %1172 = vmatprep.subr.mxu0 0.0
  %1173 = vmatpush1.msra.mxu0 0.0
  %1174 = vmatprep.subr.mxu0 0.0
  %1175 = vmatpush1.msra.mxu0 0.0
  %1176 = vmatprep.subr.mxu0 0.0
  %1177 = vmatpush1.msra.mxu0 0.0
  %1178 = vmatprep.subr.mxu0 0.0
  %1179 = vmatpush1.msra.mxu0 0.0
  %1180 = vmatprep.subr.mxu0 0.0
  %1181 = vmatpush1.msra.mxu0 0.0
  %1182 = vmatprep.subr.mxu0 0.0
  %1183 = vmatpush1.msra.mxu0 0.0
  %1184 = vmatprep.subr.mxu0 0.0
  %1185 = vmatpush1.msra.mxu0 0.0
  %1186 = vmatprep.subr.mxu0 0.0
  %1187 = vmatpush1.msra.mxu0 0.0
  %1188 = vmatprep.subr.mxu0 0.0
  %1189 = vmatpush1.msra.mxu0 0.0
  %1190 = vmatprep.subr.mxu0 0.0
  %1191 = vmatpush1.msra.mxu0 0.0
  %1192 = vmatprep.subr.mxu0 0.0
  %1193 = vmatpush1.msra.mxu0 0.0
  %1194 = vmatprep.subr.mxu0 0.0
  %1195 = vmatpush1.msra.mxu0 0.0
  %1196 = vmatprep.subr.mxu0 0.0
  %1197 = vmatpush1.msra.mxu0 0.0
  %1198 = vmatprep.subr.mxu0 0.0
  %1199 = vmatpush1.msra.mxu0 0.0
  %1200 = vmatprep.mubr.f32.mxu0 0.0
  %1201 = vmatmul.mubr.f32.gmra.mrb[0].mxu0 %v1134
  %v1202 = vpop.f32.mrb[0].mxu0
  %v1203 = vadd.f32 %v417, %v1202
  %v1204 = vpop.f32.mrb[0].mxu0
  %1205 = vdwg.mxu0
  %v1206 = vmul.f32 %v1203, 0.01
  %s1207 = scalar_lea.vmem %s9, 24
  %1208 = vst.msk [vmem:[%s1207] sm:$0xff] %vm495, %v1206
  %s1209 = scalar_lea.vmem [#allocation2], 32
  %v1210 = vld [vmem:[%s1209] sm:$0xff]
  %v1211 = vpack.c.bf16 %v1046, %v1046
  %v1212 = vld [vmem:[#allocation4] sm:$0xff]
  %v1213 = vld [vmem:[#allocation4 + $0x8] sm:$0xff]
  %1215 = vrot.lane.b32.xlu0 %v1211, 32
  %v1216 = vpop.permute.xlu0 %1215
  %v1218 = vsel %vm213, %v1216, 0
  %1220 = vmatprep.subr.bf16.mxu0 0
  %1221 = vmatpush1.bf16.msra.mxu0 %v1212
  %1222 = vmatprep.subr.bf16.mxu0 0
  %1223 = vmatpush1.bf16.msra.mxu0 %v1213
  %1224 = vmatprep.subr.bf16.mxu0 0
  %1225 = vmatpush1.bf16.msra.mxu0 0
  %1226 = vmatprep.subr.bf16.mxu0 0
  %1227 = vmatpush1.bf16.msra.mxu0 0
  %1228 = vmatprep.subr.bf16.mxu0 0
  %1229 = vmatpush1.bf16.msra.mxu0 0
  %1230 = vmatprep.subr.bf16.mxu0 0
  %1231 = vmatpush1.bf16.msra.mxu0 0
  %1232 = vmatprep.subr.bf16.mxu0 0
  %1233 = vmatpush1.bf16.msra.mxu0 0
  %1234 = vmatprep.subr.bf16.mxu0 0
  %1235 = vmatpush1.bf16.msra.mxu0 0
  %1236 = vmatprep.subr.bf16.mxu0 0
  %1237 = vmatpush1.bf16.msra.mxu0 0
  %1238 = vmatprep.subr.bf16.mxu0 0
  %1239 = vmatpush1.bf16.msra.mxu0 0
  %1240 = vmatprep.subr.bf16.mxu0 0
  %1241 = vmatpush1.bf16.msra.mxu0 0
  %1242 = vmatprep.subr.bf16.mxu0 0
  %1243 = vmatpush1.bf16.msra.mxu0 0
  %1244 = vmatprep.subr.bf16.mxu0 0
  %1245 = vmatpush1.bf16.msra.mxu0 0
  %1246 = vmatprep.subr.bf16.mxu0 0
  %1247 = vmatpush1.bf16.msra.mxu0 0
  %1248 = vmatprep.subr.bf16.mxu0 0
  %1249 = vmatpush1.bf16.msra.mxu0 0
  %1250 = vmatprep.subr.bf16.mxu0 0
  %1251 = vmatpush1.bf16.msra.mxu0 0
  %1252 = vmatprep.mubr.bf16.mxu0 0
  %1253 = vmatmul.mubr.bf16.gmra.mrb[0].mxu0 %v1218
  %v1254 = vpop.f32.mrb[0].mxu0
  %v1255 = vadd.f32 0.0, %v1254
  %v1256 = vpop.f32.mrb[0].mxu0
  %v1257 = vpop.f32.mrb[0].mxu0
  %v1258 = vpop.f32.mrb[0].mxu0
  %1259 = vdwg.mxu0
  %v1260 = vadd.f32 %v1210, %v1255
  %v1261 = vxor.u32 %v1260, 2147483648
  %v1262 = vmul.f32 %v1261, 1.442695
  %v1263 = vpow.pop %v1262
  %v1264 = vadd.f32 %v1263, 1.0
  %v1265 = vrcp.pop %v1264
  %v1266 = vmul.f32 1.0, %v1265
  %v1267 = vmul.f32 %v1266, %v1040
  %v1268 = vtanh.pop %v1260
  %1270 = vrot.lane.b32.xlu0 %v1268, 64
  %v1271 = vpop.permute.xlu0 %1270
  %v1273 = vmul.f32 %v1266, %v1271
  %1275 = vrot.lane.b32.xlu0 %v1273, 32
  %v1276 = vpop.permute.xlu0 %1275
  %v1278 = vadd.f32 %v1267, %v1276
  %v1279 = vtanh.pop %v1278
  %1281 = vrot.lane.b32.xlu0 %v1279, 64
  %v1282 = vpop.permute.xlu0 %1281
  %v1284 = vmul.f32 %v1266, %v1282
  %1286 = vrot.lane.b32.xlu0 %v1284, 32
  %v1287 = vpop.permute.xlu0 %1286
  %1289 = vrot.lane.b32.xlu0 %v1126, 64
  %v1290 = vpop.permute.xlu0 %1289
  %v1292 = vsel %vm213, %v1287, %v1290
  %v1293 = vpack.c.bf16 %v1292, %v1292
  %v1294 = vld [vmem:[#allocation3] sm:$0xff]
  %v1295 = vld [vmem:[#allocation3 + $0x8] sm:$0xff]
  %v1296 = vld [vmem:[#allocation3 + $0x10] sm:$0xff]
  %v1297 = vld [vmem:[#allocation3 + $0x18] sm:$0xff]
  %v1299 = vsel %vm583, %v1293, 0
  %1301 = vmatprep.subr.bf16.mxu0 0
  %1302 = vmatpush1.bf16.msra.mxu0 %v1294
  %1303 = vmatprep.subr.bf16.mxu0 0
  %1304 = vmatpush1.bf16.msra.mxu0 %v1295
  %1305 = vmatprep.subr.bf16.mxu0 0
  %1306 = vmatpush1.bf16.msra.mxu0 %v1296
  %1307 = vmatprep.subr.bf16.mxu0 0
  %1308 = vmatpush1.bf16.msra.mxu0 %v1297
  %1309 = vmatprep.subr.bf16.mxu0 0
  %1310 = vmatpush1.bf16.msra.mxu0 0
  %1311 = vmatprep.subr.bf16.mxu0 0
  %1312 = vmatpush1.bf16.msra.mxu0 0
  %1313 = vmatprep.subr.bf16.mxu0 0
  %1314 = vmatpush1.bf16.msra.mxu0 0
  %1315 = vmatprep.subr.bf16.mxu0 0
  %1316 = vmatpush1.bf16.msra.mxu0 0
  %1317 = vmatprep.subr.bf16.mxu0 0
  %1318 = vmatpush1.bf16.msra.mxu0 0
  %1319 = vmatprep.subr.bf16.mxu0 0
  %1320 = vmatpush1.bf16.msra.mxu0 0
  %1321 = vmatprep.subr.bf16.mxu0 0
  %1322 = vmatpush1.bf16.msra.mxu0 0
  %1323 = vmatprep.subr.bf16.mxu0 0
  %1324 = vmatpush1.bf16.msra.mxu0 0
  %1325 = vmatprep.subr.bf16.mxu0 0
  %1326 = vmatpush1.bf16.msra.mxu0 0
  %1327 = vmatprep.subr.bf16.mxu0 0
  %1328 = vmatpush1.bf16.msra.mxu0 0
  %1329 = vmatprep.subr.bf16.mxu0 0
  %1330 = vmatpush1.bf16.msra.mxu0 0
  %1331 = vmatprep.subr.bf16.mxu0 0
  %1332 = vmatpush1.bf16.msra.mxu0 0
  %1333 = vmatprep.mubr.bf16.mxu0 0
  %1334 = vmatmul.mubr.bf16.gmra.mrb[0].mxu0 %v1299
  %v1335 = vpop.f32.mrb[0].mxu0
  %v1336 = vadd.f32 %v337, %v1335
  %v1337 = vpop.f32.mrb[0].mxu0
  %v1338 = vpop.f32.mrb[0].mxu0
  %v1339 = vpop.f32.mrb[0].mxu0
  %1340 = vdwg.mxu0
  %v1341 = vxor.u32 %v1336, 2147483648
  %v1342 = vmul.f32 %v1341, 1.442695
  %v1343 = vpow.pop %v1342
  %v1344 = vadd.f32 %v1343, 1.0
  %v1345 = vrcp.pop %v1344
  %v1346 = vmul.f32 1.0, %v1345
  %v1347 = vmul.f32 %v1346, %v1120
  %v1348 = vtanh.pop %v1336
  %1350 = vrot.lane.b32.xlu0 %v1348, 64
  %v1351 = vpop.permute.xlu0 %1350
  %v1353 = vmul.f32 %v1346, %v1351
  %1355 = vrot.lane.b32.xlu0 %v1353, 32
  %v1356 = vpop.permute.xlu0 %1355
  %v1358 = vadd.f32 %v1347, %v1356
  %v1359 = vtanh.pop %v1358
  %1361 = vrot.lane.b32.xlu0 %v1359, 64
  %v1362 = vpop.permute.xlu0 %1361
  %v1364 = vmul.f32 %v1346, %v1362
  %v1365 = vld [vmem:[%s7] sm:$0xff]
  %v1366 = vld [vmem:[%s7 + $0x8] sm:$0xff]
  %v1367 = vld [vmem:[%s7 + $0x10] sm:$0xff]
  %v1368 = vld [vmem:[%s7 + $0x18] sm:$0xff]
  %1370 = vrot.lane.b32.xlu0 %v1364, 32
  %v1371 = vpop.permute.xlu0 %1370
  %v1372 = vsel %vm213, %v1371, 0
  %1374 = vmatprep.subr.mxu0 0.0
  %1375 = vmatpush1.msra.mxu0 %v1365
  %1376 = vmatprep.subr.mxu0 0.0
  %1377 = vmatpush1.msra.mxu0 %v1366
  %1378 = vmatprep.subr.mxu0 0.0
  %1379 = vmatpush1.msra.mxu0 %v1367
  %1380 = vmatprep.subr.mxu0 0.0
  %1381 = vmatpush1.msra.mxu0 %v1368
  %1382 = vmatprep.subr.mxu0 0.0
  %1383 = vmatpush1.msra.mxu0 0.0
  %1384 = vmatprep.subr.mxu0 0.0
  %1385 = vmatpush1.msra.mxu0 0.0
  %1386 = vmatprep.subr.mxu0 0.0
  %1387 = vmatpush1.msra.mxu0 0.0
  %1388 = vmatprep.subr.mxu0 0.0
  %1389 = vmatpush1.msra.mxu0 0.0
  %1390 = vmatprep.subr.mxu0 0.0
  %1391 = vmatpush1.msra.mxu0 0.0
  %1392 = vmatprep.subr.mxu0 0.0
  %1393 = vmatpush1.msra.mxu0 0.0
  %1394 = vmatprep.subr.mxu0 0.0
  %1395 = vmatpush1.msra.mxu0 0.0
  %1396 = vmatprep.subr.mxu0 0.0
  %1397 = vmatpush1.msra.mxu0 0.0
  %1398 = vmatprep.subr.mxu0 0.0
  %1399 = vmatpush1.msra.mxu0 0.0
  %1400 = vmatprep.subr.mxu0 0.0
  %1401 = vmatpush1.msra.mxu0 0.0
  %1402 = vmatprep.subr.mxu0 0.0
  %1403 = vmatpush1.msra.mxu0 0.0
  %1404 = vmatprep.subr.mxu0 0.0
  %1405 = vmatpush1.msra.mxu0 0.0
  %1406 = vmatprep.subr.mxu0 0.0
  %1407 = vmatpush1.msra.mxu0 0.0
  %1408 = vmatprep.subr.mxu0 0.0
  %1409 = vmatpush1.msra.mxu0 0.0
  %1410 = vmatprep.subr.mxu0 0.0
  %1411 = vmatpush1.msra.mxu0 0.0
  %1412 = vmatprep.subr.mxu0 0.0
  %1413 = vmatpush1.msra.mxu0 0.0
  %1414 = vmatprep.subr.mxu0 0.0
  %1415 = vmatpush1.msra.mxu0 0.0
  %1416 = vmatprep.subr.mxu0 0.0
  %1417 = vmatpush1.msra.mxu0 0.0
  %1418 = vmatprep.subr.mxu0 0.0
  %1419 = vmatpush1.msra.mxu0 0.0
  %1420 = vmatprep.subr.mxu0 0.0
  %1421 = vmatpush1.msra.mxu0 0.0
  %1422 = vmatprep.subr.mxu0 0.0
  %1423 = vmatpush1.msra.mxu0 0.0
  %1424 = vmatprep.subr.mxu0 0.0
  %1425 = vmatpush1.msra.mxu0 0.0
  %1426 = vmatprep.subr.mxu0 0.0
  %1427 = vmatpush1.msra.mxu0 0.0
  %1428 = vmatprep.subr.mxu0 0.0
  %1429 = vmatpush1.msra.mxu0 0.0
  %1430 = vmatprep.subr.mxu0 0.0
  %1431 = vmatpush1.msra.mxu0 0.0
  %1432 = vmatprep.subr.mxu0 0.0
  %1433 = vmatpush1.msra.mxu0 0.0
  %1434 = vmatprep.subr.mxu0 0.0
  %1435 = vmatpush1.msra.mxu0 0.0
  %1436 = vmatprep.subr.mxu0 0.0
  %1437 = vmatpush1.msra.mxu0 0.0
  %1438 = vmatprep.mubr.f32.mxu0 0.0
  %1439 = vmatmul.mubr.f32.gmra.mrb[0].mxu0 %v1372
  %v1440 = vpop.f32.mrb[0].mxu0
  %v1441 = vadd.f32 %v417, %v1440
  %v1442 = vpop.f32.mrb[0].mxu0
  %1443 = vdwg.mxu0
  %v1444 = vmul.f32 %v1441, 0.01
  %s1445 = scalar_lea.vmem %s9, 32
  %1446 = vst.msk [vmem:[%s1445] sm:$0xff] %vm495, %v1444
  %s1447 = scalar_lea.vmem [#allocation2], 40
  %v1448 = vld [vmem:[%s1447] sm:$0xff]
  %v1449 = vpack.c.bf16 %v1284, %v1284
  %v1450 = vld [vmem:[#allocation4] sm:$0xff]
  %v1451 = vld [vmem:[#allocation4 + $0x8] sm:$0xff]
  %1453 = vrot.lane.b32.xlu0 %v1449, 32
  %v1454 = vpop.permute.xlu0 %1453
  %v1456 = vsel %vm213, %v1454, 0
  %1458 = vmatprep.subr.bf16.mxu0 0
  %1459 = vmatpush1.bf16.msra.mxu0 %v1450
  %1460 = vmatprep.subr.bf16.mxu0 0
  %1461 = vmatpush1.bf16.msra.mxu0 %v1451
  %1462 = vmatprep.subr.bf16.mxu0 0
  %1463 = vmatpush1.bf16.msra.mxu0 0
  %1464 = vmatprep.subr.bf16.mxu0 0
  %1465 = vmatpush1.bf16.msra.mxu0 0
  %1466 = vmatprep.subr.bf16.mxu0 0
  %1467 = vmatpush1.bf16.msra.mxu0 0
  %1468 = vmatprep.subr.bf16.mxu0 0
  %1469 = vmatpush1.bf16.msra.mxu0 0
  %1470 = vmatprep.subr.bf16.mxu0 0
  %1471 = vmatpush1.bf16.msra.mxu0 0
  %1472 = vmatprep.subr.bf16.mxu0 0
  %1473 = vmatpush1.bf16.msra.mxu0 0
  %1474 = vmatprep.subr.bf16.mxu0 0
  %1475 = vmatpush1.bf16.msra.mxu0 0
  %1476 = vmatprep.subr.bf16.mxu0 0
  %1477 = vmatpush1.bf16.msra.mxu0 0
  %1478 = vmatprep.subr.bf16.mxu0 0
  %1479 = vmatpush1.bf16.msra.mxu0 0
  %1480 = vmatprep.subr.bf16.mxu0 0
  %1481 = vmatpush1.bf16.msra.mxu0 0
  %1482 = vmatprep.subr.bf16.mxu0 0
  %1483 = vmatpush1.bf16.msra.mxu0 0
  %1484 = vmatprep.subr.bf16.mxu0 0
  %1485 = vmatpush1.bf16.msra.mxu0 0
  %1486 = vmatprep.subr.bf16.mxu0 0
  %1487 = vmatpush1.bf16.msra.mxu0 0
  %1488 = vmatprep.subr.bf16.mxu0 0
  %1489 = vmatpush1.bf16.msra.mxu0 0
  %1490 = vmatprep.mubr.bf16.mxu0 0
  %1491 = vmatmul.mubr.bf16.gmra.mrb[0].mxu0 %v1456
  %v1492 = vpop.f32.mrb[0].mxu0
  %v1493 = vadd.f32 0.0, %v1492
  %v1494 = vpop.f32.mrb[0].mxu0
  %v1495 = vpop.f32.mrb[0].mxu0
  %v1496 = vpop.f32.mrb[0].mxu0
  %1497 = vdwg.mxu0
  %v1498 = vadd.f32 %v1448, %v1493
  %v1499 = vxor.u32 %v1498, 2147483648
  %v1500 = vmul.f32 %v1499, 1.442695
  %v1501 = vpow.pop %v1500
  %v1502 = vadd.f32 %v1501, 1.0
  %v1503 = vrcp.pop %v1502
  %v1504 = vmul.f32 1.0, %v1503
  %v1505 = vmul.f32 %v1504, %v1278
  %v1506 = vtanh.pop %v1498
  %1508 = vrot.lane.b32.xlu0 %v1506, 64
  %v1509 = vpop.permute.xlu0 %1508
  %v1511 = vmul.f32 %v1504, %v1509
  %1513 = vrot.lane.b32.xlu0 %v1511, 32
  %v1514 = vpop.permute.xlu0 %1513
  %v1516 = vadd.f32 %v1505, %v1514
  %v1517 = vtanh.pop %v1516
  %1519 = vrot.lane.b32.xlu0 %v1517, 64
  %v1520 = vpop.permute.xlu0 %1519
  %v1522 = vmul.f32 %v1504, %v1520
  %1524 = vrot.lane.b32.xlu0 %v1522, 32
  %v1525 = vpop.permute.xlu0 %1524
  %1527 = vrot.lane.b32.xlu0 %v1364, 64
  %v1528 = vpop.permute.xlu0 %1527
  %v1530 = vsel %vm213, %v1525, %v1528
  %v1531 = vpack.c.bf16 %v1530, %v1530
  %v1532 = vld [vmem:[#allocation3] sm:$0xff]
  %v1533 = vld [vmem:[#allocation3 + $0x8] sm:$0xff]
  %v1534 = vld [vmem:[#allocation3 + $0x10] sm:$0xff]
  %v1535 = vld [vmem:[#allocation3 + $0x18] sm:$0xff]
  %v1537 = vsel %vm583, %v1531, 0
  %1539 = vmatprep.subr.bf16.mxu0 0
  %1540 = vmatpush1.bf16.msra.mxu0 %v1532
  %1541 = vmatprep.subr.bf16.mxu0 0
  %1542 = vmatpush1.bf16.msra.mxu0 %v1533
  %1543 = vmatprep.subr.bf16.mxu0 0
  %1544 = vmatpush1.bf16.msra.mxu0 %v1534
  %1545 = vmatprep.subr.bf16.mxu0 0
  %1546 = vmatpush1.bf16.msra.mxu0 %v1535
  %1547 = vmatprep.subr.bf16.mxu0 0
  %1548 = vmatpush1.bf16.msra.mxu0 0
  %1549 = vmatprep.subr.bf16.mxu0 0
  %1550 = vmatpush1.bf16.msra.mxu0 0
  %1551 = vmatprep.subr.bf16.mxu0 0
  %1552 = vmatpush1.bf16.msra.mxu0 0
  %1553 = vmatprep.subr.bf16.mxu0 0
  %1554 = vmatpush1.bf16.msra.mxu0 0
  %1555 = vmatprep.subr.bf16.mxu0 0
  %1556 = vmatpush1.bf16.msra.mxu0 0
  %1557 = vmatprep.subr.bf16.mxu0 0
  %1558 = vmatpush1.bf16.msra.mxu0 0
  %1559 = vmatprep.subr.bf16.mxu0 0
  %1560 = vmatpush1.bf16.msra.mxu0 0
  %1561 = vmatprep.subr.bf16.mxu0 0
  %1562 = vmatpush1.bf16.msra.mxu0 0
  %1563 = vmatprep.subr.bf16.mxu0 0
  %1564 = vmatpush1.bf16.msra.mxu0 0
  %1565 = vmatprep.subr.bf16.mxu0 0
  %1566 = vmatpush1.bf16.msra.mxu0 0
  %1567 = vmatprep.subr.bf16.mxu0 0
  %1568 = vmatpush1.bf16.msra.mxu0 0
  %1569 = vmatprep.subr.bf16.mxu0 0
  %1570 = vmatpush1.bf16.msra.mxu0 0
  %1571 = vmatprep.mubr.bf16.mxu0 0
  %1572 = vmatmul.mubr.bf16.gmra.mrb[0].mxu0 %v1537
  %v1573 = vpop.f32.mrb[0].mxu0
  %v1574 = vadd.f32 %v337, %v1573
  %v1575 = vpop.f32.mrb[0].mxu0
  %v1576 = vpop.f32.mrb[0].mxu0
  %v1577 = vpop.f32.mrb[0].mxu0
  %1578 = vdwg.mxu0
  %v1579 = vxor.u32 %v1574, 2147483648
  %v1580 = vmul.f32 %v1579, 1.442695
  %v1581 = vpow.pop %v1580
  %v1582 = vadd.f32 %v1581, 1.0
  %v1583 = vrcp.pop %v1582
  %v1584 = vmul.f32 1.0, %v1583
  %v1585 = vmul.f32 %v1584, %v1358
  %v1586 = vtanh.pop %v1574
  %1588 = vrot.lane.b32.xlu0 %v1586, 64
  %v1589 = vpop.permute.xlu0 %1588
  %v1591 = vmul.f32 %v1584, %v1589
  %1593 = vrot.lane.b32.xlu0 %v1591, 32
  %v1594 = vpop.permute.xlu0 %1593
  %v1596 = vadd.f32 %v1585, %v1594
  %v1597 = vtanh.pop %v1596
  %1599 = vrot.lane.b32.xlu0 %v1597, 64
  %v1600 = vpop.permute.xlu0 %1599
  %v1602 = vmul.f32 %v1584, %v1600
  %v1603 = vld [vmem:[%s7] sm:$0xff]
  %v1604 = vld [vmem:[%s7 + $0x8] sm:$0xff]
  %v1605 = vld [vmem:[%s7 + $0x10] sm:$0xff]
  %v1606 = vld [vmem:[%s7 + $0x18] sm:$0xff]
  %1608 = vrot.lane.b32.xlu0 %v1602, 32
  %v1609 = vpop.permute.xlu0 %1608
  %v1610 = vsel %vm213, %v1609, 0
  %1612 = vmatprep.subr.mxu0 0.0
  %1613 = vmatpush1.msra.mxu0 %v1603
  %1614 = vmatprep.subr.mxu0 0.0
  %1615 = vmatpush1.msra.mxu0 %v1604
  %1616 = vmatprep.subr.mxu0 0.0
  %1617 = vmatpush1.msra.mxu0 %v1605
  %1618 = vmatprep.subr.mxu0 0.0
  %1619 = vmatpush1.msra.mxu0 %v1606
  %1620 = vmatprep.subr.mxu0 0.0
  %1621 = vmatpush1.msra.mxu0 0.0
  %1622 = vmatprep.subr.mxu0 0.0
  %1623 = vmatpush1.msra.mxu0 0.0
  %1624 = vmatprep.subr.mxu0 0.0
  %1625 = vmatpush1.msra.mxu0 0.0
  %1626 = vmatprep.subr.mxu0 0.0
  %1627 = vmatpush1.msra.mxu0 0.0
  %1628 = vmatprep.subr.mxu0 0.0
  %1629 = vmatpush1.msra.mxu0 0.0
  %1630 = vmatprep.subr.mxu0 0.0
  %1631 = vmatpush1.msra.mxu0 0.0
  %1632 = vmatprep.subr.mxu0 0.0
  %1633 = vmatpush1.msra.mxu0 0.0
  %1634 = vmatprep.subr.mxu0 0.0
  %1635 = vmatpush1.msra.mxu0 0.0
  %1636 = vmatprep.subr.mxu0 0.0
  %1637 = vmatpush1.msra.mxu0 0.0
  %1638 = vmatprep.subr.mxu0 0.0
  %1639 = vmatpush1.msra.mxu0 0.0
  %1640 = vmatprep.subr.mxu0 0.0
  %1641 = vmatpush1.msra.mxu0 0.0
  %1642 = vmatprep.subr.mxu0 0.0
  %1643 = vmatpush1.msra.mxu0 0.0
  %1644 = vmatprep.subr.mxu0 0.0
  %1645 = vmatpush1.msra.mxu0 0.0
  %1646 = vmatprep.subr.mxu0 0.0
  %1647 = vmatpush1.msra.mxu0 0.0
  %1648 = vmatprep.subr.mxu0 0.0
  %1649 = vmatpush1.msra.mxu0 0.0
  %1650 = vmatprep.subr.mxu0 0.0
  %1651 = vmatpush1.msra.mxu0 0.0
  %1652 = vmatprep.subr.mxu0 0.0
  %1653 = vmatpush1.msra.mxu0 0.0
  %1654 = vmatprep.subr.mxu0 0.0
  %1655 = vmatpush1.msra.mxu0 0.0
  %1656 = vmatprep.subr.mxu0 0.0
  %1657 = vmatpush1.msra.mxu0 0.0
  %1658 = vmatprep.subr.mxu0 0.0
  %1659 = vmatpush1.msra.mxu0 0.0
  %1660 = vmatprep.subr.mxu0 0.0
  %1661 = vmatpush1.msra.mxu0 0.0
  %1662 = vmatprep.subr.mxu0 0.0
  %1663 = vmatpush1.msra.mxu0 0.0
  %1664 = vmatprep.subr.mxu0 0.0
  %1665 = vmatpush1.msra.mxu0 0.0
  %1666 = vmatprep.subr.mxu0 0.0
  %1667 = vmatpush1.msra.mxu0 0.0
  %1668 = vmatprep.subr.mxu0 0.0
  %1669 = vmatpush1.msra.mxu0 0.0
  %1670 = vmatprep.subr.mxu0 0.0
  %1671 = vmatpush1.msra.mxu0 0.0
  %1672 = vmatprep.subr.mxu0 0.0
  %1673 = vmatpush1.msra.mxu0 0.0
  %1674 = vmatprep.subr.mxu0 0.0
  %1675 = vmatpush1.msra.mxu0 0.0
  %1676 = vmatprep.mubr.f32.mxu0 0.0
  %1677 = vmatmul.mubr.f32.gmra.mrb[0].mxu0 %v1610
  %v1678 = vpop.f32.mrb[0].mxu0
  %v1679 = vadd.f32 %v417, %v1678
  %v1680 = vpop.f32.mrb[0].mxu0
  %1681 = vdwg.mxu0
  %v1682 = vmul.f32 %v1679, 0.01
  %s1683 = scalar_lea.vmem %s9, 40
  %1684 = vst.msk [vmem:[%s1683] sm:$0xff] %vm495, %v1682
  %s1685 = scalar_lea.vmem [#allocation2], 48
  %v1686 = vld [vmem:[%s1685] sm:$0xff]
  %v1687 = vpack.c.bf16 %v1522, %v1522
  %v1688 = vld [vmem:[#allocation4] sm:$0xff]
  %v1689 = vld [vmem:[#allocation4 + $0x8] sm:$0xff]
  %1691 = vrot.lane.b32.xlu0 %v1687, 32
  %v1692 = vpop.permute.xlu0 %1691
  %v1694 = vsel %vm213, %v1692, 0
  %1696 = vmatprep.subr.bf16.mxu0 0
  %1697 = vmatpush1.bf16.msra.mxu0 %v1688
  %1698 = vmatprep.subr.bf16.mxu0 0
  %1699 = vmatpush1.bf16.msra.mxu0 %v1689
  %1700 = vmatprep.subr.bf16.mxu0 0
  %1701 = vmatpush1.bf16.msra.mxu0 0
  %1702 = vmatprep.subr.bf16.mxu0 0
  %1703 = vmatpush1.bf16.msra.mxu0 0
  %1704 = vmatprep.subr.bf16.mxu0 0
  %1705 = vmatpush1.bf16.msra.mxu0 0
  %1706 = vmatprep.subr.bf16.mxu0 0
  %1707 = vmatpush1.bf16.msra.mxu0 0
  %1708 = vmatprep.subr.bf16.mxu0 0
  %1709 = vmatpush1.bf16.msra.mxu0 0
  %1710 = vmatprep.subr.bf16.mxu0 0
  %1711 = vmatpush1.bf16.msra.mxu0 0
  %1712 = vmatprep.subr.bf16.mxu0 0
  %1713 = vmatpush1.bf16.msra.mxu0 0
  %1714 = vmatprep.subr.bf16.mxu0 0
  %1715 = vmatpush1.bf16.msra.mxu0 0
  %1716 = vmatprep.subr.bf16.mxu0 0
  %1717 = vmatpush1.bf16.msra.mxu0 0
  %1718 = vmatprep.subr.bf16.mxu0 0
  %1719 = vmatpush1.bf16.msra.mxu0 0
  %1720 = vmatprep.subr.bf16.mxu0 0
  %1721 = vmatpush1.bf16.msra.mxu0 0
  %1722 = vmatprep.subr.bf16.mxu0 0
  %1723 = vmatpush1.bf16.msra.mxu0 0
  %1724 = vmatprep.subr.bf16.mxu0 0
  %1725 = vmatpush1.bf16.msra.mxu0 0
  %1726 = vmatprep.subr.bf16.mxu0 0
  %1727 = vmatpush1.bf16.msra.mxu0 0
  %1728 = vmatprep.mubr.bf16.mxu0 0
  %1729 = vmatmul.mubr.bf16.gmra.mrb[0].mxu0 %v1694
  %v1730 = vpop.f32.mrb[0].mxu0
  %v1731 = vadd.f32 0.0, %v1730
  %v1732 = vpop.f32.mrb[0].mxu0
  %v1733 = vpop.f32.mrb[0].mxu0
  %v1734 = vpop.f32.mrb[0].mxu0
  %1735 = vdwg.mxu0
  %v1736 = vadd.f32 %v1686, %v1731
  %v1737 = vxor.u32 %v1736, 2147483648
  %v1738 = vmul.f32 %v1737, 1.442695
  %v1739 = vpow.pop %v1738
  %v1740 = vadd.f32 %v1739, 1.0
  %v1741 = vrcp.pop %v1740
  %v1742 = vmul.f32 1.0, %v1741
  %v1743 = vmul.f32 %v1742, %v1516
  %v1744 = vtanh.pop %v1736
  %1746 = vrot.lane.b32.xlu0 %v1744, 64
  %v1747 = vpop.permute.xlu0 %1746
  %v1749 = vmul.f32 %v1742, %v1747
  %1751 = vrot.lane.b32.xlu0 %v1749, 32
  %v1752 = vpop.permute.xlu0 %1751
  %v1754 = vadd.f32 %v1743, %v1752
  %v1755 = vtanh.pop %v1754
  %1757 = vrot.lane.b32.xlu0 %v1755, 64
  %v1758 = vpop.permute.xlu0 %1757
  %v1760 = vmul.f32 %v1742, %v1758
  %1762 = vrot.lane.b32.xlu0 %v1760, 32
  %v1763 = vpop.permute.xlu0 %1762
  %1765 = vrot.lane.b32.xlu0 %v1602, 64
  %v1766 = vpop.permute.xlu0 %1765
  %v1768 = vsel %vm213, %v1763, %v1766
  %v1769 = vpack.c.bf16 %v1768, %v1768
  %v1770 = vld [vmem:[#allocation3] sm:$0xff]
  %v1771 = vld [vmem:[#allocation3 + $0x8] sm:$0xff]
  %v1772 = vld [vmem:[#allocation3 + $0x10] sm:$0xff]
  %v1773 = vld [vmem:[#allocation3 + $0x18] sm:$0xff]
  %v1775 = vsel %vm583, %v1769, 0
  %1777 = vmatprep.subr.bf16.mxu0 0
  %1778 = vmatpush1.bf16.msra.mxu0 %v1770
  %1779 = vmatprep.subr.bf16.mxu0 0
  %1780 = vmatpush1.bf16.msra.mxu0 %v1771
  %1781 = vmatprep.subr.bf16.mxu0 0
  %1782 = vmatpush1.bf16.msra.mxu0 %v1772
  %1783 = vmatprep.subr.bf16.mxu0 0
  %1784 = vmatpush1.bf16.msra.mxu0 %v1773
  %1785 = vmatprep.subr.bf16.mxu0 0
  %1786 = vmatpush1.bf16.msra.mxu0 0
  %1787 = vmatprep.subr.bf16.mxu0 0
  %1788 = vmatpush1.bf16.msra.mxu0 0
  %1789 = vmatprep.subr.bf16.mxu0 0
  %1790 = vmatpush1.bf16.msra.mxu0 0
  %1791 = vmatprep.subr.bf16.mxu0 0
  %1792 = vmatpush1.bf16.msra.mxu0 0
  %1793 = vmatprep.subr.bf16.mxu0 0
  %1794 = vmatpush1.bf16.msra.mxu0 0
  %1795 = vmatprep.subr.bf16.mxu0 0
  %1796 = vmatpush1.bf16.msra.mxu0 0
  %1797 = vmatprep.subr.bf16.mxu0 0
  %1798 = vmatpush1.bf16.msra.mxu0 0
  %1799 = vmatprep.subr.bf16.mxu0 0
  %1800 = vmatpush1.bf16.msra.mxu0 0
  %1801 = vmatprep.subr.bf16.mxu0 0
  %1802 = vmatpush1.bf16.msra.mxu0 0
  %1803 = vmatprep.subr.bf16.mxu0 0
  %1804 = vmatpush1.bf16.msra.mxu0 0
  %1805 = vmatprep.subr.bf16.mxu0 0
  %1806 = vmatpush1.bf16.msra.mxu0 0
  %1807 = vmatprep.subr.bf16.mxu0 0
  %1808 = vmatpush1.bf16.msra.mxu0 0
  %1809 = vmatprep.mubr.bf16.mxu0 0
  %1810 = vmatmul.mubr.bf16.gmra.mrb[0].mxu0 %v1775
  %v1811 = vpop.f32.mrb[0].mxu0
  %v1812 = vadd.f32 %v337, %v1811
  %v1813 = vpop.f32.mrb[0].mxu0
  %v1814 = vpop.f32.mrb[0].mxu0
  %v1815 = vpop.f32.mrb[0].mxu0
  %1816 = vdwg.mxu0
  %v1817 = vxor.u32 %v1812, 2147483648
  %v1818 = vmul.f32 %v1817, 1.442695
  %v1819 = vpow.pop %v1818
  %v1820 = vadd.f32 %v1819, 1.0
  %v1821 = vrcp.pop %v1820
  %v1822 = vmul.f32 1.0, %v1821
  %v1823 = vmul.f32 %v1822, %v1596
  %v1824 = vtanh.pop %v1812
  %1826 = vrot.lane.b32.xlu0 %v1824, 64
  %v1827 = vpop.permute.xlu0 %1826
  %v1829 = vmul.f32 %v1822, %v1827
  %1831 = vrot.lane.b32.xlu0 %v1829, 32
  %v1832 = vpop.permute.xlu0 %1831
  %v1834 = vadd.f32 %v1823, %v1832
  %v1835 = vtanh.pop %v1834
  %1837 = vrot.lane.b32.xlu0 %v1835, 64
  %v1838 = vpop.permute.xlu0 %1837
  %v1840 = vmul.f32 %v1822, %v1838
  %v1841 = vld [vmem:[%s7] sm:$0xff]
  %v1842 = vld [vmem:[%s7 + $0x8] sm:$0xff]
  %v1843 = vld [vmem:[%s7 + $0x10] sm:$0xff]
  %v1844 = vld [vmem:[%s7 + $0x18] sm:$0xff]
  %1846 = vrot.lane.b32.xlu0 %v1840, 32
  %v1847 = vpop.permute.xlu0 %1846
  %v1848 = vsel %vm213, %v1847, 0
  %1850 = vmatprep.subr.mxu0 0.0
  %1851 = vmatpush1.msra.mxu0 %v1841
  %1852 = vmatprep.subr.mxu0 0.0
  %1853 = vmatpush1.msra.mxu0 %v1842
  %1854 = vmatprep.subr.mxu0 0.0
  %1855 = vmatpush1.msra.mxu0 %v1843
  %1856 = vmatprep.subr.mxu0 0.0
  %1857 = vmatpush1.msra.mxu0 %v1844
  %1858 = vmatprep.subr.mxu0 0.0
  %1859 = vmatpush1.msra.mxu0 0.0
  %1860 = vmatprep.subr.mxu0 0.0
  %1861 = vmatpush1.msra.mxu0 0.0
  %1862 = vmatprep.subr.mxu0 0.0
  %1863 = vmatpush1.msra.mxu0 0.0
  %1864 = vmatprep.subr.mxu0 0.0
  %1865 = vmatpush1.msra.mxu0 0.0
  %1866 = vmatprep.subr.mxu0 0.0
  %1867 = vmatpush1.msra.mxu0 0.0
  %1868 = vmatprep.subr.mxu0 0.0
  %1869 = vmatpush1.msra.mxu0 0.0
  %1870 = vmatprep.subr.mxu0 0.0
  %1871 = vmatpush1.msra.mxu0 0.0
  %1872 = vmatprep.subr.mxu0 0.0
  %1873 = vmatpush1.msra.mxu0 0.0
  %1874 = vmatprep.subr.mxu0 0.0
  %1875 = vmatpush1.msra.mxu0 0.0
  %1876 = vmatprep.subr.mxu0 0.0
  %1877 = vmatpush1.msra.mxu0 0.0
  %1878 = vmatprep.subr.mxu0 0.0
  %1879 = vmatpush1.msra.mxu0 0.0
  %1880 = vmatprep.subr.mxu0 0.0
  %1881 = vmatpush1.msra.mxu0 0.0
  %1882 = vmatprep.subr.mxu0 0.0
  %1883 = vmatpush1.msra.mxu0 0.0
  %1884 = vmatprep.subr.mxu0 0.0
  %1885 = vmatpush1.msra.mxu0 0.0
  %1886 = vmatprep.subr.mxu0 0.0
  %1887 = vmatpush1.msra.mxu0 0.0
  %1888 = vmatprep.subr.mxu0 0.0
  %1889 = vmatpush1.msra.mxu0 0.0
  %1890 = vmatprep.subr.mxu0 0.0
  %1891 = vmatpush1.msra.mxu0 0.0
  %1892 = vmatprep.subr.mxu0 0.0
  %1893 = vmatpush1.msra.mxu0 0.0
  %1894 = vmatprep.subr.mxu0 0.0
  %1895 = vmatpush1.msra.mxu0 0.0
  %1896 = vmatprep.subr.mxu0 0.0
  %1897 = vmatpush1.msra.mxu0 0.0
  %1898 = vmatprep.subr.mxu0 0.0
  %1899 = vmatpush1.msra.mxu0 0.0
  %1900 = vmatprep.subr.mxu0 0.0
  %1901 = vmatpush1.msra.mxu0 0.0
  %1902 = vmatprep.subr.mxu0 0.0
  %1903 = vmatpush1.msra.mxu0 0.0
  %1904 = vmatprep.subr.mxu0 0.0
  %1905 = vmatpush1.msra.mxu0 0.0
  %1906 = vmatprep.subr.mxu0 0.0
  %1907 = vmatpush1.msra.mxu0 0.0
  %1908 = vmatprep.subr.mxu0 0.0
  %1909 = vmatpush1.msra.mxu0 0.0
  %1910 = vmatprep.subr.mxu0 0.0
  %1911 = vmatpush1.msra.mxu0 0.0
  %1912 = vmatprep.subr.mxu0 0.0
  %1913 = vmatpush1.msra.mxu0 0.0
  %1914 = vmatprep.mubr.f32.mxu0 0.0
  %1915 = vmatmul.mubr.f32.gmra.mrb[0].mxu0 %v1848
  %v1916 = vpop.f32.mrb[0].mxu0
  %v1917 = vadd.f32 %v417, %v1916
  %v1918 = vpop.f32.mrb[0].mxu0
  %1919 = vdwg.mxu0
  %v1920 = vmul.f32 %v1917, 0.01
  %s1921 = scalar_lea.vmem %s9, 48
  %1922 = vst.msk [vmem:[%s1921] sm:$0xff] %vm495, %v1920
  %s1923 = scalar_lea.vmem [#allocation2], 56
  %v1924 = vld [vmem:[%s1923] sm:$0xff]
  %v1925 = vpack.c.bf16 %v1760, %v1760
  %v1926 = vld [vmem:[#allocation4] sm:$0xff]
  %v1927 = vld [vmem:[#allocation4 + $0x8] sm:$0xff]
  %1929 = vrot.lane.b32.xlu0 %v1925, 32
  %v1930 = vpop.permute.xlu0 %1929
  %v1932 = vsel %vm213, %v1930, 0
  %1934 = vmatprep.subr.bf16.mxu0 0
  %1935 = vmatpush1.bf16.msra.mxu0 %v1926
  %1936 = vmatprep.subr.bf16.mxu0 0
  %1937 = vmatpush1.bf16.msra.mxu0 %v1927
  %1938 = vmatprep.subr.bf16.mxu0 0
  %1939 = vmatpush1.bf16.msra.mxu0 0
  %1940 = vmatprep.subr.bf16.mxu0 0
  %1941 = vmatpush1.bf16.msra.mxu0 0
  %1942 = vmatprep.subr.bf16.mxu0 0
  %1943 = vmatpush1.bf16.msra.mxu0 0
  %1944 = vmatprep.subr.bf16.mxu0 0
  %1945 = vmatpush1.bf16.msra.mxu0 0
  %1946 = vmatprep.subr.bf16.mxu0 0
  %1947 = vmatpush1.bf16.msra.mxu0 0
  %1948 = vmatprep.subr.bf16.mxu0 0
  %1949 = vmatpush1.bf16.msra.mxu0 0
  %1950 = vmatprep.subr.bf16.mxu0 0
  %1951 = vmatpush1.bf16.msra.mxu0 0
  %1952 = vmatprep.subr.bf16.mxu0 0
  %1953 = vmatpush1.bf16.msra.mxu0 0
  %1954 = vmatprep.subr.bf16.mxu0 0
  %1955 = vmatpush1.bf16.msra.mxu0 0
  %1956 = vmatprep.subr.bf16.mxu0 0
  %1957 = vmatpush1.bf16.msra.mxu0 0
  %1958 = vmatprep.subr.bf16.mxu0 0
  %1959 = vmatpush1.bf16.msra.mxu0 0
  %1960 = vmatprep.subr.bf16.mxu0 0
  %1961 = vmatpush1.bf16.msra.mxu0 0
  %1962 = vmatprep.subr.bf16.mxu0 0
  %1963 = vmatpush1.bf16.msra.mxu0 0
  %1964 = vmatprep.subr.bf16.mxu0 0
  %1965 = vmatpush1.bf16.msra.mxu0 0
  %1966 = vmatprep.mubr.bf16.mxu0 0
  %1967 = vmatmul.mubr.bf16.gmra.mrb[0].mxu0 %v1932
  %v1968 = vpop.f32.mrb[0].mxu0
  %v1969 = vadd.f32 0.0, %v1968
  %v1970 = vpop.f32.mrb[0].mxu0
  %v1971 = vpop.f32.mrb[0].mxu0
  %v1972 = vpop.f32.mrb[0].mxu0
  %1973 = vdwg.mxu0
  %v1974 = vadd.f32 %v1924, %v1969
  %v1975 = vxor.u32 %v1974, 2147483648
  %v1976 = vmul.f32 %v1975, 1.442695
  %v1977 = vpow.pop %v1976
  %v1978 = vadd.f32 %v1977, 1.0
  %v1979 = vrcp.pop %v1978
  %v1980 = vmul.f32 1.0, %v1979
  %v1981 = vmul.f32 %v1980, %v1754
  %v1982 = vtanh.pop %v1974
  %1984 = vrot.lane.b32.xlu0 %v1982, 64
  %v1985 = vpop.permute.xlu0 %1984
  %v1987 = vmul.f32 %v1980, %v1985
  %1989 = vrot.lane.b32.xlu0 %v1987, 32
  %v1990 = vpop.permute.xlu0 %1989
  %v1992 = vadd.f32 %v1981, %v1990
  %v1993 = vtanh.pop %v1992
  %1995 = vrot.lane.b32.xlu0 %v1993, 64
  %v1996 = vpop.permute.xlu0 %1995
  %v1998 = vmul.f32 %v1980, %v1996
  %2000 = vrot.lane.b32.xlu0 %v1998, 32
  %v2001 = vpop.permute.xlu0 %2000
  %2003 = vrot.lane.b32.xlu0 %v1840, 64
  %v2004 = vpop.permute.xlu0 %2003
  %v2006 = vsel %vm213, %v2001, %v2004
  %v2007 = vpack.c.bf16 %v2006, %v2006
  %v2008 = vld [vmem:[#allocation3] sm:$0xff]
  %v2009 = vld [vmem:[#allocation3 + $0x8] sm:$0xff]
  %v2010 = vld [vmem:[#allocation3 + $0x10] sm:$0xff]
  %v2011 = vld [vmem:[#allocation3 + $0x18] sm:$0xff]
  %v2013 = vsel %vm583, %v2007, 0
  %2015 = vmatprep.subr.bf16.mxu0 0
  %2016 = vmatpush1.bf16.msra.mxu0 %v2008
  %2017 = vmatprep.subr.bf16.mxu0 0
  %2018 = vmatpush1.bf16.msra.mxu0 %v2009
  %2019 = vmatprep.subr.bf16.mxu0 0
  %2020 = vmatpush1.bf16.msra.mxu0 %v2010
  %2021 = vmatprep.subr.bf16.mxu0 0
  %2022 = vmatpush1.bf16.msra.mxu0 %v2011
  %2023 = vmatprep.subr.bf16.mxu0 0
  %2024 = vmatpush1.bf16.msra.mxu0 0
  %2025 = vmatprep.subr.bf16.mxu0 0
  %2026 = vmatpush1.bf16.msra.mxu0 0
  %2027 = vmatprep.subr.bf16.mxu0 0
  %2028 = vmatpush1.bf16.msra.mxu0 0
  %2029 = vmatprep.subr.bf16.mxu0 0
  %2030 = vmatpush1.bf16.msra.mxu0 0
  %2031 = vmatprep.subr.bf16.mxu0 0
  %2032 = vmatpush1.bf16.msra.mxu0 0
  %2033 = vmatprep.subr.bf16.mxu0 0
  %2034 = vmatpush1.bf16.msra.mxu0 0
  %2035 = vmatprep.subr.bf16.mxu0 0
  %2036 = vmatpush1.bf16.msra.mxu0 0
  %2037 = vmatprep.subr.bf16.mxu0 0
  %2038 = vmatpush1.bf16.msra.mxu0 0
  %2039 = vmatprep.subr.bf16.mxu0 0
  %2040 = vmatpush1.bf16.msra.mxu0 0
  %2041 = vmatprep.subr.bf16.mxu0 0
  %2042 = vmatpush1.bf16.msra.mxu0 0
  %2043 = vmatprep.subr.bf16.mxu0 0
  %2044 = vmatpush1.bf16.msra.mxu0 0
  %2045 = vmatprep.subr.bf16.mxu0 0
  %2046 = vmatpush1.bf16.msra.mxu0 0
  %2047 = vmatprep.mubr.bf16.mxu0 0
  %2048 = vmatmul.mubr.bf16.gmra.mrb[0].mxu0 %v2013
  %v2049 = vpop.f32.mrb[0].mxu0
  %v2050 = vadd.f32 %v337, %v2049
  %v2051 = vpop.f32.mrb[0].mxu0
  %v2052 = vpop.f32.mrb[0].mxu0
  %v2053 = vpop.f32.mrb[0].mxu0
  %2054 = vdwg.mxu0
  %v2055 = vxor.u32 %v2050, 2147483648
  %v2056 = vmul.f32 %v2055, 1.442695
  %v2057 = vpow.pop %v2056
  %v2058 = vadd.f32 %v2057, 1.0
  %v2059 = vrcp.pop %v2058
  %v2060 = vmul.f32 1.0, %v2059
  %v2061 = vmul.f32 %v2060, %v1834
  %v2062 = vtanh.pop %v2050
  %2064 = vrot.lane.b32.xlu0 %v2062, 64
  %v2065 = vpop.permute.xlu0 %2064
  %v2067 = vmul.f32 %v2060, %v2065
  %2069 = vrot.lane.b32.xlu0 %v2067, 32
  %v2070 = vpop.permute.xlu0 %2069
  %v2072 = vadd.f32 %v2061, %v2070
  %v2073 = vtanh.pop %v2072
  %2075 = vrot.lane.b32.xlu0 %v2073, 64
  %v2076 = vpop.permute.xlu0 %2075
  %v2078 = vmul.f32 %v2060, %v2076
  %v2079 = vld [vmem:[%s7] sm:$0xff]
  %v2080 = vld [vmem:[%s7 + $0x8] sm:$0xff]
  %v2081 = vld [vmem:[%s7 + $0x10] sm:$0xff]
  %v2082 = vld [vmem:[%s7 + $0x18] sm:$0xff]
  %2084 = vrot.lane.b32.xlu0 %v2078, 32
  %v2085 = vpop.permute.xlu0 %2084
  %v2086 = vsel %vm213, %v2085, 0
  %2088 = vmatprep.subr.mxu0 0.0
  %2089 = vmatpush1.msra.mxu0 %v2079
  %2090 = vmatprep.subr.mxu0 0.0
  %2091 = vmatpush1.msra.mxu0 %v2080
  %2092 = vmatprep.subr.mxu0 0.0
  %2093 = vmatpush1.msra.mxu0 %v2081
  %2094 = vmatprep.subr.mxu0 0.0
  %2095 = vmatpush1.msra.mxu0 %v2082
  %2096 = vmatprep.subr.mxu0 0.0
  %2097 = vmatpush1.msra.mxu0 0.0
  %2098 = vmatprep.subr.mxu0 0.0
  %2099 = vmatpush1.msra.mxu0 0.0
  %2100 = vmatprep.subr.mxu0 0.0
  %2101 = vmatpush1.msra.mxu0 0.0
  %2102 = vmatprep.subr.mxu0 0.0
  %2103 = vmatpush1.msra.mxu0 0.0
  %2104 = vmatprep.subr.mxu0 0.0
  %2105 = vmatpush1.msra.mxu0 0.0
  %2106 = vmatprep.subr.mxu0 0.0
  %2107 = vmatpush1.msra.mxu0 0.0
  %2108 = vmatprep.subr.mxu0 0.0
  %2109 = vmatpush1.msra.mxu0 0.0
  %2110 = vmatprep.subr.mxu0 0.0
  %2111 = vmatpush1.msra.mxu0 0.0
  %2112 = vmatprep.subr.mxu0 0.0
  %2113 = vmatpush1.msra.mxu0 0.0
  %2114 = vmatprep.subr.mxu0 0.0
  %2115 = vmatpush1.msra.mxu0 0.0
  %2116 = vmatprep.subr.mxu0 0.0
  %2117 = vmatpush1.msra.mxu0 0.0
  %2118 = vmatprep.subr.mxu0 0.0
  %2119 = vmatpush1.msra.mxu0 0.0
  %2120 = vmatprep.subr.mxu0 0.0
  %2121 = vmatpush1.msra.mxu0 0.0
  %2122 = vmatprep.subr.mxu0 0.0
  %2123 = vmatpush1.msra.mxu0 0.0
  %2124 = vmatprep.subr.mxu0 0.0
  %2125 = vmatpush1.msra.mxu0 0.0
  %2126 = vmatprep.subr.mxu0 0.0
  %2127 = vmatpush1.msra.mxu0 0.0
  %2128 = vmatprep.subr.mxu0 0.0
  %2129 = vmatpush1.msra.mxu0 0.0
  %2130 = vmatprep.subr.mxu0 0.0
  %2131 = vmatpush1.msra.mxu0 0.0
  %2132 = vmatprep.subr.mxu0 0.0
  %2133 = vmatpush1.msra.mxu0 0.0
  %2134 = vmatprep.subr.mxu0 0.0
  %2135 = vmatpush1.msra.mxu0 0.0
  %2136 = vmatprep.subr.mxu0 0.0
  %2137 = vmatpush1.msra.mxu0 0.0
  %2138 = vmatprep.subr.mxu0 0.0
  %2139 = vmatpush1.msra.mxu0 0.0
  %2140 = vmatprep.subr.mxu0 0.0
  %2141 = vmatpush1.msra.mxu0 0.0
  %2142 = vmatprep.subr.mxu0 0.0
  %2143 = vmatpush1.msra.mxu0 0.0
  %2144 = vmatprep.subr.mxu0 0.0
  %2145 = vmatpush1.msra.mxu0 0.0
  %2146 = vmatprep.subr.mxu0 0.0
  %2147 = vmatpush1.msra.mxu0 0.0
  %2148 = vmatprep.subr.mxu0 0.0
  %2149 = vmatpush1.msra.mxu0 0.0
  %2150 = vmatprep.subr.mxu0 0.0
  %2151 = vmatpush1.msra.mxu0 0.0
  %2152 = vmatprep.mubr.f32.mxu0 0.0
  %2153 = vmatmul.mubr.f32.gmra.mrb[0].mxu0 %v2086
  %v2154 = vpop.f32.mrb[0].mxu0
  %v2155 = vadd.f32 %v417, %v2154
  %v2156 = vpop.f32.mrb[0].mxu0
  %2157 = vdwg.mxu0
  %v2158 = vmul.f32 %v2155, 0.01
  %s2159 = scalar_lea.vmem %s9, 56
  %2160 = vst.msk [vmem:[%s2159] sm:$0xff] %vm495, %v2158
  // Predicated region
  $region128: #{posenet_unvio_forward.1} parent=0 // pred_check
    _
  $region129: #{posenet_unvio_forward.1} parent=0 // pred_check_branch
    %2162 = sbr.rel (0) target = $region131
  $region130: #{posenet_unvio_forward.1} parent=0 // pred_region
    _
  $region131: #{posenet_unvio_forward.1} parent=0 // pred_fallthru
    _
  // Predicated region
  $region132: #{posenet_unvio_forward.1} parent=0 // pred_check
    _
  $region133: #{posenet_unvio_forward.1} parent=0 // pred_check_branch
    %2164 = sbr.rel (0) target = $region135
  $region134: #{posenet_unvio_forward.1} parent=0 // pred_region
    _
  $region135: #{posenet_unvio_forward.1} parent=0 // pred_fallthru
    _
  %2165 = vsyncmov [#allocation5]
  %s2166 = vpop.sfrf %2165
  %p2167 = scmp.eq.s32.totalorder %s2166, 0
  %p2168 = pneg %p2167
  %2170 = shalt.err (%p2168)
  %s2171 = scalar_lea.sflag [#allocation5], 1
  %2172 = vsyncmov %s2171
  %s2173 = vpop.sfrf %2172
  %p2174 = scmp.eq.s32.totalorder %s2173, 0
  %p2175 = pneg %p2174
  %2177 = shalt.err (%p2175)
  %s2178 = scalar_lea.sflag [#allocation5], 2
  %2179 = vsyncmov %s2178
  %s2180 = vpop.sfrf %2179
  %p2181 = scmp.eq.s32.totalorder %s2180, 0
  %p2182 = pneg %p2181
  %2184 = shalt.err (%p2182)

</llo_original>
